<compile_context>
chip_gen: v5e
topology: v5e:2x2
jax: 0.10.0
libtpu: 0.0.40
codegen_flags: <defaults>
</compile_context>

<pallas_src>
import jax
import jax.numpy as jnp
from jax.experimental import pallas as pl
from jax.experimental.pallas import tpu as pltpu


# ---------------------------------------------------------------------------
# Pallas kernels
# ---------------------------------------------------------------------------
def _conv_bn_relu_pool_kernel(p_ref, w_ref, shift_ref, o_ref):
    """Fused  maxpool2x2( relu( (patches @ w_scaled) + shift ) )  for one block.

    p_ref:     (1, 4, QG, K) bf16 corner-major im2col patches
    w_ref:     (K, C)        bf16 conv weights with BN scale pre-folded
    shift_ref: (1, C)        f32  folded conv-bias/BN shift
    o_ref:     (1, QG, C)         pooled activations
    """
    w = w_ref[...]
    shift = shift_ref[...]
    m = None
    for c in range(4):                       # four corners of each 2x2 pool window
        y = jnp.dot(p_ref[0, c], w, preferred_element_type=jnp.float32)
        y = jnp.maximum(y + shift, 0.0)      # BN shift (scale folded into w) + ReLU
        m = y if m is None else jnp.maximum(m, y)
    o_ref[0] = m.astype(o_ref.dtype)


def _fc_kernel(x_ref, w_ref, b_ref, o_ref):
    """out = x @ w + b  (w/b zero-padded to a lane-dense 128-column output)."""
    acc = jnp.dot(x_ref[...], w_ref[...], preferred_element_type=jnp.float32)
    o_ref[...] = (acc + b_ref[...]).astype(o_ref.dtype)


# ---------------------------------------------------------------------------
# Glue: im2col (corner-major), BN folding, wrappers
# ---------------------------------------------------------------------------
def im2col_pool_corners(x):
    """x: (N, H, W, Cin) NHWC -> (N, 4, (H//2)*(W//2), Cin*25).

    Corner c = h_in*2 + w_in; row r = h_out*(W//2) + w_out holds the 5x5/pad-2
    patch of conv-output pixel (2*h_out + h_in, 2*w_out + w_in).  Feature order
    is ci*25 + kh*5 + kw, matching torch's conv_w.reshape(Cout, -1).
    """
    N, H, W, Cin = x.shape
    K = Cin * 25
    xp = jnp.pad(x, ((0, 0), (2, 2), (2, 2), (0, 0)))
    rows = []
    for kh in range(5):
        cols = [xp[:, kh:kh + H, kw:kw + W, :] for kw in range(5)]
        rows.append(jnp.stack(cols, axis=-1))              # (N, H, W, Cin, 5[kw])
    pats = jnp.stack(rows, axis=-2)                        # (N, H, W, Cin, 5[kh], 5[kw])
    pats = pats.reshape(N, H, W, K)
    Hp, Wp = H // 2, W // 2
    pats = pats.reshape(N, Hp, 2, Wp, 2, K)                # (N, h_out, h_in, w_out, w_in, K)
    pats = pats.transpose(0, 2, 4, 1, 3, 5)                # (N, h_in, w_in, h_out, w_out, K)
    return pats.reshape(N, 4, Hp * Wp, K)


def fold_conv_bn(conv_w, conv_b, gamma, beta, mean, var, eps=1e-5):
    """Fold BN (inference) into the conv: returns bf16 (K, Cout) weights and f32 shift."""
    cout = conv_w.shape[0]
    s = gamma / jnp.sqrt(var + eps)                        # (Cout,)
    w2d = conv_w.reshape(cout, -1).T                       # (Cin*25, Cout)
    w_folded = (w2d * s[None, :]).astype(jnp.bfloat16)     # scale folded into weights
    shift = (beta + (conv_b - mean) * s).astype(jnp.float32)
    return w_folded, shift


def _images_per_block(n, rows_per_image, target_rows=2048):
    """Pick images-per-block so each block has ~target_rows patch rows while
    keeping >= 2 grid steps (v7x megacore) whenever n >= 2."""
    best = 1
    for g in range(1, n + 1):
        if n % g != 0 or g * rows_per_image > target_rows:
            continue
        if g == n and n >= 2:
            continue
        best = g
    return best


def conv_bn_relu_pool(patches, w_folded, shift, *, out_dtype=jnp.bfloat16):
    """patches: (N, 4, Q, K) corner-major im2col rows; returns (N, Q, C)."""
    N, four, Q, K = patches.shape
    assert four == 4
    C = w_folded.shape[1]

    G = _images_per_block(N, 4 * Q)
    B = N // G
    if G > 1:  # group G images per block -> bigger MXU tiles, same semantics
        patches = patches.reshape(B, G, 4, Q, K).transpose(0, 2, 1, 3, 4)
        patches = patches.reshape(B, 4, G * Q, K)
    QG = G * Q

    patches = patches.astype(jnp.bfloat16)
    shift2 = shift.reshape(1, C).astype(jnp.float32)

    out = pl.pallas_call(
        _conv_bn_relu_pool_kernel,
        out_shape=jax.ShapeDtypeStruct((B, QG, C), out_dtype),
        grid=(B,),
        in_specs=[
            pl.BlockSpec((1, 4, QG, K), lambda b: (b, 0, 0, 0)),
            pl.BlockSpec((K, C), lambda b: (0, 0)),
            pl.BlockSpec((1, C), lambda b: (0, 0)),
        ],
        out_specs=pl.BlockSpec((1, QG, C), lambda b: (b, 0, 0)),
        compiler_params=pltpu.CompilerParams(dimension_semantics=("parallel",)),
    )(patches, w_folded, shift2)
    return out.reshape(N, Q, C)


def fc(flat, fc_w, fc_b, *, lane_pad=128):
    """flat: (N, K); fc_w: (num_classes, K); fc_b: (num_classes,) -> (N, num_classes)."""
    N, K = flat.shape
    nc = fc_w.shape[0]
    Cp = pl.cdiv(nc, lane_pad) * lane_pad                  # lane-dense output columns
    w = jnp.zeros((K, Cp), jnp.float32).at[:, :nc].set(fc_w.T).astype(jnp.bfloat16)
    b = jnp.zeros((1, Cp), jnp.float32).at[:, :nc].set(fc_b[None, :])
    x = flat.astype(jnp.bfloat16)

    out = pl.pallas_call(
        _fc_kernel,
        out_shape=jax.ShapeDtypeStruct((N, Cp), jnp.float32),
        grid=(1,),
        in_specs=[
            pl.BlockSpec((N, K), lambda i: (0, 0)),
            pl.BlockSpec((K, Cp), lambda i: (0, 0)),
            pl.BlockSpec((1, Cp), lambda i: (0, 0)),
        ],
        out_specs=pl.BlockSpec((N, Cp), lambda i: (0, 0)),
        compiler_params=pltpu.CompilerParams(dimension_semantics=("arbitrary",)),
    )(x, w, b)
    return out[:, :nc]


# ---------------------------------------------------------------------------
# Forward pass
# ---------------------------------------------------------------------------
def convnet_forward(x_nchw, p):
    x = jnp.transpose(x_nchw, (0, 2, 3, 1)).astype(jnp.float32)   # NCHW -> NHWC
    N = x.shape[0]

    # ----- layer1: Conv2d(1, 16, 5, pad=2) + BN + ReLU + MaxPool2x2 (fused) -----
    w1, sh1 = fold_conv_bn(p["conv1_w"], p["conv1_b"], p["bn1_g"], p["bn1_b"],
                           p["bn1_m"], p["bn1_v"])
    pat1 = im2col_pool_corners(x)                                 # (N, 4, 196, 25)
    y1 = conv_bn_relu_pool(pat1, w1, sh1)                         # (N, 196, 16)
    y1 = y1.reshape(N, 14, 14, 16)

    # ----- layer2: Conv2d(16, 32, 5, pad=2) + BN + ReLU + MaxPool2x2 (fused) -----
    w2, sh2 = fold_conv_bn(p["conv2_w"], p["conv2_b"], p["bn2_g"], p["bn2_b"],
                           p["bn2_m"], p["bn2_v"])
    pat2 = im2col_pool_corners(y1)                                # (N, 4, 49, 400)
    y2 = conv_bn_relu_pool(pat2, w2, sh2)                         # (N, 49, 32)

    # ----- fc: Linear(7*7*32, 10); flatten in torch (C, H, W) order -----
    flat = jnp.transpose(y2, (0, 2, 1)).reshape(N, 7 * 7 * 32)    # (N, 1568)
    return fc(flat, p["fc_w"], p["fc_b"])                         # (N, 10)


# ---------------------------------------------------------------------------
# Pure-JAX reference (for a sanity check) and params
# ---------------------------------------------------------------------------
def convnet_reference(x_nchw, p):
    x = jnp.transpose(x_nchw, (0, 2, 3, 1)).astype(jnp.float32)

    def layer(x, w, b, g, bt, m, v):
        w_hwio = jnp.transpose(w, (2, 3, 1, 0))
        y = jax.lax.conv_general_dilated(
            x, w_hwio, (1, 1), "SAME",
            dimension_numbers=("NHWC", "HWIO", "NHWC"),
            precision=jax.lax.Precision.HIGHEST) + b
        s = g / jnp.sqrt(v + 1e-5)
        y = jnp.maximum((y - m) * s + bt, 0.0)
        return jax.lax.reduce_window(y, -jnp.inf, jax.lax.max,
                                     (1, 2, 2, 1), (1, 2, 2, 1), "VALID")

    y = layer(x, p["conv1_w"], p["conv1_b"], p["bn1_g"], p["bn1_b"], p["bn1_m"], p["bn1_v"])
    y = layer(y, p["conv2_w"], p["conv2_b"], p["bn2_g"], p["bn2_b"], p["bn2_m"], p["bn2_v"])
    flat = jnp.transpose(y, (0, 3, 1, 2)).reshape(y.shape[0], -1)
    return jnp.dot(flat, p["fc_w"].T, precision=jax.lax.Precision.HIGHEST) + p["fc_b"]


def init_params(key):
    ks = jax.random.split(key, 12)
    f32 = jnp.float32
    return {
        "conv1_w": 0.1 * jax.random.normal(ks[0], (16, 1, 5, 5), f32),
        "conv1_b": 0.1 * jax.random.normal(ks[1], (16,), f32),
        "bn1_g": 1.0 + 0.1 * jax.random.normal(ks[2], (16,), f32),
        "bn1_b": 0.1 * jax.random.normal(ks[3], (16,), f32),
        "bn1_m": 0.1 * jax.random.normal(ks[4], (16,), f32),
        "bn1_v": 1.0 + 0.1 * jax.random.uniform(ks[5], (16,), f32),
        "conv2_w": 0.05 * jax.random.normal(ks[6], (32, 16, 5, 5), f32),
        "conv2_b": 0.1 * jax.random.normal(ks[7], (32,), f32),
        "bn2_g": 1.0 + 0.1 * jax.random.normal(ks[8], (32,), f32),
        "bn2_b": 0.1 * jax.random.normal(ks[9], (32,), f32),
        "bn2_m": 0.1 * jax.random.normal(ks[10], (32,), f32),
        "bn2_v": 1.0 + 0.1 * jax.random.uniform(ks[11], (32,), f32),
        "fc_w": 0.02 * jax.random.normal(ks[0], (10, 7 * 7 * 32), f32),
        "fc_b": 0.02 * jax.random.normal(ks[1], (10,), f32),
    }


if __name__ == "__main__":
    key = jax.random.PRNGKey(0)
    k_x, k_p = jax.random.split(key)
    # Input must be 28x28 (FC expects 7*7*32 features after two 2x2 pools).
    x = jax.random.normal(k_x, (2, 1, 28, 28), jnp.float32)
    params = init_params(k_p)

    logits = jax.block_until_ready(jax.jit(convnet_forward)(x, params))
    assert logits.shape == (2, 10) and logits.dtype == jnp.float32

    # Cross-check vs pure-JAX/XLA reference (bf16 MXU inputs -> loose tolerance).
    ref = jax.block_until_ready(jax.jit(convnet_reference)(x, params))
    max_err = float(jnp.max(jnp.abs(logits - ref)))
    assert jnp.allclose(logits, ref, atol=5e-2, rtol=5e-2), max_err

    print("KERNEL_OK")
</pallas_src>

<mosaic_0001>
module attributes {stable_mosaic.version = 11 : i64} {
  func.func @_conv_bn_relu_pool_kernel(%arg0: i32, %arg1: memref<1x4x196x25xbf16, #tpu.memory_space<vmem>>, %arg2: memref<25x16xbf16, #tpu.memory_space<vmem>>, %arg3: memref<1x16xf32, #tpu.memory_space<vmem>>, %arg4: memref<1x196x16xbf16, #tpu.memory_space<vmem>>) attributes {dimension_semantics = [#tpu.dimension_semantics<parallel>], iteration_bounds = array<i64: 2>, scalar_prefetch = 0 : i64, scratch_operands = 0 : i64, tpu.core_type = #tpu.core_type<tc>, window_params = [{transform_indices = @transform_0, window_bounds = array<i64: 1, 4, 196, 25>}, {pipeline_mode = #tpu.pipeline_mode<synchronous>, transform_indices = @transform_1, window_bounds = array<i64: 25, 16>}, {pipeline_mode = #tpu.pipeline_mode<synchronous>, transform_indices = @transform_2, window_bounds = array<i64: 1, 16>}, {transform_indices = @transform_3, window_bounds = array<i64: 1, 196, 16>}]} {
    %c0 = arith.constant 0 : index
    %c0_0 = arith.constant 0 : index
    %0 = vector.load %arg2[%c0, %c0_0] : memref<25x16xbf16, #tpu.memory_space<vmem>>, vector<25x16xbf16>
    %c0_1 = arith.constant 0 : index
    %c0_2 = arith.constant 0 : index
    %1 = vector.load %arg3[%c0_1, %c0_2] : memref<1x16xf32, #tpu.memory_space<vmem>>, vector<1x16xf32>
    %c0_3 = arith.constant 0 : index
    %c0_4 = arith.constant 0 : index
    %c0_5 = arith.constant 0 : index
    %c0_6 = arith.constant 0 : index
    %2 = vector.load %arg1[%c0_3, %c0_4, %c0_5, %c0_6] : memref<1x4x196x25xbf16, #tpu.memory_space<vmem>>, vector<1x1x196x25xbf16>
    %3 = vector.shape_cast %2 : vector<1x1x196x25xbf16> to vector<196x25xbf16>
    %cst = arith.constant dense<0.000000e+00> : vector<196x16xf32>
    %4 = tpu.matmul %3, %0, %cst {dimension_numbers = #tpu.dot_dimension_numbers<[1], [0], [0], [1], [0, 0, 1, 1], [], []>} : vector<196x25xbf16>, vector<25x16xbf16>, vector<196x16xf32> -> vector<196x16xf32>
    %5 = vector.broadcast %1 : vector<1x16xf32> to vector<196x16xf32>
    %6 = arith.addf %4, %5 : vector<196x16xf32>
    %cst_7 = arith.constant 0.000000e+00 : f32
    %7 = vector.broadcast %cst_7 : f32 to vector<196x16xf32>
    %8 = arith.maximumf %6, %7 : vector<196x16xf32>
    %c0_8 = arith.constant 0 : index
    %c1 = arith.constant 1 : index
    %c0_9 = arith.constant 0 : index
    %c0_10 = arith.constant 0 : index
    %9 = vector.load %arg1[%c0_8, %c1, %c0_9, %c0_10] : memref<1x4x196x25xbf16, #tpu.memory_space<vmem>>, vector<1x1x196x25xbf16>
    %10 = vector.shape_cast %9 : vector<1x1x196x25xbf16> to vector<196x25xbf16>
    %cst_11 = arith.constant dense<0.000000e+00> : vector<196x16xf32>
    %11 = tpu.matmul %10, %0, %cst_11 {dimension_numbers = #tpu.dot_dimension_numbers<[1], [0], [0], [1], [0, 0, 1, 1], [], []>} : vector<196x25xbf16>, vector<25x16xbf16>, vector<196x16xf32> -> vector<196x16xf32>
    %12 = vector.broadcast %1 : vector<1x16xf32> to vector<196x16xf32>
    %13 = arith.addf %11, %12 : vector<196x16xf32>
    %cst_12 = arith.constant 0.000000e+00 : f32
    %14 = vector.broadcast %cst_12 : f32 to vector<196x16xf32>
    %15 = arith.maximumf %13, %14 : vector<196x16xf32>
    %16 = arith.maximumf %8, %15 : vector<196x16xf32>
    %c0_13 = arith.constant 0 : index
    %c2 = arith.constant 2 : index
    %c0_14 = arith.constant 0 : index
    %c0_15 = arith.constant 0 : index
    %17 = vector.load %arg1[%c0_13, %c2, %c0_14, %c0_15] : memref<1x4x196x25xbf16, #tpu.memory_space<vmem>>, vector<1x1x196x25xbf16>
    %18 = vector.shape_cast %17 : vector<1x1x196x25xbf16> to vector<196x25xbf16>
    %cst_16 = arith.constant dense<0.000000e+00> : vector<196x16xf32>
    %19 = tpu.matmul %18, %0, %cst_16 {dimension_numbers = #tpu.dot_dimension_numbers<[1], [0], [0], [1], [0, 0, 1, 1], [], []>} : vector<196x25xbf16>, vector<25x16xbf16>, vector<196x16xf32> -> vector<196x16xf32>
    %20 = vector.broadcast %1 : vector<1x16xf32> to vector<196x16xf32>
    %21 = arith.addf %19, %20 : vector<196x16xf32>
    %cst_17 = arith.constant 0.000000e+00 : f32
    %22 = vector.broadcast %cst_17 : f32 to vector<196x16xf32>
    %23 = arith.maximumf %21, %22 : vector<196x16xf32>
    %24 = arith.maximumf %16, %23 : vector<196x16xf32>
    %c0_18 = arith.constant 0 : index
    %c3 = arith.constant 3 : index
    %c0_19 = arith.constant 0 : index
    %c0_20 = arith.constant 0 : index
    %25 = vector.load %arg1[%c0_18, %c3, %c0_19, %c0_20] : memref<1x4x196x25xbf16, #tpu.memory_space<vmem>>, vector<1x1x196x25xbf16>
    %26 = vector.shape_cast %25 : vector<1x1x196x25xbf16> to vector<196x25xbf16>
    %cst_21 = arith.constant dense<0.000000e+00> : vector<196x16xf32>
    %27 = tpu.matmul %26, %0, %cst_21 {dimension_numbers = #tpu.dot_dimension_numbers<[1], [0], [0], [1], [0, 0, 1, 1], [], []>} : vector<196x25xbf16>, vector<25x16xbf16>, vector<196x16xf32> -> vector<196x16xf32>
    %28 = vector.broadcast %1 : vector<1x16xf32> to vector<196x16xf32>
    %29 = arith.addf %27, %28 : vector<196x16xf32>
    %cst_22 = arith.constant 0.000000e+00 : f32
    %30 = vector.broadcast %cst_22 : f32 to vector<196x16xf32>
    %31 = arith.maximumf %29, %30 : vector<196x16xf32>
    %32 = arith.maximumf %24, %31 : vector<196x16xf32>
    %33 = arith.truncf %32 : vector<196x16xf32> to vector<196x16xbf16>
    %c0_23 = arith.constant 0 : index
    %c0_24 = arith.constant 0 : index
    %c0_25 = arith.constant 0 : index
    %34 = vector.load %arg4[%c0_23, %c0_24, %c0_25] : memref<1x196x16xbf16, #tpu.memory_space<vmem>>, vector<1x196x16xbf16>
    %35 = vector.shape_cast %34 : vector<1x196x16xbf16> to vector<196x16xbf16>
    %36 = vector.shape_cast %33 : vector<196x16xbf16> to vector<1x196x16xbf16>
    tpu.vector_store %arg4[%c0_23, %c0_24, %c0_25], %36 {strides = array<i32>} : memref<1x196x16xbf16, #tpu.memory_space<vmem>>, vector<1x196x16xbf16>,
    return
  }
  func.func @transform_0(%arg0: i32) -> (i32, i32, i32, i32) {
    %c0_i32 = arith.constant 0 : i32
    %c0_i32_0 = arith.constant 0 : i32
    %c0_i32_1 = arith.constant 0 : i32
    %c0_i32_2 = arith.constant 0 : i32
    return %arg0, %c0_i32, %c0_i32_0, %c0_i32_1 : i32, i32, i32, i32
  }
  func.func @transform_1(%arg0: i32) -> (i32, i32) {
    %c0_i32 = arith.constant 0 : i32
    %c0_i32_0 = arith.constant 0 : i32
    %c0_i32_1 = arith.constant 0 : i32
    return %c0_i32, %c0_i32_0 : i32, i32
  }
  func.func @transform_2(%arg0: i32) -> (i32, i32) {
    %c0_i32 = arith.constant 0 : i32
    %c0_i32_0 = arith.constant 0 : i32
    %c0_i32_1 = arith.constant 0 : i32
    return %c0_i32, %c0_i32_0 : i32, i32
  }
  func.func @transform_3(%arg0: i32) -> (i32, i32, i32) {
    %c0_i32 = arith.constant 0 : i32
    %c0_i32_0 = arith.constant 0 : i32
    %c0_i32_1 = arith.constant 0 : i32
    return %arg0, %c0_i32, %c0_i32_0 : i32, i32, i32
  }
}

module attributes {stable_mosaic.version = 11 : i64} {
  func.func @_conv_bn_relu_pool_kernel(%arg0: i32, %arg1: memref<1x4x49x400xbf16, #tpu.memory_space<vmem>>, %arg2: memref<400x32xbf16, #tpu.memory_space<vmem>>, %arg3: memref<1x32xf32, #tpu.memory_space<vmem>>, %arg4: memref<1x49x32xbf16, #tpu.memory_space<vmem>>) attributes {dimension_semantics = [#tpu.dimension_semantics<parallel>], iteration_bounds = array<i64: 2>, scalar_prefetch = 0 : i64, scratch_operands = 0 : i64, tpu.core_type = #tpu.core_type<tc>, window_params = [{transform_indices = @transform_0, window_bounds = array<i64: 1, 4, 49, 400>}, {pipeline_mode = #tpu.pipeline_mode<synchronous>, transform_indices = @transform_1, window_bounds = array<i64: 400, 32>}, {pipeline_mode = #tpu.pipeline_mode<synchronous>, transform_indices = @transform_2, window_bounds = array<i64: 1, 32>}, {transform_indices = @transform_3, window_bounds = array<i64: 1, 49, 32>}]} {
    %c0 = arith.constant 0 : index
    %c0_0 = arith.constant 0 : index
    %0 = vector.load %arg2[%c0, %c0_0] : memref<400x32xbf16, #tpu.memory_space<vmem>>, vector<400x32xbf16>
    %c0_1 = arith.constant 0 : index
    %c0_2 = arith.constant 0 : index
    %1 = vector.load %arg3[%c0_1, %c0_2] : memref<1x32xf32, #tpu.memory_space<vmem>>, vector<1x32xf32>
    %c0_3 = arith.constant 0 : index
    %c0_4 = arith.constant 0 : index
    %c0_5 = arith.constant 0 : index
    %c0_6 = arith.constant 0 : index
    %2 = vector.load %arg1[%c0_3, %c0_4, %c0_5, %c0_6] : memref<1x4x49x400xbf16, #tpu.memory_space<vmem>>, vector<1x1x49x400xbf16>
    %3 = vector.shape_cast %2 : vector<1x1x49x400xbf16> to vector<49x400xbf16>
    %cst = arith.constant dense<0.000000e+00> : vector<49x32xf32>
    %4 = tpu.matmul %3, %0, %cst {dimension_numbers = #tpu.dot_dimension_numbers<[1], [0], [0], [1], [0, 0, 1, 1], [], []>} : vector<49x400xbf16>, vector<400x32xbf16>, vector<49x32xf32> -> vector<49x32xf32>
    %5 = vector.broadcast %1 : vector<1x32xf32> to vector<49x32xf32>
    %6 = arith.addf %4, %5 : vector<49x32xf32>
    %cst_7 = arith.constant 0.000000e+00 : f32
    %7 = vector.broadcast %cst_7 : f32 to vector<49x32xf32>
    %8 = arith.maximumf %6, %7 : vector<49x32xf32>
    %c0_8 = arith.constant 0 : index
    %c1 = arith.constant 1 : index
    %c0_9 = arith.constant 0 : index
    %c0_10 = arith.constant 0 : index
    %9 = vector.load %arg1[%c0_8, %c1, %c0_9, %c0_10] : memref<1x4x49x400xbf16, #tpu.memory_space<vmem>>, vector<1x1x49x400xbf16>
    %10 = vector.shape_cast %9 : vector<1x1x49x400xbf16> to vector<49x400xbf16>
    %cst_11 = arith.constant dense<0.000000e+00> : vector<49x32xf32>
    %11 = tpu.matmul %10, %0, %cst_11 {dimension_numbers = #tpu.dot_dimension_numbers<[1], [0], [0], [1], [0, 0, 1, 1], [], []>} : vector<49x400xbf16>, vector<400x32xbf16>, vector<49x32xf32> -> vector<49x32xf32>
    %12 = vector.broadcast %1 : vector<1x32xf32> to vector<49x32xf32>
    %13 = arith.addf %11, %12 : vector<49x32xf32>
    %cst_12 = arith.constant 0.000000e+00 : f32
    %14 = vector.broadcast %cst_12 : f32 to vector<49x32xf32>
    %15 = arith.maximumf %13, %14 : vector<49x32xf32>
    %16 = arith.maximumf %8, %15 : vector<49x32xf32>
    %c0_13 = arith.constant 0 : index
    %c2 = arith.constant 2 : index
    %c0_14 = arith.constant 0 : index
    %c0_15 = arith.constant 0 : index
    %17 = vector.load %arg1[%c0_13, %c2, %c0_14, %c0_15] : memref<1x4x49x400xbf16, #tpu.memory_space<vmem>>, vector<1x1x49x400xbf16>
    %18 = vector.shape_cast %17 : vector<1x1x49x400xbf16> to vector<49x400xbf16>
    %cst_16 = arith.constant dense<0.000000e+00> : vector<49x32xf32>
    %19 = tpu.matmul %18, %0, %cst_16 {dimension_numbers = #tpu.dot_dimension_numbers<[1], [0], [0], [1], [0, 0, 1, 1], [], []>} : vector<49x400xbf16>, vector<400x32xbf16>, vector<49x32xf32> -> vector<49x32xf32>
    %20 = vector.broadcast %1 : vector<1x32xf32> to vector<49x32xf32>
    %21 = arith.addf %19, %20 : vector<49x32xf32>
    %cst_17 = arith.constant 0.000000e+00 : f32
    %22 = vector.broadcast %cst_17 : f32 to vector<49x32xf32>
    %23 = arith.maximumf %21, %22 : vector<49x32xf32>
    %24 = arith.maximumf %16, %23 : vector<49x32xf32>
    %c0_18 = arith.constant 0 : index
    %c3 = arith.constant 3 : index
    %c0_19 = arith.constant 0 : index
    %c0_20 = arith.constant 0 : index
    %25 = vector.load %arg1[%c0_18, %c3, %c0_19, %c0_20] : memref<1x4x49x400xbf16, #tpu.memory_space<vmem>>, vector<1x1x49x400xbf16>
    %26 = vector.shape_cast %25 : vector<1x1x49x400xbf16> to vector<49x400xbf16>
    %cst_21 = arith.constant dense<0.000000e+00> : vector<49x32xf32>
    %27 = tpu.matmul %26, %0, %cst_21 {dimension_numbers = #tpu.dot_dimension_numbers<[1], [0], [0], [1], [0, 0, 1, 1], [], []>} : vector<49x400xbf16>, vector<400x32xbf16>, vector<49x32xf32> -> vector<49x32xf32>
    %28 = vector.broadcast %1 : vector<1x32xf32> to vector<49x32xf32>
    %29 = arith.addf %27, %28 : vector<49x32xf32>
    %cst_22 = arith.constant 0.000000e+00 : f32
    %30 = vector.broadcast %cst_22 : f32 to vector<49x32xf32>
    %31 = arith.maximumf %29, %30 : vector<49x32xf32>
    %32 = arith.maximumf %24, %31 : vector<49x32xf32>
    %33 = arith.truncf %32 : vector<49x32xf32> to vector<49x32xbf16>
    %c0_23 = arith.constant 0 : index
    %c0_24 = arith.constant 0 : index
    %c0_25 = arith.constant 0 : index
    %34 = vector.load %arg4[%c0_23, %c0_24, %c0_25] : memref<1x49x32xbf16, #tpu.memory_space<vmem>>, vector<1x49x32xbf16>
    %35 = vector.shape_cast %34 : vector<1x49x32xbf16> to vector<49x32xbf16>
    %36 = vector.shape_cast %33 : vector<49x32xbf16> to vector<1x49x32xbf16>
    tpu.vector_store %arg4[%c0_23, %c0_24, %c0_25], %36 {strides = array<i32>} : memref<1x49x32xbf16, #tpu.memory_space<vmem>>, vector<1x49x32xbf16>,
    return
  }
  func.func @transform_0(%arg0: i32) -> (i32, i32, i32, i32) {
    %c0_i32 = arith.constant 0 : i32
    %c0_i32_0 = arith.constant 0 : i32
    %c0_i32_1 = arith.constant 0 : i32
    %c0_i32_2 = arith.constant 0 : i32
    return %arg0, %c0_i32, %c0_i32_0, %c0_i32_1 : i32, i32, i32, i32
  }
  func.func @transform_1(%arg0: i32) -> (i32, i32) {
    %c0_i32 = arith.constant 0 : i32
    %c0_i32_0 = arith.constant 0 : i32
    %c0_i32_1 = arith.constant 0 : i32
    return %c0_i32, %c0_i32_0 : i32, i32
  }
  func.func @transform_2(%arg0: i32) -> (i32, i32) {
    %c0_i32 = arith.constant 0 : i32
    %c0_i32_0 = arith.constant 0 : i32
    %c0_i32_1 = arith.constant 0 : i32
    return %c0_i32, %c0_i32_0 : i32, i32
  }
  func.func @transform_3(%arg0: i32) -> (i32, i32, i32) {
    %c0_i32 = arith.constant 0 : i32
    %c0_i32_0 = arith.constant 0 : i32
    %c0_i32_1 = arith.constant 0 : i32
    return %arg0, %c0_i32, %c0_i32_0 : i32, i32, i32
  }
}

module attributes {stable_mosaic.version = 11 : i64} {
  func.func @_fc_kernel(%arg0: i32, %arg1: memref<2x1568xbf16, #tpu.memory_space<vmem>>, %arg2: memref<1568x128xbf16, #tpu.memory_space<vmem>>, %arg3: memref<1x128xf32, #tpu.memory_space<vmem>>, %arg4: memref<2x128xf32, #tpu.memory_space<vmem>>) attributes {dimension_semantics = [#tpu.dimension_semantics<arbitrary>], iteration_bounds = array<i64: 1>, scalar_prefetch = 0 : i64, scratch_operands = 0 : i64, tpu.core_type = #tpu.core_type<tc>, window_params = [{pipeline_mode = #tpu.pipeline_mode<synchronous>, transform_indices = @transform_0, window_bounds = array<i64: 2, 1568>}, {pipeline_mode = #tpu.pipeline_mode<synchronous>, transform_indices = @transform_1, window_bounds = array<i64: 1568, 128>}, {pipeline_mode = #tpu.pipeline_mode<synchronous>, transform_indices = @transform_2, window_bounds = array<i64: 1, 128>}, {pipeline_mode = #tpu.pipeline_mode<synchronous>, transform_indices = @transform_3, window_bounds = array<i64: 2, 128>}]} {
    %c0 = arith.constant 0 : index
    %c0_0 = arith.constant 0 : index
    %0 = vector.load %arg1[%c0, %c0_0] : memref<2x1568xbf16, #tpu.memory_space<vmem>>, vector<2x1568xbf16>
    %c0_1 = arith.constant 0 : index
    %c0_2 = arith.constant 0 : index
    %1 = vector.load %arg2[%c0_1, %c0_2] : memref<1568x128xbf16, #tpu.memory_space<vmem>>, vector<1568x128xbf16>
    %cst = arith.constant dense<0.000000e+00> : vector<2x128xf32>
    %2 = tpu.matmul %0, %1, %cst {dimension_numbers = #tpu.dot_dimension_numbers<[1], [0], [0], [1], [0, 0, 1, 1], [], []>} : vector<2x1568xbf16>, vector<1568x128xbf16>, vector<2x128xf32> -> vector<2x128xf32>
    %c0_3 = arith.constant 0 : index
    %c0_4 = arith.constant 0 : index
    %3 = vector.load %arg3[%c0_3, %c0_4] : memref<1x128xf32, #tpu.memory_space<vmem>>, vector<1x128xf32>
    %4 = vector.broadcast %3 : vector<1x128xf32> to vector<2x128xf32>
    %5 = arith.addf %2, %4 : vector<2x128xf32>
    %c0_5 = arith.constant 0 : index
    %c0_6 = arith.constant 0 : index
    %6 = vector.load %arg4[%c0_5, %c0_6] : memref<2x128xf32, #tpu.memory_space<vmem>>, vector<2x128xf32>
    tpu.vector_store %arg4[%c0_5, %c0_6], %5 {strides = array<i32>} : memref<2x128xf32, #tpu.memory_space<vmem>>, vector<2x128xf32>,
    return
  }
  func.func @transform_0(%arg0: i32) -> (i32, i32) {
    %c0_i32 = arith.constant 0 : i32
    %c0_i32_0 = arith.constant 0 : i32
    %c0_i32_1 = arith.constant 0 : i32
    return %c0_i32, %c0_i32_0 : i32, i32
  }
  func.func @transform_1(%arg0: i32) -> (i32, i32) {
    %c0_i32 = arith.constant 0 : i32
    %c0_i32_0 = arith.constant 0 : i32
    %c0_i32_1 = arith.constant 0 : i32
    return %c0_i32, %c0_i32_0 : i32, i32
  }
  func.func @transform_2(%arg0: i32) -> (i32, i32) {
    %c0_i32 = arith.constant 0 : i32
    %c0_i32_0 = arith.constant 0 : i32
    %c0_i32_1 = arith.constant 0 : i32
    return %c0_i32, %c0_i32_0 : i32, i32
  }
  func.func @transform_3(%arg0: i32) -> (i32, i32) {
    %c0_i32 = arith.constant 0 : i32
    %c0_i32_0 = arith.constant 0 : i32
    %c0_i32_1 = arith.constant 0 : i32
    return %c0_i32, %c0_i32_0 : i32, i32
  }
}

</mosaic_0001>

<llo_original>
// kernel: convnet_forward.3
$region0: #{convnet_forward.3}
  #allocation0 [shape = 'u32[]', space=smem, size = 0x4, offset = 0x4, fixed_abs, tag = 'smem constant byte address 0x4 - core index']
  #allocation1 [shape = 'u32[72,128]{1,0:T(1,128)}', space=vmem, size = 0x9000, scoped, tag = 'internal scratch']
  %s0 = inlined_call_operand.vmem [shape: bf16[2,4,196,25], index: 0, kind: input, shape index: {}]
  %s1 = inlined_call_operand.vmem [shape: bf16[25,16], index: 1, kind: input, shape index: {}]
  %s2 = inlined_call_operand.vmem [shape: f32[1,16], index: 2, kind: input, shape index: {}]
  %s3 = inlined_call_operand.vmem [shape: bf16[2,196,16], index: 3, kind: output, shape index: {}]
  %s4 = sld [smem:[#allocation0]]
  $region45: #{convnet_forward.3} parent=0
    _
  %s6 = ssub.s32 1, %s4
  %s7 = scalar_select 0, %s6, %s4
  loop: start=0, step=1, limit=4
  $region2: #{convnet_forward.3} parent=0 // loop_pre_header
    _
  $region3: #{convnet_forward.3} parent=0 // loop_header
    %s9 = sphi 0, %s13
    %p10 = scmp.ge.s32.totalorder %s9, 4
    %s19 = sphi 0, %s21
    %s22 = sphi 0, %s19
    %s23 = sphi 0, %s22
    %s39 = sphi 0, %s23
    %s43 = sphi 0, %s43
    %s45 = sphi 0, %s43
    %s46 = sphi 0, %s45
    %s60 = sphi 0, %s46
    %s64 = sphi 0, %s64
    %s66 = sphi 0, %s64
    %s67 = sphi 0, %s66
    %s81 = sphi 0, %s67
    %s87 = sphi 0, %s89
    %s90 = sphi 0, %s87
    %s91 = sphi 0, %s90
    %s107 = sphi 0, %s91
  $region4: #{convnet_forward.3} parent=0 // loop_header_branch
    %12 = sbr.rel (%p10) target = $region8
  $region5: #{convnet_forward.3} parent=0 // loop_body
    %s14 = ssub.s32 %s9, 1
    %s15 = ssub.s32 %s9, 2
    %s16 = sadd.s32 %s9, 1
    %s17 = ssub.s32 %s9, %s16
    %p18 = scmp.eq.s32.totalorder %s17, 0
    %s20 = sadd.s32 %s19, 1
    %s21 = scalar_select %p18, %s19, %s20
    %p24 = pneg %p18
    %p25 = scmp.eq.s32.totalorder %s9, 1
    %p26 = por %p24, %p25
    %p27 = scmp.ne.s32.totalorder %s19, %s22
    %p28 = scmp.eq.s32.totalorder %s9, 0
    %p29 = por %p27, %p28
    %p30 = scmp.ne.s32.totalorder %s19, %s22
    %p31 = scmp.eq.s32.totalorder %s14, 1
    %p32 = por %p30, %p31
    %p33 = scmp.ne.s32.totalorder %s22, %s23
    %p34 = scmp.eq.s32.totalorder %s14, 0
    %p35 = por %p33, %p34
    %p36 = scmp.ne.s32.totalorder %s22, %s23
    %p37 = scmp.eq.s32.totalorder %s15, 1
    %p38 = por %p36, %p37
    %p40 = scmp.ne.s32.totalorder %s23, %s39
    %p41 = scmp.eq.s32.totalorder %s15, 0
    %p42 = por %p40, %p41
    %s44 = sadd.s32 %s43, 1
    %p47 = scmp.eq.s32.totalorder %s9, 1
    %p48 = scmp.ne.s32.totalorder %s43, %s45
    %p49 = scmp.eq.s32.totalorder %s9, 0
    %p50 = por %p48, %p49
    %p51 = scmp.ne.s32.totalorder %s43, %s45
    %p52 = scmp.eq.s32.totalorder %s14, 1
    %p53 = por %p51, %p52
    %p54 = scmp.ne.s32.totalorder %s45, %s46
    %p55 = scmp.eq.s32.totalorder %s14, 0
    %p56 = por %p54, %p55
    %p57 = scmp.ne.s32.totalorder %s45, %s46
    %p58 = scmp.eq.s32.totalorder %s15, 1
    %p59 = por %p57, %p58
    %p61 = scmp.ne.s32.totalorder %s46, %s60
    %p62 = scmp.eq.s32.totalorder %s15, 0
    %p63 = por %p61, %p62
    %s65 = sadd.s32 %s64, 1
    %p68 = scmp.eq.s32.totalorder %s9, 1
    %p69 = scmp.ne.s32.totalorder %s64, %s66
    %p70 = scmp.eq.s32.totalorder %s9, 0
    %p71 = por %p69, %p70
    %p72 = scmp.ne.s32.totalorder %s64, %s66
    %p73 = scmp.eq.s32.totalorder %s14, 1
    %p74 = por %p72, %p73
    %p75 = scmp.ne.s32.totalorder %s66, %s67
    %p76 = scmp.eq.s32.totalorder %s14, 0
    %p77 = por %p75, %p76
    %p78 = scmp.ne.s32.totalorder %s66, %s67
    %p79 = scmp.eq.s32.totalorder %s15, 1
    %p80 = por %p78, %p79
    %p82 = scmp.ne.s32.totalorder %s67, %s81
    %p83 = scmp.eq.s32.totalorder %s15, 0
    %p84 = por %p82, %p83
    %s85 = ssub.s32 %s9, %s16
    %p86 = scmp.eq.s32.totalorder %s85, 0
    %s88 = sadd.s32 %s87, 1
    %s89 = scalar_select %p86, %s87, %s88
    %p92 = pneg %p86
    %p93 = scmp.eq.s32.totalorder %s9, 1
    %p94 = por %p92, %p93
    %p95 = scmp.ne.s32.totalorder %s87, %s90
    %p96 = scmp.eq.s32.totalorder %s9, 0
    %p97 = por %p95, %p96
    %p98 = scmp.ne.s32.totalorder %s87, %s90
    %p99 = scmp.eq.s32.totalorder %s14, 1
    %p100 = por %p98, %p99
    %p101 = scmp.ne.s32.totalorder %s90, %s91
    %p102 = scmp.eq.s32.totalorder %s14, 0
    %p103 = por %p101, %p102
    %p104 = scmp.ne.s32.totalorder %s90, %s91
    %p105 = scmp.eq.s32.totalorder %s15, 1
    %p106 = por %p104, %p105
    %p108 = scmp.ne.s32.totalorder %s91, %s107
    %p109 = scmp.eq.s32.totalorder %s15, 0
    %p110 = por %p108, %p109
    %p111 = scmp.le.s32.totalorder 1, %s9
    %p112 = scmp.lt.s32.totalorder %s9, 3
    %p113 = pnand %p111, %p112
    %p114 = pneg %p113
    // Predicated region
    $region9: #{convnet_forward.3} parent=5 // pred_check
      _
    $region10: #{convnet_forward.3} parent=5 // pred_check_branch
      %116 = sbr.rel (%p113) target = $region12
    $region11: #{convnet_forward.3} parent=5 // pred_region
      %s117 = ssub.s32 %s9, 1
      // Predicated region
      $region13: #{convnet_forward.3} parent=11 // pred_check
        %p118 = pneg %p56
      $region14: #{convnet_forward.3} parent=11 // pred_check_branch
        %120 = sbr.rel (%p118) target = $region16
      $region15: #{convnet_forward.3} parent=11 // pred_region
        _
      $region16: #{convnet_forward.3} parent=11 // pred_fallthru
        _
      // Predicated region
      $region17: #{convnet_forward.3} parent=11 // pred_check
        %p121 = pneg %p77
      $region18: #{convnet_forward.3} parent=11 // pred_check_branch
        %123 = sbr.rel (%p121) target = $region20
      $region19: #{convnet_forward.3} parent=11 // pred_region
        _
      $region20: #{convnet_forward.3} parent=11 // pred_fallthru
        _
    $region12: #{convnet_forward.3} parent=5 // pred_fallthru
      _
    %p124 = scmp.lt.s32.totalorder %s9, 2
    // Predicated region
    $region21: #{convnet_forward.3} parent=5 // pred_check
      %p125 = pneg %p124
    $region22: #{convnet_forward.3} parent=5 // pred_check_branch
      %127 = sbr.rel (%p125) target = $region24
    $region23: #{convnet_forward.3} parent=5 // pred_region
      // Predicated region
      $region25: #{convnet_forward.3} parent=23 // pred_check
        %p128 = pneg %p29
      $region26: #{convnet_forward.3} parent=23 // pred_check_branch
        %130 = sbr.rel (%p128) target = $region28
      $region27: #{convnet_forward.3} parent=23 // pred_region
        %p131 = scmp.lt.s32.totalorder %s9, 1
        %s132 = scalar_select %p131, %s9, 1
        %s133 = smul.addr %s132, 100
        %s134 = smul.addr %s133, 4
        %s135 = scalar_lea.vmem %s0, %s134
      $region28: #{convnet_forward.3} parent=23 // pred_fallthru
        _
    $region24: #{convnet_forward.3} parent=5 // pred_fallthru
      _
    %p136 = scmp.le.s32.totalorder 1, %s9
    %p137 = scmp.lt.s32.totalorder %s9, 3
    %p138 = pnand %p136, %p137
    %p139 = pneg %p138
    // Predicated region
    $region29: #{convnet_forward.3} parent=5 // pred_check
      _
    $region30: #{convnet_forward.3} parent=5 // pred_check_branch
      %141 = sbr.rel (%p138) target = $region32
    $region31: #{convnet_forward.3} parent=5 // pred_region
      %s142 = ssub.s32 %s9, 1
      %p143 = scmp.lt.s32.totalorder %s14, 1
      %s144 = scalar_select %p143, %s14, 1
      %s145 = smul.addr %s144, 100
      %s146 = smul.addr %s145, 4
      %s147 = scalar_lea.vmem %s0, %s146
      %p148 = pneg %p35
      %p149 = pneg %p32
      %p150 = pneg %p56
      %p151 = pneg %p53
      %p152 = pneg %p77
      %p153 = pneg %p74
      %p154 = pneg %p103
      %p155 = pneg %p100
      %p156 = scmp.lt.s32.totalorder %s14, 1
      %s157 = scalar_select %p156, %s14, 1
      %s158 = smul.addr %s157, 25
      %s159 = smul.addr %s158, 4
      %s160 = scalar_lea.vmem %s3, %s159
      %p161 = scmp.lt.s32.totalorder %s14, 1
      %s162 = scalar_select %p161, %s14, 1
      %s163 = smul.addr %s162, 100
      %s164 = smul.addr %s163, 4
      %s165 = scalar_lea.vmem %s0, %s164
      %p166 = scmp.lt.s32.totalorder %s14, 1
      %s167 = scalar_select %p166, %s14, 1
      %s168 = smul.addr %s167, 25
      %s169 = smul.addr %s168, 4
      %s170 = scalar_lea.vmem %s3, %s169
      %v172 = vld [vmem:[%s1] sm:$0xf]
      %v173 = vld [vmem:[%s1 + $0x4] sm:$0xf]
      %v174 = vld [vmem:[%s1 + $0x8] sm:$0xf]
      %v175 = vld [vmem:[%s1 + $0xc] sm:$0x1]
      %v176 = vld [vmem:[%s2] sm:$0x1]
      %v177 = vld [vmem:[%s165] sm:$0xf]
      %v178 = vld [vmem:[%s165 + $0x4] sm:$0xf]
      %v179 = vld [vmem:[%s165 + $0x8] sm:$0xf]
      %v180 = vld [vmem:[%s165 + $0xc] sm:$0xf]
      %v181 = vld [vmem:[%s165 + $0x10] sm:$0xf]
      %v182 = vld [vmem:[%s165 + $0x14] sm:$0xf]
      %v183 = vld [vmem:[%s165 + $0x18] sm:$0xf]
      %v184 = vld [vmem:[%s165 + $0x1c] sm:$0xf]
      %v185 = vld [vmem:[%s165 + $0x20] sm:$0xf]
      %v186 = vld [vmem:[%s165 + $0x24] sm:$0xf]
      %v187 = vld [vmem:[%s165 + $0x28] sm:$0xf]
      %v188 = vld [vmem:[%s165 + $0x2c] sm:$0xf]
      %v189 = vld [vmem:[%s165 + $0x30] sm:$0xf]
      %v190 = vld [vmem:[%s165 + $0x34] sm:$0xf]
      %v191 = vld [vmem:[%s165 + $0x38] sm:$0xf]
      %v192 = vld [vmem:[%s165 + $0x3c] sm:$0xf]
      %v193 = vld [vmem:[%s165 + $0x40] sm:$0xf]
      %v194 = vld [vmem:[%s165 + $0x44] sm:$0xf]
      %v195 = vld [vmem:[%s165 + $0x48] sm:$0xf]
      %v196 = vld [vmem:[%s165 + $0x4c] sm:$0xf]
      %v197 = vld [vmem:[%s165 + $0x50] sm:$0xf]
      %v198 = vld [vmem:[%s165 + $0x54] sm:$0xf]
      %v199 = vld [vmem:[%s165 + $0x58] sm:$0xf]
      %v200 = vld [vmem:[%s165 + $0x5c] sm:$0xf]
      %v201 = vld [vmem:[%s165 + $0x60] sm:$0x3]
      %v203 = vperm.slane %v176, 0
      %v230 = vunpack.c.l.b16 %v177
      %v231 = vunpack.c.l.b16 %v178
      %v232 = vunpack.c.l.b16 %v179
      %v233 = vunpack.c.l.b16 %v180
      %v234 = vunpack.c.l.b16 %v181
      %v235 = vunpack.c.l.b16 %v182
      %v236 = vunpack.c.l.b16 %v183
      %v237 = vunpack.c.l.b16 %v184
      %v238 = vunpack.c.l.b16 %v185
      %v239 = vunpack.c.l.b16 %v186
      %v240 = vunpack.c.l.b16 %v187
      %v241 = vunpack.c.l.b16 %v188
      %v242 = vunpack.c.l.b16 %v189
      %v243 = vunpack.c.l.b16 %v190
      %v244 = vunpack.c.l.b16 %v191
      %v245 = vunpack.c.l.b16 %v192
      %v246 = vunpack.c.l.b16 %v193
      %v247 = vunpack.c.l.b16 %v194
      %v248 = vunpack.c.l.b16 %v195
      %v249 = vunpack.c.l.b16 %v196
      %v250 = vunpack.c.l.b16 %v197
      %v251 = vunpack.c.l.b16 %v198
      %v252 = vunpack.c.l.b16 %v199
      %v253 = vunpack.c.l.b16 %v200
      %v254 = vunpack.c.l.b16 %v201
      %v255 = vpack.c.b16 %v231, %v230
      %v256 = vpack.c.b16 %v233, %v232
      %v257 = vpack.c.b16 %v235, %v234
      %v258 = vpack.c.b16 %v237, %v236
      %v259 = vpack.c.b16 %v239, %v238
      %v260 = vpack.c.b16 %v241, %v240
      %v261 = vpack.c.b16 %v243, %v242
      %v262 = vpack.c.b16 %v245, %v244
      %v263 = vpack.c.b16 %v247, %v246
      %v264 = vpack.c.b16 %v249, %v248
      %v265 = vpack.c.b16 %v251, %v250
      %v266 = vpack.c.b16 %v253, %v252
      %v267 = vpack.c.b16 %v254, %v254
      %v272 = vunpack.c.l.b16 %v172
      %v273 = vunpack.c.l.b16 %v173
      %v274 = vunpack.c.l.b16 %v174
      %v275 = vunpack.c.l.b16 %v175
      %v276 = vpack.c.b16 %v273, %v272
      %v277 = vpack.c.b16 %v275, %v274
      %vm279 = vcmask 203776
      %v281 = vsel %vm279, %v255, 0
      %v284 = vsel %vm279, %v256, 0
      %v287 = vsel %vm279, %v257, 0
      %v290 = vsel %vm279, %v258, 0
      %v293 = vsel %vm279, %v259, 0
      %v296 = vsel %vm279, %v260, 0
      %v299 = vsel %vm279, %v261, 0
      %v302 = vsel %vm279, %v262, 0
      %v305 = vsel %vm279, %v263, 0
      %v308 = vsel %vm279, %v264, 0
      %v311 = vsel %vm279, %v265, 0
      %v314 = vsel %vm279, %v266, 0
      %v317 = vsel %vm279, %v267, 0
      %vm319 = vcmask 1043456
      %vm320 = vcmask 1044480
      %v321 = vsel %vm319, 4294967295, 65535
      %v322 = vsel %vm320, %v321, 0
      %v324 = vand.u32 %v277, %v322
      %326 = vmatpush.bf16.msra.mxu0 0
      %327 = vmatpush.bf16.msra.mxu0 0
      %328 = vmatpush.bf16.msra.mxu0 0
      %329 = vmatpush.bf16.msra.mxu0 0
      %330 = vmatpush.bf16.msra.mxu0 0
      %331 = vmatpush.bf16.msra.mxu0 0
      %332 = vmatpush.bf16.msra.mxu0 %v324
      %333 = vmatpush.bf16.msra.mxu0 %v276
      %334 = vmatmul.bf16.gmra.mxu0 %v281
      %v335 = vpop.f32.mrf.mxu0
      %v336 = vadd.f32 %v203, %v335
      %v337 = vpop.f32.mrf.mxu0
      %v338 = vadd.f32 %v203, %v337
      %339 = vmatmul.bf16.gmra.mxu0 %v284
      %v340 = vpop.f32.mrf.mxu0
      %v341 = vadd.f32 %v203, %v340
      %v342 = vpop.f32.mrf.mxu0
      %v343 = vadd.f32 %v203, %v342
      %344 = vmatmul.bf16.gmra.mxu0 %v287
      %v345 = vpop.f32.mrf.mxu0
      %v346 = vadd.f32 %v203, %v345
      %v347 = vpop.f32.mrf.mxu0
      %v348 = vadd.f32 %v203, %v347
      %349 = vmatmul.bf16.gmra.mxu0 %v290
      %v350 = vpop.f32.mrf.mxu0
      %v351 = vadd.f32 %v203, %v350
      %v352 = vpop.f32.mrf.mxu0
      %v353 = vadd.f32 %v203, %v352
      %354 = vmatmul.bf16.gmra.mxu0 %v293
      %v355 = vpop.f32.mrf.mxu0
      %v356 = vadd.f32 %v203, %v355
      %v357 = vpop.f32.mrf.mxu0
      %v358 = vadd.f32 %v203, %v357
      %359 = vmatmul.bf16.gmra.mxu0 %v296
      %v360 = vpop.f32.mrf.mxu0
      %v361 = vadd.f32 %v203, %v360
      %v362 = vpop.f32.mrf.mxu0
      %v363 = vadd.f32 %v203, %v362
      %364 = vmatmul.bf16.gmra.mxu0 %v299
      %v365 = vpop.f32.mrf.mxu0
      %v366 = vadd.f32 %v203, %v365
      %v367 = vpop.f32.mrf.mxu0
      %v368 = vadd.f32 %v203, %v367
      %369 = vmatmul.bf16.gmra.mxu0 %v302
      %v370 = vpop.f32.mrf.mxu0
      %v371 = vadd.f32 %v203, %v370
      %v372 = vpop.f32.mrf.mxu0
      %v373 = vadd.f32 %v203, %v372
      %374 = vmatmul.bf16.gmra.mxu0 %v305
      %v375 = vpop.f32.mrf.mxu0
      %v376 = vadd.f32 %v203, %v375
      %v377 = vpop.f32.mrf.mxu0
      %v378 = vadd.f32 %v203, %v377
      %379 = vmatmul.bf16.gmra.mxu0 %v308
      %v380 = vpop.f32.mrf.mxu0
      %v381 = vadd.f32 %v203, %v380
      %v382 = vpop.f32.mrf.mxu0
      %v383 = vadd.f32 %v203, %v382
      %384 = vmatmul.bf16.gmra.mxu0 %v311
      %v385 = vpop.f32.mrf.mxu0
      %v386 = vadd.f32 %v203, %v385
      %v387 = vpop.f32.mrf.mxu0
      %v388 = vadd.f32 %v203, %v387
      %389 = vmatmul.bf16.gmra.mxu0 %v314
      %v390 = vpop.f32.mrf.mxu0
      %v391 = vadd.f32 %v203, %v390
      %v392 = vpop.f32.mrf.mxu0
      %v393 = vadd.f32 %v203, %v392
      %394 = vmatmul.bf16.gmra.mxu0 %v317
      %v395 = vpop.f32.mrf.mxu0
      %v396 = vadd.f32 %v203, %v395
      %v397 = vpop.f32.mrf.mxu0
      %398 = vdwg.mxu0
      %v399 = vmax.f32 %v336, 0.0
      %v400 = vmax.f32 %v338, 0.0
      %v401 = vmax.f32 %v341, 0.0
      %v402 = vmax.f32 %v343, 0.0
      %v403 = vmax.f32 %v346, 0.0
      %v404 = vmax.f32 %v348, 0.0
      %v405 = vmax.f32 %v351, 0.0
      %v406 = vmax.f32 %v353, 0.0
      %v407 = vmax.f32 %v356, 0.0
      %v408 = vmax.f32 %v358, 0.0
      %v409 = vmax.f32 %v361, 0.0
      %v410 = vmax.f32 %v363, 0.0
      %v411 = vmax.f32 %v366, 0.0
      %v412 = vmax.f32 %v368, 0.0
      %v413 = vmax.f32 %v371, 0.0
      %v414 = vmax.f32 %v373, 0.0
      %v415 = vmax.f32 %v376, 0.0
      %v416 = vmax.f32 %v378, 0.0
      %v417 = vmax.f32 %v381, 0.0
      %v418 = vmax.f32 %v383, 0.0
      %v419 = vmax.f32 %v386, 0.0
      %v420 = vmax.f32 %v388, 0.0
      %v421 = vmax.f32 %v391, 0.0
      %v422 = vmax.f32 %v393, 0.0
      %v423 = vmax.f32 %v396, 0.0
      %s424 = scalar_lea.vmem %s165, 100
      %v425 = vld [vmem:[%s424] sm:$0xf]
      %v426 = vld [vmem:[%s424 + $0x4] sm:$0xf]
      %v427 = vld [vmem:[%s424 + $0x8] sm:$0xf]
      %v428 = vld [vmem:[%s424 + $0xc] sm:$0xf]
      %v429 = vld [vmem:[%s424 + $0x10] sm:$0xf]
      %v430 = vld [vmem:[%s424 + $0x14] sm:$0xf]
      %v431 = vld [vmem:[%s424 + $0x18] sm:$0xf]
      %v432 = vld [vmem:[%s424 + $0x1c] sm:$0xf]
      %v433 = vld [vmem:[%s424 + $0x20] sm:$0xf]
      %v434 = vld [vmem:[%s424 + $0x24] sm:$0xf]
      %v435 = vld [vmem:[%s424 + $0x28] sm:$0xf]
      %v436 = vld [vmem:[%s424 + $0x2c] sm:$0xf]
      %v437 = vld [vmem:[%s424 + $0x30] sm:$0xf]
      %v438 = vld [vmem:[%s424 + $0x34] sm:$0xf]
      %v439 = vld [vmem:[%s424 + $0x38] sm:$0xf]
      %v440 = vld [vmem:[%s424 + $0x3c] sm:$0xf]
      %v441 = vld [vmem:[%s424 + $0x40] sm:$0xf]
      %v442 = vld [vmem:[%s424 + $0x44] sm:$0xf]
      %v443 = vld [vmem:[%s424 + $0x48] sm:$0xf]
      %v444 = vld [vmem:[%s424 + $0x4c] sm:$0xf]
      %v445 = vld [vmem:[%s424 + $0x50] sm:$0xf]
      %v446 = vld [vmem:[%s424 + $0x54] sm:$0xf]
      %v447 = vld [vmem:[%s424 + $0x58] sm:$0xf]
      %v448 = vld [vmem:[%s424 + $0x5c] sm:$0xf]
      %v449 = vld [vmem:[%s424 + $0x60] sm:$0x3]
      %v475 = vunpack.c.l.b16 %v425
      %v476 = vunpack.c.l.b16 %v426
      %v477 = vunpack.c.l.b16 %v427
      %v478 = vunpack.c.l.b16 %v428
      %v479 = vunpack.c.l.b16 %v429
      %v480 = vunpack.c.l.b16 %v430
      %v481 = vunpack.c.l.b16 %v431
      %v482 = vunpack.c.l.b16 %v432
      %v483 = vunpack.c.l.b16 %v433
      %v484 = vunpack.c.l.b16 %v434
      %v485 = vunpack.c.l.b16 %v435
      %v486 = vunpack.c.l.b16 %v436
      %v487 = vunpack.c.l.b16 %v437
      %v488 = vunpack.c.l.b16 %v438
      %v489 = vunpack.c.l.b16 %v439
      %v490 = vunpack.c.l.b16 %v440
      %v491 = vunpack.c.l.b16 %v441
      %v492 = vunpack.c.l.b16 %v442
      %v493 = vunpack.c.l.b16 %v443
      %v494 = vunpack.c.l.b16 %v444
      %v495 = vunpack.c.l.b16 %v445
      %v496 = vunpack.c.l.b16 %v446
      %v497 = vunpack.c.l.b16 %v447
      %v498 = vunpack.c.l.b16 %v448
      %v499 = vunpack.c.l.b16 %v449
      %v500 = vpack.c.b16 %v476, %v475
      %v501 = vpack.c.b16 %v478, %v477
      %v502 = vpack.c.b16 %v480, %v479
      %v503 = vpack.c.b16 %v482, %v481
      %v504 = vpack.c.b16 %v484, %v483
      %v505 = vpack.c.b16 %v486, %v485
      %v506 = vpack.c.b16 %v488, %v487
      %v507 = vpack.c.b16 %v490, %v489
      %v508 = vpack.c.b16 %v492, %v491
      %v509 = vpack.c.b16 %v494, %v493
      %v510 = vpack.c.b16 %v496, %v495
      %v511 = vpack.c.b16 %v498, %v497
      %v512 = vpack.c.b16 %v499, %v499
      %v514 = vsel %vm279, %v500, 0
      %v517 = vsel %vm279, %v501, 0
      %v520 = vsel %vm279, %v502, 0
      %v523 = vsel %vm279, %v503, 0
      %v526 = vsel %vm279, %v504, 0
      %v529 = vsel %vm279, %v505, 0
      %v532 = vsel %vm279, %v506, 0
      %v535 = vsel %vm279, %v507, 0
      %v538 = vsel %vm279, %v508, 0
      %v541 = vsel %vm279, %v509, 0
      %v544 = vsel %vm279, %v510, 0
      %v547 = vsel %vm279, %v511, 0
      %v550 = vsel %vm279, %v512, 0
      %552 = vmatpush.bf16.msra.mxu0 0
      %553 = vmatpush.bf16.msra.mxu0 0
      %554 = vmatpush.bf16.msra.mxu0 0
      %555 = vmatpush.bf16.msra.mxu0 0
      %556 = vmatpush.bf16.msra.mxu0 0
      %557 = vmatpush.bf16.msra.mxu0 0
      %558 = vmatpush.bf16.msra.mxu0 %v324
      %559 = vmatpush.bf16.msra.mxu0 %v276
      %560 = vmatmul.bf16.gmra.mxu0 %v514
      %v561 = vpop.f32.mrf.mxu0
      %v562 = vadd.f32 %v203, %v561
      %v563 = vpop.f32.mrf.mxu0
      %v564 = vadd.f32 %v203, %v563
      %565 = vmatmul.bf16.gmra.mxu0 %v517
      %v566 = vpop.f32.mrf.mxu0
      %v567 = vadd.f32 %v203, %v566
      %v568 = vpop.f32.mrf.mxu0
      %v569 = vadd.f32 %v203, %v568
      %570 = vmatmul.bf16.gmra.mxu0 %v520
      %v571 = vpop.f32.mrf.mxu0
      %v572 = vadd.f32 %v203, %v571
      %v573 = vpop.f32.mrf.mxu0
      %v574 = vadd.f32 %v203, %v573
      %575 = vmatmul.bf16.gmra.mxu0 %v523
      %v576 = vpop.f32.mrf.mxu0
      %v577 = vadd.f32 %v203, %v576
      %v578 = vpop.f32.mrf.mxu0
      %v579 = vadd.f32 %v203, %v578
      %580 = vmatmul.bf16.gmra.mxu0 %v526
      %v581 = vpop.f32.mrf.mxu0
      %v582 = vadd.f32 %v203, %v581
      %v583 = vpop.f32.mrf.mxu0
      %v584 = vadd.f32 %v203, %v583
      %585 = vmatmul.bf16.gmra.mxu0 %v529
      %v586 = vpop.f32.mrf.mxu0
      %v587 = vadd.f32 %v203, %v586
      %v588 = vpop.f32.mrf.mxu0
      %v589 = vadd.f32 %v203, %v588
      %590 = vmatmul.bf16.gmra.mxu0 %v532
      %v591 = vpop.f32.mrf.mxu0
      %v592 = vadd.f32 %v203, %v591
      %v593 = vpop.f32.mrf.mxu0
      %v594 = vadd.f32 %v203, %v593
      %595 = vmatmul.bf16.gmra.mxu0 %v535
      %v596 = vpop.f32.mrf.mxu0
      %v597 = vadd.f32 %v203, %v596
      %v598 = vpop.f32.mrf.mxu0
      %v599 = vadd.f32 %v203, %v598
      %600 = vmatmul.bf16.gmra.mxu0 %v538
      %v601 = vpop.f32.mrf.mxu0
      %v602 = vadd.f32 %v203, %v601
      %v603 = vpop.f32.mrf.mxu0
      %v604 = vadd.f32 %v203, %v603
      %605 = vmatmul.bf16.gmra.mxu0 %v541
      %v606 = vpop.f32.mrf.mxu0
      %v607 = vadd.f32 %v203, %v606
      %v608 = vpop.f32.mrf.mxu0
      %v609 = vadd.f32 %v203, %v608
      %610 = vmatmul.bf16.gmra.mxu0 %v544
      %v611 = vpop.f32.mrf.mxu0
      %v612 = vadd.f32 %v203, %v611
      %v613 = vpop.f32.mrf.mxu0
      %v614 = vadd.f32 %v203, %v613
      %615 = vmatmul.bf16.gmra.mxu0 %v547
      %v616 = vpop.f32.mrf.mxu0
      %v617 = vadd.f32 %v203, %v616
      %v618 = vpop.f32.mrf.mxu0
      %v619 = vadd.f32 %v203, %v618
      %620 = vmatmul.bf16.gmra.mxu0 %v550
      %v621 = vpop.f32.mrf.mxu0
      %v622 = vadd.f32 %v203, %v621
      %v623 = vpop.f32.mrf.mxu0
      %624 = vdwg.mxu0
      %v625 = vmax.f32 %v562, 0.0
      %v626 = vmax.f32 %v564, 0.0
      %v627 = vmax.f32 %v567, 0.0
      %v628 = vmax.f32 %v569, 0.0
      %v629 = vmax.f32 %v572, 0.0
      %v630 = vmax.f32 %v574, 0.0
      %v631 = vmax.f32 %v577, 0.0
      %v632 = vmax.f32 %v579, 0.0
      %v633 = vmax.f32 %v582, 0.0
      %v634 = vmax.f32 %v584, 0.0
      %v635 = vmax.f32 %v587, 0.0
      %v636 = vmax.f32 %v589, 0.0
      %v637 = vmax.f32 %v592, 0.0
      %v638 = vmax.f32 %v594, 0.0
      %v639 = vmax.f32 %v597, 0.0
      %v640 = vmax.f32 %v599, 0.0
      %v641 = vmax.f32 %v602, 0.0
      %v642 = vmax.f32 %v604, 0.0
      %v643 = vmax.f32 %v607, 0.0
      %v644 = vmax.f32 %v609, 0.0
      %v645 = vmax.f32 %v612, 0.0
      %v646 = vmax.f32 %v614, 0.0
      %v647 = vmax.f32 %v617, 0.0
      %v648 = vmax.f32 %v619, 0.0
      %v649 = vmax.f32 %v622, 0.0
      %v650 = vmax.f32 %v399, %v625
      %v651 = vmax.f32 %v400, %v626
      %v652 = vmax.f32 %v401, %v627
      %v653 = vmax.f32 %v402, %v628
      %v654 = vmax.f32 %v403, %v629
      %v655 = vmax.f32 %v404, %v630
      %v656 = vmax.f32 %v405, %v631
      %v657 = vmax.f32 %v406, %v632
      %v658 = vmax.f32 %v407, %v633
      %v659 = vmax.f32 %v408, %v634
      %v660 = vmax.f32 %v409, %v635
      %v661 = vmax.f32 %v410, %v636
      %v662 = vmax.f32 %v411, %v637
      %v663 = vmax.f32 %v412, %v638
      %v664 = vmax.f32 %v413, %v639
      %v665 = vmax.f32 %v414, %v640
      %v666 = vmax.f32 %v415, %v641
      %v667 = vmax.f32 %v416, %v642
      %v668 = vmax.f32 %v417, %v643
      %v669 = vmax.f32 %v418, %v644
      %v670 = vmax.f32 %v419, %v645
      %v671 = vmax.f32 %v420, %v646
      %v672 = vmax.f32 %v421, %v647
      %v673 = vmax.f32 %v422, %v648
      %v674 = vmax.f32 %v423, %v649
      %s675 = scalar_lea.vmem %s165, 200
      %v676 = vld [vmem:[%s675] sm:$0xf]
      %v677 = vld [vmem:[%s675 + $0x4] sm:$0xf]
      %v678 = vld [vmem:[%s675 + $0x8] sm:$0xf]
      %v679 = vld [vmem:[%s675 + $0xc] sm:$0xf]
      %v680 = vld [vmem:[%s675 + $0x10] sm:$0xf]
      %v681 = vld [vmem:[%s675 + $0x14] sm:$0xf]
      %v682 = vld [vmem:[%s675 + $0x18] sm:$0xf]
      %v683 = vld [vmem:[%s675 + $0x1c] sm:$0xf]
      %v684 = vld [vmem:[%s675 + $0x20] sm:$0xf]
      %v685 = vld [vmem:[%s675 + $0x24] sm:$0xf]
      %v686 = vld [vmem:[%s675 + $0x28] sm:$0xf]
      %v687 = vld [vmem:[%s675 + $0x2c] sm:$0xf]
      %v688 = vld [vmem:[%s675 + $0x30] sm:$0xf]
      %v689 = vld [vmem:[%s675 + $0x34] sm:$0xf]
      %v690 = vld [vmem:[%s675 + $0x38] sm:$0xf]
      %v691 = vld [vmem:[%s675 + $0x3c] sm:$0xf]
      %v692 = vld [vmem:[%s675 + $0x40] sm:$0xf]
      %v693 = vld [vmem:[%s675 + $0x44] sm:$0xf]
      %v694 = vld [vmem:[%s675 + $0x48] sm:$0xf]
      %v695 = vld [vmem:[%s675 + $0x4c] sm:$0xf]
      %v696 = vld [vmem:[%s675 + $0x50] sm:$0xf]
      %v697 = vld [vmem:[%s675 + $0x54] sm:$0xf]
      %v698 = vld [vmem:[%s675 + $0x58] sm:$0xf]
      %v699 = vld [vmem:[%s675 + $0x5c] sm:$0xf]
      %v700 = vld [vmem:[%s675 + $0x60] sm:$0x3]
      %v726 = vunpack.c.l.b16 %v676
      %v727 = vunpack.c.l.b16 %v677
      %v728 = vunpack.c.l.b16 %v678
      %v729 = vunpack.c.l.b16 %v679
      %v730 = vunpack.c.l.b16 %v680
      %v731 = vunpack.c.l.b16 %v681
      %v732 = vunpack.c.l.b16 %v682
      %v733 = vunpack.c.l.b16 %v683
      %v734 = vunpack.c.l.b16 %v684
      %v735 = vunpack.c.l.b16 %v685
      %v736 = vunpack.c.l.b16 %v686
      %v737 = vunpack.c.l.b16 %v687
      %v738 = vunpack.c.l.b16 %v688
      %v739 = vunpack.c.l.b16 %v689
      %v740 = vunpack.c.l.b16 %v690
      %v741 = vunpack.c.l.b16 %v691
      %v742 = vunpack.c.l.b16 %v692
      %v743 = vunpack.c.l.b16 %v693
      %v744 = vunpack.c.l.b16 %v694
      %v745 = vunpack.c.l.b16 %v695
      %v746 = vunpack.c.l.b16 %v696
      %v747 = vunpack.c.l.b16 %v697
      %v748 = vunpack.c.l.b16 %v698
      %v749 = vunpack.c.l.b16 %v699
      %v750 = vunpack.c.l.b16 %v700
      %v751 = vpack.c.b16 %v727, %v726
      %v752 = vpack.c.b16 %v729, %v728
      %v753 = vpack.c.b16 %v731, %v730
      %v754 = vpack.c.b16 %v733, %v732
      %v755 = vpack.c.b16 %v735, %v734
      %v756 = vpack.c.b16 %v737, %v736
      %v757 = vpack.c.b16 %v739, %v738
      %v758 = vpack.c.b16 %v741, %v740
      %v759 = vpack.c.b16 %v743, %v742
      %v760 = vpack.c.b16 %v745, %v744
      %v761 = vpack.c.b16 %v747, %v746
      %v762 = vpack.c.b16 %v749, %v748
      %v763 = vpack.c.b16 %v750, %v750
      %v765 = vsel %vm279, %v751, 0
      %v768 = vsel %vm279, %v752, 0
      %v771 = vsel %vm279, %v753, 0
      %v774 = vsel %vm279, %v754, 0
      %v777 = vsel %vm279, %v755, 0
      %v780 = vsel %vm279, %v756, 0
      %v783 = vsel %vm279, %v757, 0
      %v786 = vsel %vm279, %v758, 0
      %v789 = vsel %vm279, %v759, 0
      %v792 = vsel %vm279, %v760, 0
      %v795 = vsel %vm279, %v761, 0
      %v798 = vsel %vm279, %v762, 0
      %v801 = vsel %vm279, %v763, 0
      %803 = vmatpush.bf16.msra.mxu0 0
      %804 = vmatpush.bf16.msra.mxu0 0
      %805 = vmatpush.bf16.msra.mxu0 0
      %806 = vmatpush.bf16.msra.mxu0 0
      %807 = vmatpush.bf16.msra.mxu0 0
      %808 = vmatpush.bf16.msra.mxu0 0
      %809 = vmatpush.bf16.msra.mxu0 %v324
      %810 = vmatpush.bf16.msra.mxu0 %v276
      %811 = vmatmul.bf16.gmra.mxu0 %v765
      %v812 = vpop.f32.mrf.mxu0
      %v813 = vadd.f32 %v203, %v812
      %v814 = vpop.f32.mrf.mxu0
      %v815 = vadd.f32 %v203, %v814
      %816 = vmatmul.bf16.gmra.mxu0 %v768
      %v817 = vpop.f32.mrf.mxu0
      %v818 = vadd.f32 %v203, %v817
      %v819 = vpop.f32.mrf.mxu0
      %v820 = vadd.f32 %v203, %v819
      %821 = vmatmul.bf16.gmra.mxu0 %v771
      %v822 = vpop.f32.mrf.mxu0
      %v823 = vadd.f32 %v203, %v822
      %v824 = vpop.f32.mrf.mxu0
      %v825 = vadd.f32 %v203, %v824
      %826 = vmatmul.bf16.gmra.mxu0 %v774
      %v827 = vpop.f32.mrf.mxu0
      %v828 = vadd.f32 %v203, %v827
      %v829 = vpop.f32.mrf.mxu0
      %v830 = vadd.f32 %v203, %v829
      %831 = vmatmul.bf16.gmra.mxu0 %v777
      %v832 = vpop.f32.mrf.mxu0
      %v833 = vadd.f32 %v203, %v832
      %v834 = vpop.f32.mrf.mxu0
      %v835 = vadd.f32 %v203, %v834
      %836 = vmatmul.bf16.gmra.mxu0 %v780
      %v837 = vpop.f32.mrf.mxu0
      %v838 = vadd.f32 %v203, %v837
      %v839 = vpop.f32.mrf.mxu0
      %v840 = vadd.f32 %v203, %v839
      %841 = vmatmul.bf16.gmra.mxu0 %v783
      %v842 = vpop.f32.mrf.mxu0
      %v843 = vadd.f32 %v203, %v842
      %v844 = vpop.f32.mrf.mxu0
      %v845 = vadd.f32 %v203, %v844
      %846 = vmatmul.bf16.gmra.mxu0 %v786
      %v847 = vpop.f32.mrf.mxu0
      %v848 = vadd.f32 %v203, %v847
      %v849 = vpop.f32.mrf.mxu0
      %v850 = vadd.f32 %v203, %v849
      %851 = vmatmul.bf16.gmra.mxu0 %v789
      %v852 = vpop.f32.mrf.mxu0
      %v853 = vadd.f32 %v203, %v852
      %v854 = vpop.f32.mrf.mxu0
      %v855 = vadd.f32 %v203, %v854
      %856 = vmatmul.bf16.gmra.mxu0 %v792
      %v857 = vpop.f32.mrf.mxu0
      %v858 = vadd.f32 %v203, %v857
      %v859 = vpop.f32.mrf.mxu0
      %v860 = vadd.f32 %v203, %v859
      %861 = vmatmul.bf16.gmra.mxu0 %v795
      %v862 = vpop.f32.mrf.mxu0
      %v863 = vadd.f32 %v203, %v862
      %v864 = vpop.f32.mrf.mxu0
      %v865 = vadd.f32 %v203, %v864
      %866 = vmatmul.bf16.gmra.mxu0 %v798
      %v867 = vpop.f32.mrf.mxu0
      %v868 = vadd.f32 %v203, %v867
      %v869 = vpop.f32.mrf.mxu0
      %v870 = vadd.f32 %v203, %v869
      %871 = vmatmul.bf16.gmra.mxu0 %v801
      %v872 = vpop.f32.mrf.mxu0
      %v873 = vadd.f32 %v203, %v872
      %v874 = vpop.f32.mrf.mxu0
      %875 = vdwg.mxu0
      %v876 = vmax.f32 %v813, 0.0
      %v877 = vmax.f32 %v815, 0.0
      %v878 = vmax.f32 %v818, 0.0
      %v879 = vmax.f32 %v820, 0.0
      %v880 = vmax.f32 %v823, 0.0
      %v881 = vmax.f32 %v825, 0.0
      %v882 = vmax.f32 %v828, 0.0
      %v883 = vmax.f32 %v830, 0.0
      %v884 = vmax.f32 %v833, 0.0
      %v885 = vmax.f32 %v835, 0.0
      %v886 = vmax.f32 %v838, 0.0
      %v887 = vmax.f32 %v840, 0.0
      %v888 = vmax.f32 %v843, 0.0
      %v889 = vmax.f32 %v845, 0.0
      %v890 = vmax.f32 %v848, 0.0
      %v891 = vmax.f32 %v850, 0.0
      %v892 = vmax.f32 %v853, 0.0
      %v893 = vmax.f32 %v855, 0.0
      %v894 = vmax.f32 %v858, 0.0
      %v895 = vmax.f32 %v860, 0.0
      %v896 = vmax.f32 %v863, 0.0
      %v897 = vmax.f32 %v865, 0.0
      %v898 = vmax.f32 %v868, 0.0
      %v899 = vmax.f32 %v870, 0.0
      %v900 = vmax.f32 %v873, 0.0
      %v901 = vmax.f32 %v650, %v876
      %v902 = vmax.f32 %v651, %v877
      %v903 = vmax.f32 %v652, %v878
      %v904 = vmax.f32 %v653, %v879
      %v905 = vmax.f32 %v654, %v880
      %v906 = vmax.f32 %v655, %v881
      %v907 = vmax.f32 %v656, %v882
      %v908 = vmax.f32 %v657, %v883
      %v909 = vmax.f32 %v658, %v884
      %v910 = vmax.f32 %v659, %v885
      %v911 = vmax.f32 %v660, %v886
      %v912 = vmax.f32 %v661, %v887
      %v913 = vmax.f32 %v662, %v888
      %v914 = vmax.f32 %v663, %v889
      %v915 = vmax.f32 %v664, %v890
      %v916 = vmax.f32 %v665, %v891
      %v917 = vmax.f32 %v666, %v892
      %v918 = vmax.f32 %v667, %v893
      %v919 = vmax.f32 %v668, %v894
      %v920 = vmax.f32 %v669, %v895
      %v921 = vmax.f32 %v670, %v896
      %v922 = vmax.f32 %v671, %v897
      %v923 = vmax.f32 %v672, %v898
      %v924 = vmax.f32 %v673, %v899
      %v925 = vmax.f32 %v674, %v900
      %s926 = scalar_lea.vmem %s165, 300
      %v927 = vld [vmem:[%s926] sm:$0xf]
      %v928 = vld [vmem:[%s926 + $0x4] sm:$0xf]
      %v929 = vld [vmem:[%s926 + $0x8] sm:$0xf]
      %v930 = vld [vmem:[%s926 + $0xc] sm:$0xf]
      %v931 = vld [vmem:[%s926 + $0x10] sm:$0xf]
      %v932 = vld [vmem:[%s926 + $0x14] sm:$0xf]
      %v933 = vld [vmem:[%s926 + $0x18] sm:$0xf]
      %v934 = vld [vmem:[%s926 + $0x1c] sm:$0xf]
      %v935 = vld [vmem:[%s926 + $0x20] sm:$0xf]
      %v936 = vld [vmem:[%s926 + $0x24] sm:$0xf]
      %v937 = vld [vmem:[%s926 + $0x28] sm:$0xf]
      %v938 = vld [vmem:[%s926 + $0x2c] sm:$0xf]
      %v939 = vld [vmem:[%s926 + $0x30] sm:$0xf]
      %v940 = vld [vmem:[%s926 + $0x34] sm:$0xf]
      %v941 = vld [vmem:[%s926 + $0x38] sm:$0xf]
      %v942 = vld [vmem:[%s926 + $0x3c] sm:$0xf]
      %v943 = vld [vmem:[%s926 + $0x40] sm:$0xf]
      %v944 = vld [vmem:[%s926 + $0x44] sm:$0xf]
      %v945 = vld [vmem:[%s926 + $0x48] sm:$0xf]
      %v946 = vld [vmem:[%s926 + $0x4c] sm:$0xf]
      %v947 = vld [vmem:[%s926 + $0x50] sm:$0xf]
      %v948 = vld [vmem:[%s926 + $0x54] sm:$0xf]
      %v949 = vld [vmem:[%s926 + $0x58] sm:$0xf]
      %v950 = vld [vmem:[%s926 + $0x5c] sm:$0xf]
      %v951 = vld [vmem:[%s926 + $0x60] sm:$0x3]
      %v977 = vunpack.c.l.b16 %v927
      %v978 = vunpack.c.l.b16 %v928
      %v979 = vunpack.c.l.b16 %v929
      %v980 = vunpack.c.l.b16 %v930
      %v981 = vunpack.c.l.b16 %v931
      %v982 = vunpack.c.l.b16 %v932
      %v983 = vunpack.c.l.b16 %v933
      %v984 = vunpack.c.l.b16 %v934
      %v985 = vunpack.c.l.b16 %v935
      %v986 = vunpack.c.l.b16 %v936
      %v987 = vunpack.c.l.b16 %v937
      %v988 = vunpack.c.l.b16 %v938
      %v989 = vunpack.c.l.b16 %v939
      %v990 = vunpack.c.l.b16 %v940
      %v991 = vunpack.c.l.b16 %v941
      %v992 = vunpack.c.l.b16 %v942
      %v993 = vunpack.c.l.b16 %v943
      %v994 = vunpack.c.l.b16 %v944
      %v995 = vunpack.c.l.b16 %v945
      %v996 = vunpack.c.l.b16 %v946
      %v997 = vunpack.c.l.b16 %v947
      %v998 = vunpack.c.l.b16 %v948
      %v999 = vunpack.c.l.b16 %v949
      %v1000 = vunpack.c.l.b16 %v950
      %v1001 = vunpack.c.l.b16 %v951
      %v1002 = vpack.c.b16 %v978, %v977
      %v1003 = vpack.c.b16 %v980, %v979
      %v1004 = vpack.c.b16 %v982, %v981
      %v1005 = vpack.c.b16 %v984, %v983
      %v1006 = vpack.c.b16 %v986, %v985
      %v1007 = vpack.c.b16 %v988, %v987
      %v1008 = vpack.c.b16 %v990, %v989
      %v1009 = vpack.c.b16 %v992, %v991
      %v1010 = vpack.c.b16 %v994, %v993
      %v1011 = vpack.c.b16 %v996, %v995
      %v1012 = vpack.c.b16 %v998, %v997
      %v1013 = vpack.c.b16 %v1000, %v999
      %v1014 = vpack.c.b16 %v1001, %v1001
      %v1016 = vsel %vm279, %v1002, 0
      %v1019 = vsel %vm279, %v1003, 0
      %v1022 = vsel %vm279, %v1004, 0
      %v1025 = vsel %vm279, %v1005, 0
      %v1028 = vsel %vm279, %v1006, 0
      %v1031 = vsel %vm279, %v1007, 0
      %v1034 = vsel %vm279, %v1008, 0
      %v1037 = vsel %vm279, %v1009, 0
      %v1040 = vsel %vm279, %v1010, 0
      %v1043 = vsel %vm279, %v1011, 0
      %v1046 = vsel %vm279, %v1012, 0
      %v1049 = vsel %vm279, %v1013, 0
      %v1052 = vsel %vm279, %v1014, 0
      %1054 = vmatpush.bf16.msra.mxu0 0
      %1055 = vmatpush.bf16.msra.mxu0 0
      %1056 = vmatpush.bf16.msra.mxu0 0
      %1057 = vmatpush.bf16.msra.mxu0 0
      %1058 = vmatpush.bf16.msra.mxu0 0
      %1059 = vmatpush.bf16.msra.mxu0 0
      %1060 = vmatpush.bf16.msra.mxu0 %v324
      %1061 = vmatpush.bf16.msra.mxu0 %v276
      %1062 = vmatmul.bf16.gmra.mxu0 %v1016
      %v1063 = vpop.f32.mrf.mxu0
      %v1064 = vadd.f32 %v203, %v1063
      %v1065 = vpop.f32.mrf.mxu0
      %v1066 = vadd.f32 %v203, %v1065
      %1067 = vmatmul.bf16.gmra.mxu0 %v1019
      %v1068 = vpop.f32.mrf.mxu0
      %v1069 = vadd.f32 %v203, %v1068
      %v1070 = vpop.f32.mrf.mxu0
      %v1071 = vadd.f32 %v203, %v1070
      %1072 = vmatmul.bf16.gmra.mxu0 %v1022
      %v1073 = vpop.f32.mrf.mxu0
      %v1074 = vadd.f32 %v203, %v1073
      %v1075 = vpop.f32.mrf.mxu0
      %v1076 = vadd.f32 %v203, %v1075
      %1077 = vmatmul.bf16.gmra.mxu0 %v1025
      %v1078 = vpop.f32.mrf.mxu0
      %v1079 = vadd.f32 %v203, %v1078
      %v1080 = vpop.f32.mrf.mxu0
      %v1081 = vadd.f32 %v203, %v1080
      %1082 = vmatmul.bf16.gmra.mxu0 %v1028
      %v1083 = vpop.f32.mrf.mxu0
      %v1084 = vadd.f32 %v203, %v1083
      %v1085 = vpop.f32.mrf.mxu0
      %v1086 = vadd.f32 %v203, %v1085
      %1087 = vmatmul.bf16.gmra.mxu0 %v1031
      %v1088 = vpop.f32.mrf.mxu0
      %v1089 = vadd.f32 %v203, %v1088
      %v1090 = vpop.f32.mrf.mxu0
      %v1091 = vadd.f32 %v203, %v1090
      %1092 = vmatmul.bf16.gmra.mxu0 %v1034
      %v1093 = vpop.f32.mrf.mxu0
      %v1094 = vadd.f32 %v203, %v1093
      %v1095 = vpop.f32.mrf.mxu0
      %v1096 = vadd.f32 %v203, %v1095
      %1097 = vmatmul.bf16.gmra.mxu0 %v1037
      %v1098 = vpop.f32.mrf.mxu0
      %v1099 = vadd.f32 %v203, %v1098
      %v1100 = vpop.f32.mrf.mxu0
      %v1101 = vadd.f32 %v203, %v1100
      %1102 = vmatmul.bf16.gmra.mxu0 %v1040
      %v1103 = vpop.f32.mrf.mxu0
      %v1104 = vadd.f32 %v203, %v1103
      %v1105 = vpop.f32.mrf.mxu0
      %v1106 = vadd.f32 %v203, %v1105
      %1107 = vmatmul.bf16.gmra.mxu0 %v1043
      %v1108 = vpop.f32.mrf.mxu0
      %v1109 = vadd.f32 %v203, %v1108
      %v1110 = vpop.f32.mrf.mxu0
      %v1111 = vadd.f32 %v203, %v1110
      %1112 = vmatmul.bf16.gmra.mxu0 %v1046
      %v1113 = vpop.f32.mrf.mxu0
      %v1114 = vadd.f32 %v203, %v1113
      %v1115 = vpop.f32.mrf.mxu0
      %v1116 = vadd.f32 %v203, %v1115
      %1117 = vmatmul.bf16.gmra.mxu0 %v1049
      %v1118 = vpop.f32.mrf.mxu0
      %v1119 = vadd.f32 %v203, %v1118
      %v1120 = vpop.f32.mrf.mxu0
      %v1121 = vadd.f32 %v203, %v1120
      %1122 = vmatmul.bf16.gmra.mxu0 %v1052
      %v1123 = vpop.f32.mrf.mxu0
      %v1124 = vadd.f32 %v203, %v1123
      %v1125 = vpop.f32.mrf.mxu0
      %1126 = vdwg.mxu0
      %v1127 = vmax.f32 %v1064, 0.0
      %v1128 = vmax.f32 %v1066, 0.0
      %v1129 = vmax.f32 %v1069, 0.0
      %v1130 = vmax.f32 %v1071, 0.0
      %v1131 = vmax.f32 %v1074, 0.0
      %v1132 = vmax.f32 %v1076, 0.0
      %v1133 = vmax.f32 %v1079, 0.0
      %v1134 = vmax.f32 %v1081, 0.0
      %v1135 = vmax.f32 %v1084, 0.0
      %v1136 = vmax.f32 %v1086, 0.0
      %v1137 = vmax.f32 %v1089, 0.0
      %v1138 = vmax.f32 %v1091, 0.0
      %v1139 = vmax.f32 %v1094, 0.0
      %v1140 = vmax.f32 %v1096, 0.0
      %v1141 = vmax.f32 %v1099, 0.0
      %v1142 = vmax.f32 %v1101, 0.0
      %v1143 = vmax.f32 %v1104, 0.0
      %v1144 = vmax.f32 %v1106, 0.0
      %v1145 = vmax.f32 %v1109, 0.0
      %v1146 = vmax.f32 %v1111, 0.0
      %v1147 = vmax.f32 %v1114, 0.0
      %v1148 = vmax.f32 %v1116, 0.0
      %v1149 = vmax.f32 %v1119, 0.0
      %v1150 = vmax.f32 %v1121, 0.0
      %v1151 = vmax.f32 %v1124, 0.0
      %v1152 = vmax.f32 %v901, %v1127
      %v1153 = vmax.f32 %v902, %v1128
      %v1154 = vmax.f32 %v903, %v1129
      %v1155 = vmax.f32 %v904, %v1130
      %v1156 = vmax.f32 %v905, %v1131
      %v1157 = vmax.f32 %v906, %v1132
      %v1158 = vmax.f32 %v907, %v1133
      %v1159 = vmax.f32 %v908, %v1134
      %v1160 = vmax.f32 %v909, %v1135
      %v1161 = vmax.f32 %v910, %v1136
      %v1162 = vmax.f32 %v911, %v1137
      %v1163 = vmax.f32 %v912, %v1138
      %v1164 = vmax.f32 %v913, %v1139
      %v1165 = vmax.f32 %v914, %v1140
      %v1166 = vmax.f32 %v915, %v1141
      %v1167 = vmax.f32 %v916, %v1142
      %v1168 = vmax.f32 %v917, %v1143
      %v1169 = vmax.f32 %v918, %v1144
      %v1170 = vmax.f32 %v919, %v1145
      %v1171 = vmax.f32 %v920, %v1146
      %v1172 = vmax.f32 %v921, %v1147
      %v1173 = vmax.f32 %v922, %v1148
      %v1174 = vmax.f32 %v923, %v1149
      %v1175 = vmax.f32 %v924, %v1150
      %v1176 = vmax.f32 %v925, %v1151
      %v1177 = vpack.c.bf16 %v1152, %v1152
      %v1178 = vpack.c.bf16 %v1153, %v1153
      %v1179 = vpack.c.bf16 %v1154, %v1154
      %v1180 = vpack.c.bf16 %v1155, %v1155
      %v1181 = vpack.c.bf16 %v1156, %v1156
      %v1182 = vpack.c.bf16 %v1157, %v1157
      %v1183 = vpack.c.bf16 %v1158, %v1158
      %v1184 = vpack.c.bf16 %v1159, %v1159
      %v1185 = vpack.c.bf16 %v1160, %v1160
      %v1186 = vpack.c.bf16 %v1161, %v1161
      %v1187 = vpack.c.bf16 %v1162, %v1162
      %v1188 = vpack.c.bf16 %v1163, %v1163
      %v1189 = vpack.c.bf16 %v1164, %v1164
      %v1190 = vpack.c.bf16 %v1165, %v1165
      %v1191 = vpack.c.bf16 %v1166, %v1166
      %v1192 = vpack.c.bf16 %v1167, %v1167
      %v1193 = vpack.c.bf16 %v1168, %v1168
      %v1194 = vpack.c.bf16 %v1169, %v1169
      %v1195 = vpack.c.bf16 %v1170, %v1170
      %v1196 = vpack.c.bf16 %v1171, %v1171
      %v1197 = vpack.c.bf16 %v1172, %v1172
      %v1198 = vpack.c.bf16 %v1173, %v1173
      %v1199 = vpack.c.bf16 %v1174, %v1174
      %v1200 = vpack.c.bf16 %v1175, %v1175
      %v1201 = vpack.c.bf16 %v1176, %v1176
      %vm1202 = vcmask 125952
      %1203 = vst.msk [vmem:[%s170] sm:$0xf] %vm1202, %v1177
      %1204 = vst.msk [vmem:[%s170 + $0x4] sm:$0xf] %vm1202, %v1178
      %1205 = vst.msk [vmem:[%s170 + $0x8] sm:$0xf] %vm1202, %v1179
      %1206 = vst.msk [vmem:[%s170 + $0xc] sm:$0xf] %vm1202, %v1180
      %1207 = vst.msk [vmem:[%s170 + $0x10] sm:$0xf] %vm1202, %v1181
      %1208 = vst.msk [vmem:[%s170 + $0x14] sm:$0xf] %vm1202, %v1182
      %1209 = vst.msk [vmem:[%s170 + $0x18] sm:$0xf] %vm1202, %v1183
      %1210 = vst.msk [vmem:[%s170 + $0x1c] sm:$0xf] %vm1202, %v1184
      %1211 = vst.msk [vmem:[%s170 + $0x20] sm:$0xf] %vm1202, %v1185
      %1212 = vst.msk [vmem:[%s170 + $0x24] sm:$0xf] %vm1202, %v1186
      %1213 = vst.msk [vmem:[%s170 + $0x28] sm:$0xf] %vm1202, %v1187
      %1214 = vst.msk [vmem:[%s170 + $0x2c] sm:$0xf] %vm1202, %v1188
      %1215 = vst.msk [vmem:[%s170 + $0x30] sm:$0xf] %vm1202, %v1189
      %1216 = vst.msk [vmem:[%s170 + $0x34] sm:$0xf] %vm1202, %v1190
      %1217 = vst.msk [vmem:[%s170 + $0x38] sm:$0xf] %vm1202, %v1191
      %1218 = vst.msk [vmem:[%s170 + $0x3c] sm:$0xf] %vm1202, %v1192
      %1219 = vst.msk [vmem:[%s170 + $0x40] sm:$0xf] %vm1202, %v1193
      %1220 = vst.msk [vmem:[%s170 + $0x44] sm:$0xf] %vm1202, %v1194
      %1221 = vst.msk [vmem:[%s170 + $0x48] sm:$0xf] %vm1202, %v1195
      %1222 = vst.msk [vmem:[%s170 + $0x4c] sm:$0xf] %vm1202, %v1196
      %1223 = vst.msk [vmem:[%s170 + $0x50] sm:$0xf] %vm1202, %v1197
      %1224 = vst.msk [vmem:[%s170 + $0x54] sm:$0xf] %vm1202, %v1198
      %1225 = vst.msk [vmem:[%s170 + $0x58] sm:$0xf] %vm1202, %v1199
      %1226 = vst.msk [vmem:[%s170 + $0x5c] sm:$0xf] %vm1202, %v1200
      %vm1227 = vcmask 123904
      %1228 = vst.msk [vmem:[%s170 + $0x60] sm:$0x3] %vm1227, %v1201
      %p1229 = scmp.lt.s32.totalorder %s14, 1
      %s1230 = scalar_select %p1229, %s14, 1
      %s1231 = smul.addr %s1230, 25
      %s1232 = smul.addr %s1231, 4
      %s1233 = scalar_lea.vmem %s3, %s1232
      // Predicated region
      $region33: #{convnet_forward.3} parent=31 // pred_check
        %p1234 = pneg %p100
      $region34: #{convnet_forward.3} parent=31 // pred_check_branch
        %1236 = sbr.rel (%p1234) target = $region36
      $region35: #{convnet_forward.3} parent=31 // pred_region
        _
      $region36: #{convnet_forward.3} parent=31 // pred_fallthru
        _
    $region32: #{convnet_forward.3} parent=5 // pred_fallthru
      _
    %p1237 = scmp.le.s32.totalorder 2, %s9
    // Predicated region
    $region37: #{convnet_forward.3} parent=5 // pred_check
      %p1238 = pneg %p1237
    $region38: #{convnet_forward.3} parent=5 // pred_check_branch
      %1240 = sbr.rel (%p1238) target = $region40
    $region39: #{convnet_forward.3} parent=5 // pred_region
      %s1241 = ssub.s32 %s9, 2
      // Predicated region
      $region41: #{convnet_forward.3} parent=39 // pred_check
        %p1242 = pneg %p106
      $region42: #{convnet_forward.3} parent=39 // pred_check_branch
        %1244 = sbr.rel (%p1242) target = $region44
      $region43: #{convnet_forward.3} parent=39 // pred_region
        %p1245 = scmp.lt.s32.totalorder %s15, 1
        %s1246 = scalar_select %p1245, %s15, 1
        %s1247 = smul.addr %s1246, 25
        %s1248 = smul.addr %s1247, 4
        %s1249 = scalar_lea.vmem %s3, %s1248
      $region44: #{convnet_forward.3} parent=39 // pred_fallthru
        _
    $region40: #{convnet_forward.3} parent=5 // pred_fallthru
      _
  $region6: #{convnet_forward.3} parent=0 // loop_footer
    %s13 = sadd.s32 1, %s9
  $region7: #{convnet_forward.3} parent=0 // loop_footer_branch
    %8 = sbr.rel target = $region3
  $region8: #{convnet_forward.3} parent=0 // loop_exit
    _

// kernel: convnet_forward.4
$region0: #{convnet_forward.4}
  #allocation0 [shape = 'u32[]', space=smem, size = 0x4, offset = 0x4, fixed_abs, tag = 'smem constant byte address 0x4 - core index']
  #allocation1 [shape = 'u32[72,128]{1,0:T(1,128)}', space=vmem, size = 0x9000, scoped, tag = 'internal scratch']
  %s0 = inlined_call_operand.vmem [shape: bf16[2,4,49,400], index: 0, kind: input, shape index: {}]
  %s1 = inlined_call_operand.vmem [shape: bf16[400,32], index: 1, kind: input, shape index: {}]
  %s2 = inlined_call_operand.vmem [shape: f32[1,32], index: 2, kind: input, shape index: {}]
  %s3 = inlined_call_operand.vmem [shape: bf16[2,49,32], index: 3, kind: output, shape index: {}]
  %s4 = sld [smem:[#allocation0]]
  $region45: #{convnet_forward.4} parent=0
    _
  %s6 = ssub.s32 1, %s4
  %s7 = scalar_select 0, %s6, %s4
  loop: start=0, step=1, limit=4
  $region2: #{convnet_forward.4} parent=0 // loop_pre_header
    _
  $region3: #{convnet_forward.4} parent=0 // loop_header
    %s9 = sphi 0, %s13
    %p10 = scmp.ge.s32.totalorder %s9, 4
    %s19 = sphi 0, %s21
    %s22 = sphi 0, %s19
    %s23 = sphi 0, %s22
    %s39 = sphi 0, %s23
    %s43 = sphi 0, %s43
    %s45 = sphi 0, %s43
    %s46 = sphi 0, %s45
    %s60 = sphi 0, %s46
    %s64 = sphi 0, %s64
    %s66 = sphi 0, %s64
    %s67 = sphi 0, %s66
    %s81 = sphi 0, %s67
    %s87 = sphi 0, %s89
    %s90 = sphi 0, %s87
    %s91 = sphi 0, %s90
    %s107 = sphi 0, %s91
  $region4: #{convnet_forward.4} parent=0 // loop_header_branch
    %12 = sbr.rel (%p10) target = $region8
  $region5: #{convnet_forward.4} parent=0 // loop_body
    %s14 = ssub.s32 %s9, 1
    %s15 = ssub.s32 %s9, 2
    %s16 = sadd.s32 %s9, 1
    %s17 = ssub.s32 %s9, %s16
    %p18 = scmp.eq.s32.totalorder %s17, 0
    %s20 = sadd.s32 %s19, 1
    %s21 = scalar_select %p18, %s19, %s20
    %p24 = pneg %p18
    %p25 = scmp.eq.s32.totalorder %s9, 1
    %p26 = por %p24, %p25
    %p27 = scmp.ne.s32.totalorder %s19, %s22
    %p28 = scmp.eq.s32.totalorder %s9, 0
    %p29 = por %p27, %p28
    %p30 = scmp.ne.s32.totalorder %s19, %s22
    %p31 = scmp.eq.s32.totalorder %s14, 1
    %p32 = por %p30, %p31
    %p33 = scmp.ne.s32.totalorder %s22, %s23
    %p34 = scmp.eq.s32.totalorder %s14, 0
    %p35 = por %p33, %p34
    %p36 = scmp.ne.s32.totalorder %s22, %s23
    %p37 = scmp.eq.s32.totalorder %s15, 1
    %p38 = por %p36, %p37
    %p40 = scmp.ne.s32.totalorder %s23, %s39
    %p41 = scmp.eq.s32.totalorder %s15, 0
    %p42 = por %p40, %p41
    %s44 = sadd.s32 %s43, 1
    %p47 = scmp.eq.s32.totalorder %s9, 1
    %p48 = scmp.ne.s32.totalorder %s43, %s45
    %p49 = scmp.eq.s32.totalorder %s9, 0
    %p50 = por %p48, %p49
    %p51 = scmp.ne.s32.totalorder %s43, %s45
    %p52 = scmp.eq.s32.totalorder %s14, 1
    %p53 = por %p51, %p52
    %p54 = scmp.ne.s32.totalorder %s45, %s46
    %p55 = scmp.eq.s32.totalorder %s14, 0
    %p56 = por %p54, %p55
    %p57 = scmp.ne.s32.totalorder %s45, %s46
    %p58 = scmp.eq.s32.totalorder %s15, 1
    %p59 = por %p57, %p58
    %p61 = scmp.ne.s32.totalorder %s46, %s60
    %p62 = scmp.eq.s32.totalorder %s15, 0
    %p63 = por %p61, %p62
    %s65 = sadd.s32 %s64, 1
    %p68 = scmp.eq.s32.totalorder %s9, 1
    %p69 = scmp.ne.s32.totalorder %s64, %s66
    %p70 = scmp.eq.s32.totalorder %s9, 0
    %p71 = por %p69, %p70
    %p72 = scmp.ne.s32.totalorder %s64, %s66
    %p73 = scmp.eq.s32.totalorder %s14, 1
    %p74 = por %p72, %p73
    %p75 = scmp.ne.s32.totalorder %s66, %s67
    %p76 = scmp.eq.s32.totalorder %s14, 0
    %p77 = por %p75, %p76
    %p78 = scmp.ne.s32.totalorder %s66, %s67
    %p79 = scmp.eq.s32.totalorder %s15, 1
    %p80 = por %p78, %p79
    %p82 = scmp.ne.s32.totalorder %s67, %s81
    %p83 = scmp.eq.s32.totalorder %s15, 0
    %p84 = por %p82, %p83
    %s85 = ssub.s32 %s9, %s16
    %p86 = scmp.eq.s32.totalorder %s85, 0
    %s88 = sadd.s32 %s87, 1
    %s89 = scalar_select %p86, %s87, %s88
    %p92 = pneg %p86
    %p93 = scmp.eq.s32.totalorder %s9, 1
    %p94 = por %p92, %p93
    %p95 = scmp.ne.s32.totalorder %s87, %s90
    %p96 = scmp.eq.s32.totalorder %s9, 0
    %p97 = por %p95, %p96
    %p98 = scmp.ne.s32.totalorder %s87, %s90
    %p99 = scmp.eq.s32.totalorder %s14, 1
    %p100 = por %p98, %p99
    %p101 = scmp.ne.s32.totalorder %s90, %s91
    %p102 = scmp.eq.s32.totalorder %s14, 0
    %p103 = por %p101, %p102
    %p104 = scmp.ne.s32.totalorder %s90, %s91
    %p105 = scmp.eq.s32.totalorder %s15, 1
    %p106 = por %p104, %p105
    %p108 = scmp.ne.s32.totalorder %s91, %s107
    %p109 = scmp.eq.s32.totalorder %s15, 0
    %p110 = por %p108, %p109
    %p111 = scmp.le.s32.totalorder 1, %s9
    %p112 = scmp.lt.s32.totalorder %s9, 3
    %p113 = pnand %p111, %p112
    %p114 = pneg %p113
    // Predicated region
    $region9: #{convnet_forward.4} parent=5 // pred_check
      _
    $region10: #{convnet_forward.4} parent=5 // pred_check_branch
      %116 = sbr.rel (%p113) target = $region12
    $region11: #{convnet_forward.4} parent=5 // pred_region
      %s117 = ssub.s32 %s9, 1
      // Predicated region
      $region13: #{convnet_forward.4} parent=11 // pred_check
        %p118 = pneg %p56
      $region14: #{convnet_forward.4} parent=11 // pred_check_branch
        %120 = sbr.rel (%p118) target = $region16
      $region15: #{convnet_forward.4} parent=11 // pred_region
        _
      $region16: #{convnet_forward.4} parent=11 // pred_fallthru
        _
      // Predicated region
      $region17: #{convnet_forward.4} parent=11 // pred_check
        %p121 = pneg %p77
      $region18: #{convnet_forward.4} parent=11 // pred_check_branch
        %123 = sbr.rel (%p121) target = $region20
      $region19: #{convnet_forward.4} parent=11 // pred_region
        _
      $region20: #{convnet_forward.4} parent=11 // pred_fallthru
        _
    $region12: #{convnet_forward.4} parent=5 // pred_fallthru
      _
    %p124 = scmp.lt.s32.totalorder %s9, 2
    // Predicated region
    $region21: #{convnet_forward.4} parent=5 // pred_check
      %p125 = pneg %p124
    $region22: #{convnet_forward.4} parent=5 // pred_check_branch
      %127 = sbr.rel (%p125) target = $region24
    $region23: #{convnet_forward.4} parent=5 // pred_region
      // Predicated region
      $region25: #{convnet_forward.4} parent=23 // pred_check
        %p128 = pneg %p29
      $region26: #{convnet_forward.4} parent=23 // pred_check_branch
        %130 = sbr.rel (%p128) target = $region28
      $region27: #{convnet_forward.4} parent=23 // pred_region
        %p131 = scmp.lt.s32.totalorder %s9, 1
        %s132 = scalar_select %p131, %s9, 1
        %s133 = smul.addr %s132, 112
        %s134 = smul.addr %s133, 4
        %s135 = scalar_lea.vmem %s0, %s134
      $region28: #{convnet_forward.4} parent=23 // pred_fallthru
        _
    $region24: #{convnet_forward.4} parent=5 // pred_fallthru
      _
    %p136 = scmp.le.s32.totalorder 1, %s9
    %p137 = scmp.lt.s32.totalorder %s9, 3
    %p138 = pnand %p136, %p137
    %p139 = pneg %p138
    // Predicated region
    $region29: #{convnet_forward.4} parent=5 // pred_check
      _
    $region30: #{convnet_forward.4} parent=5 // pred_check_branch
      %141 = sbr.rel (%p138) target = $region32
    $region31: #{convnet_forward.4} parent=5 // pred_region
      %s142 = ssub.s32 %s9, 1
      %p143 = scmp.lt.s32.totalorder %s14, 1
      %s144 = scalar_select %p143, %s14, 1
      %s145 = smul.addr %s144, 112
      %s146 = smul.addr %s145, 4
      %s147 = scalar_lea.vmem %s0, %s146
      %p148 = pneg %p35
      %p149 = pneg %p32
      %p150 = pneg %p56
      %p151 = pneg %p53
      %p152 = pneg %p77
      %p153 = pneg %p74
      %p154 = pneg %p103
      %p155 = pneg %p100
      %p156 = scmp.lt.s32.totalorder %s14, 1
      %s157 = scalar_select %p156, %s14, 1
      %s158 = smul.addr %s157, 7
      %s159 = smul.addr %s158, 4
      %s160 = scalar_lea.vmem %s3, %s159
      %p161 = scmp.lt.s32.totalorder %s14, 1
      %s162 = scalar_select %p161, %s14, 1
      %s163 = smul.addr %s162, 112
      %s164 = smul.addr %s163, 4
      %s165 = scalar_lea.vmem %s0, %s164
      %p166 = scmp.lt.s32.totalorder %s14, 1
      %s167 = scalar_select %p166, %s14, 1
      %s168 = smul.addr %s167, 7
      %s169 = smul.addr %s168, 4
      %s170 = scalar_lea.vmem %s3, %s169
      %v172 = vld [vmem:[%s1] sm:$0xf]
      %v173 = vld [vmem:[%s1 + $0x4] sm:$0xf]
      %v174 = vld [vmem:[%s1 + $0x8] sm:$0xf]
      %v175 = vld [vmem:[%s1 + $0xc] sm:$0xf]
      %v176 = vld [vmem:[%s1 + $0x10] sm:$0xf]
      %v177 = vld [vmem:[%s1 + $0x14] sm:$0xf]
      %v178 = vld [vmem:[%s1 + $0x18] sm:$0xf]
      %v179 = vld [vmem:[%s1 + $0x1c] sm:$0xf]
      %v180 = vld [vmem:[%s1 + $0x20] sm:$0xf]
      %v181 = vld [vmem:[%s1 + $0x24] sm:$0xf]
      %v182 = vld [vmem:[%s1 + $0x28] sm:$0xf]
      %v183 = vld [vmem:[%s1 + $0x2c] sm:$0xf]
      %v184 = vld [vmem:[%s1 + $0x30] sm:$0xf]
      %v185 = vld [vmem:[%s1 + $0x34] sm:$0xf]
      %v186 = vld [vmem:[%s1 + $0x38] sm:$0xf]
      %v187 = vld [vmem:[%s1 + $0x3c] sm:$0xf]
      %v188 = vld [vmem:[%s1 + $0x40] sm:$0xf]
      %v189 = vld [vmem:[%s1 + $0x44] sm:$0xf]
      %v190 = vld [vmem:[%s1 + $0x48] sm:$0xf]
      %v191 = vld [vmem:[%s1 + $0x4c] sm:$0xf]
      %v192 = vld [vmem:[%s1 + $0x50] sm:$0xf]
      %v193 = vld [vmem:[%s1 + $0x54] sm:$0xf]
      %v194 = vld [vmem:[%s1 + $0x58] sm:$0xf]
      %v195 = vld [vmem:[%s1 + $0x5c] sm:$0xf]
      %v196 = vld [vmem:[%s1 + $0x60] sm:$0xf]
      %v197 = vld [vmem:[%s1 + $0x64] sm:$0xf]
      %v198 = vld [vmem:[%s1 + $0x68] sm:$0xf]
      %v199 = vld [vmem:[%s1 + $0x6c] sm:$0xf]
      %v200 = vld [vmem:[%s1 + $0x70] sm:$0xf]
      %v201 = vld [vmem:[%s1 + $0x74] sm:$0xf]
      %v202 = vld [vmem:[%s1 + $0x78] sm:$0xf]
      %v203 = vld [vmem:[%s1 + $0x7c] sm:$0xf]
      %v204 = vld [vmem:[%s1 + $0x80] sm:$0xf]
      %v205 = vld [vmem:[%s1 + $0x84] sm:$0xf]
      %v206 = vld [vmem:[%s1 + $0x88] sm:$0xf]
      %v207 = vld [vmem:[%s1 + $0x8c] sm:$0xf]
      %v208 = vld [vmem:[%s1 + $0x90] sm:$0xf]
      %v209 = vld [vmem:[%s1 + $0x94] sm:$0xf]
      %v210 = vld [vmem:[%s1 + $0x98] sm:$0xf]
      %v211 = vld [vmem:[%s1 + $0x9c] sm:$0xf]
      %v212 = vld [vmem:[%s1 + $0xa0] sm:$0xf]
      %v213 = vld [vmem:[%s1 + $0xa4] sm:$0xf]
      %v214 = vld [vmem:[%s1 + $0xa8] sm:$0xf]
      %v215 = vld [vmem:[%s1 + $0xac] sm:$0xf]
      %v216 = vld [vmem:[%s1 + $0xb0] sm:$0xf]
      %v217 = vld [vmem:[%s1 + $0xb4] sm:$0xf]
      %v218 = vld [vmem:[%s1 + $0xb8] sm:$0xf]
      %v219 = vld [vmem:[%s1 + $0xbc] sm:$0xf]
      %v220 = vld [vmem:[%s1 + $0xc0] sm:$0xf]
      %v221 = vld [vmem:[%s1 + $0xc4] sm:$0xf]
      %v222 = vld [vmem:[%s2] sm:$0x1]
      %v223 = vld [vmem:[%s165] sm:$0xff]
      %v224 = vld [vmem:[%s165 + $0x8] sm:$0xff]
      %v225 = vld [vmem:[%s165 + $0x10] sm:$0xff]
      %v226 = vld [vmem:[%s165 + $0x18] sm:$0xff]
      %v227 = vld [vmem:[%s165 + $0x20] sm:$0xff]
      %v228 = vld [vmem:[%s165 + $0x28] sm:$0xff]
      %v229 = vld [vmem:[%s165 + $0x30] sm:$0xff]
      %v230 = vld [vmem:[%s165 + $0x38] sm:$0xff]
      %v231 = vld [vmem:[%s165 + $0x40] sm:$0xff]
      %v232 = vld [vmem:[%s165 + $0x48] sm:$0xff]
      %v233 = vld [vmem:[%s165 + $0x50] sm:$0xff]
      %v234 = vld [vmem:[%s165 + $0x58] sm:$0xff]
      %v235 = vld [vmem:[%s165 + $0x60] sm:$0x11]
      %v236 = vld [vmem:[%s165 + $0x68] sm:$0x11]
      %v238 = vperm.slane %v222, 0
      %v254 = vunpack.c.l.b16 %v223
      %v255 = vunpack.c.h.b16 %v223
      %v256 = vunpack.c.l.b16 %v224
      %v257 = vunpack.c.h.b16 %v224
      %v258 = vunpack.c.l.b16 %v225
      %v259 = vunpack.c.h.b16 %v225
      %v260 = vunpack.c.l.b16 %v226
      %v261 = vunpack.c.h.b16 %v226
      %v262 = vunpack.c.l.b16 %v227
      %v263 = vunpack.c.h.b16 %v227
      %v264 = vunpack.c.l.b16 %v228
      %v265 = vunpack.c.h.b16 %v228
      %v266 = vunpack.c.l.b16 %v229
      %v267 = vunpack.c.h.b16 %v229
      %v268 = vunpack.c.l.b16 %v230
      %v269 = vunpack.c.h.b16 %v230
      %v270 = vunpack.c.l.b16 %v231
      %v271 = vunpack.c.h.b16 %v231
      %v272 = vunpack.c.l.b16 %v232
      %v273 = vunpack.c.h.b16 %v232
      %v274 = vunpack.c.l.b16 %v233
      %v275 = vunpack.c.h.b16 %v233
      %v276 = vunpack.c.l.b16 %v234
      %v277 = vunpack.c.h.b16 %v234
      %v278 = vunpack.c.l.b16 %v235
      %v279 = vunpack.c.h.b16 %v235
      %v280 = vunpack.c.l.b16 %v236
      %v281 = vunpack.c.h.b16 %v236
      %v282 = vpack.c.b16 %v258, %v254
      %v283 = vpack.c.b16 %v259, %v255
      %v284 = vpack.c.b16 %v260, %v256
      %v285 = vpack.c.b16 %v261, %v257
      %v286 = vpack.c.b16 %v266, %v262
      %v287 = vpack.c.b16 %v267, %v263
      %v288 = vpack.c.b16 %v268, %v264
      %v289 = vpack.c.b16 %v269, %v265
      %v290 = vpack.c.b16 %v274, %v270
      %v291 = vpack.c.b16 %v275, %v271
      %v292 = vpack.c.b16 %v276, %v272
      %v293 = vpack.c.b16 %v277, %v273
      %v294 = vpack.c.b16 %v278, %v278
      %v295 = vpack.c.b16 %v279, %v279
      %v296 = vpack.c.b16 %v280, %v280
      %v297 = vpack.c.b16 %v281, %v281
      %v360 = vunpack.c.l.b16 %v172
      %v361 = vunpack.c.l.b16 %v173
      %v362 = vunpack.c.l.b16 %v174
      %v363 = vunpack.c.l.b16 %v175
      %v364 = vunpack.c.l.b16 %v176
      %v365 = vunpack.c.l.b16 %v177
      %v366 = vunpack.c.l.b16 %v178
      %v367 = vunpack.c.l.b16 %v179
      %v368 = vunpack.c.l.b16 %v180
      %v369 = vunpack.c.l.b16 %v181
      %v370 = vunpack.c.l.b16 %v182
      %v371 = vunpack.c.l.b16 %v183
      %v372 = vunpack.c.l.b16 %v184
      %v373 = vunpack.c.l.b16 %v185
      %v374 = vunpack.c.l.b16 %v186
      %v375 = vunpack.c.l.b16 %v187
      %v376 = vunpack.c.l.b16 %v188
      %v377 = vunpack.c.l.b16 %v189
      %v378 = vunpack.c.l.b16 %v190
      %v379 = vunpack.c.l.b16 %v191
      %v380 = vunpack.c.l.b16 %v192
      %v381 = vunpack.c.l.b16 %v193
      %v382 = vunpack.c.l.b16 %v194
      %v383 = vunpack.c.l.b16 %v195
      %v384 = vunpack.c.l.b16 %v196
      %v385 = vunpack.c.l.b16 %v197
      %v386 = vunpack.c.l.b16 %v198
      %v387 = vunpack.c.l.b16 %v199
      %v388 = vunpack.c.l.b16 %v200
      %v389 = vunpack.c.l.b16 %v201
      %v390 = vunpack.c.l.b16 %v202
      %v391 = vunpack.c.l.b16 %v203
      %v392 = vunpack.c.l.b16 %v204
      %v393 = vunpack.c.l.b16 %v205
      %v394 = vunpack.c.l.b16 %v206
      %v395 = vunpack.c.l.b16 %v207
      %v396 = vunpack.c.l.b16 %v208
      %v397 = vunpack.c.l.b16 %v209
      %v398 = vunpack.c.l.b16 %v210
      %v399 = vunpack.c.l.b16 %v211
      %v400 = vunpack.c.l.b16 %v212
      %v401 = vunpack.c.l.b16 %v213
      %v402 = vunpack.c.l.b16 %v214
      %v403 = vunpack.c.l.b16 %v215
      %v404 = vunpack.c.l.b16 %v216
      %v405 = vunpack.c.l.b16 %v217
      %v406 = vunpack.c.l.b16 %v218
      %v407 = vunpack.c.l.b16 %v219
      %v408 = vunpack.c.l.b16 %v220
      %v409 = vunpack.c.l.b16 %v221
      %v410 = vpack.c.b16 %v361, %v360
      %v411 = vpack.c.b16 %v363, %v362
      %v412 = vpack.c.b16 %v365, %v364
      %v413 = vpack.c.b16 %v367, %v366
      %v414 = vpack.c.b16 %v369, %v368
      %v415 = vpack.c.b16 %v371, %v370
      %v416 = vpack.c.b16 %v373, %v372
      %v417 = vpack.c.b16 %v375, %v374
      %v418 = vpack.c.b16 %v377, %v376
      %v419 = vpack.c.b16 %v379, %v378
      %v420 = vpack.c.b16 %v381, %v380
      %v421 = vpack.c.b16 %v383, %v382
      %v422 = vpack.c.b16 %v385, %v384
      %v423 = vpack.c.b16 %v387, %v386
      %v424 = vpack.c.b16 %v389, %v388
      %v425 = vpack.c.b16 %v391, %v390
      %v426 = vpack.c.b16 %v393, %v392
      %v427 = vpack.c.b16 %v395, %v394
      %v428 = vpack.c.b16 %v397, %v396
      %v429 = vpack.c.b16 %v399, %v398
      %v430 = vpack.c.b16 %v401, %v400
      %v431 = vpack.c.b16 %v403, %v402
      %v432 = vpack.c.b16 %v405, %v404
      %v433 = vpack.c.b16 %v407, %v406
      %v434 = vpack.c.b16 %v409, %v408
      %vm460 = vcmask 130048
      %v462 = vsel %vm460, %v285, 0
      %v465 = vsel %vm460, %v289, 0
      %v468 = vsel %vm460, %v293, 0
      %v471 = vsel %vm460, %v297, 0
      %473 = vmatpush.bf16.msra.mxu0 %v417
      %474 = vmatpush.bf16.msra.mxu0 %v416
      %475 = vmatpush.bf16.msra.mxu0 %v415
      %476 = vmatpush.bf16.msra.mxu0 %v414
      %477 = vmatpush.bf16.msra.mxu0 %v413
      %478 = vmatpush.bf16.msra.mxu0 %v412
      %479 = vmatpush.bf16.msra.mxu0 %v411
      %480 = vmatpush.bf16.msra.mxu0 %v410
      %481 = vmatmul.bf16.gmra.mxu0 %v282
      %v482 = vpop.f32.mrf.mxu0
      %v483 = vadd.f32 %v238, %v482
      %v484 = vpop.f32.mrf.mxu0
      %v485 = vadd.f32 %v238, %v484
      %486 = vmatmul.bf16.gmra.mxu0 %v286
      %v487 = vpop.f32.mrf.mxu0
      %v488 = vadd.f32 %v238, %v487
      %v489 = vpop.f32.mrf.mxu0
      %v490 = vadd.f32 %v238, %v489
      %491 = vmatmul.bf16.gmra.mxu0 %v290
      %v492 = vpop.f32.mrf.mxu0
      %v493 = vadd.f32 %v238, %v492
      %v494 = vpop.f32.mrf.mxu0
      %v495 = vadd.f32 %v238, %v494
      %496 = vmatmul.bf16.gmra.mxu0 %v294
      %v497 = vpop.f32.mrf.mxu0
      %v498 = vadd.f32 %v238, %v497
      %v499 = vpop.f32.mrf.mxu0
      %500 = vdwg.mxu0
      %501 = vmatpush.bf16.msra.mxu0 %v425
      %502 = vmatpush.bf16.msra.mxu0 %v424
      %503 = vmatpush.bf16.msra.mxu0 %v423
      %504 = vmatpush.bf16.msra.mxu0 %v422
      %505 = vmatpush.bf16.msra.mxu0 %v421
      %506 = vmatpush.bf16.msra.mxu0 %v420
      %507 = vmatpush.bf16.msra.mxu0 %v419
      %508 = vmatpush.bf16.msra.mxu0 %v418
      %509 = vmatmul.bf16.gmra.mxu0 %v283
      %v510 = vpop.f32.mrf.mxu0
      %v511 = vadd.f32 %v483, %v510
      %v512 = vpop.f32.mrf.mxu0
      %v513 = vadd.f32 %v485, %v512
      %514 = vmatmul.bf16.gmra.mxu0 %v287
      %v515 = vpop.f32.mrf.mxu0
      %v516 = vadd.f32 %v488, %v515
      %v517 = vpop.f32.mrf.mxu0
      %v518 = vadd.f32 %v490, %v517
      %519 = vmatmul.bf16.gmra.mxu0 %v291
      %v520 = vpop.f32.mrf.mxu0
      %v521 = vadd.f32 %v493, %v520
      %v522 = vpop.f32.mrf.mxu0
      %v523 = vadd.f32 %v495, %v522
      %524 = vmatmul.bf16.gmra.mxu0 %v295
      %v525 = vpop.f32.mrf.mxu0
      %v526 = vadd.f32 %v498, %v525
      %v527 = vpop.f32.mrf.mxu0
      %528 = vdwg.mxu0
      %529 = vmatpush.bf16.msra.mxu0 %v433
      %530 = vmatpush.bf16.msra.mxu0 %v432
      %531 = vmatpush.bf16.msra.mxu0 %v431
      %532 = vmatpush.bf16.msra.mxu0 %v430
      %533 = vmatpush.bf16.msra.mxu0 %v429
      %534 = vmatpush.bf16.msra.mxu0 %v428
      %535 = vmatpush.bf16.msra.mxu0 %v427
      %536 = vmatpush.bf16.msra.mxu0 %v426
      %537 = vmatmul.bf16.gmra.mxu0 %v284
      %v538 = vpop.f32.mrf.mxu0
      %v539 = vadd.f32 %v511, %v538
      %v540 = vpop.f32.mrf.mxu0
      %v541 = vadd.f32 %v513, %v540
      %542 = vmatmul.bf16.gmra.mxu0 %v288
      %v543 = vpop.f32.mrf.mxu0
      %v544 = vadd.f32 %v516, %v543
      %v545 = vpop.f32.mrf.mxu0
      %v546 = vadd.f32 %v518, %v545
      %547 = vmatmul.bf16.gmra.mxu0 %v292
      %v548 = vpop.f32.mrf.mxu0
      %v549 = vadd.f32 %v521, %v548
      %v550 = vpop.f32.mrf.mxu0
      %v551 = vadd.f32 %v523, %v550
      %552 = vmatmul.bf16.gmra.mxu0 %v296
      %v553 = vpop.f32.mrf.mxu0
      %v554 = vadd.f32 %v526, %v553
      %v555 = vpop.f32.mrf.mxu0
      %556 = vdwg.mxu0
      %557 = vmatpush.bf16.msra.mxu0 0
      %558 = vmatpush.bf16.msra.mxu0 0
      %559 = vmatpush.bf16.msra.mxu0 0
      %560 = vmatpush.bf16.msra.mxu0 0
      %561 = vmatpush.bf16.msra.mxu0 0
      %562 = vmatpush.bf16.msra.mxu0 0
      %563 = vmatpush.bf16.msra.mxu0 0
      %564 = vmatpush.bf16.msra.mxu0 %v434
      %565 = vmatmul.bf16.gmra.mxu0 %v462
      %v566 = vpop.f32.mrf.mxu0
      %v567 = vadd.f32 %v539, %v566
      %v568 = vpop.f32.mrf.mxu0
      %v569 = vadd.f32 %v541, %v568
      %570 = vmatmul.bf16.gmra.mxu0 %v465
      %v571 = vpop.f32.mrf.mxu0
      %v572 = vadd.f32 %v544, %v571
      %v573 = vpop.f32.mrf.mxu0
      %v574 = vadd.f32 %v546, %v573
      %575 = vmatmul.bf16.gmra.mxu0 %v468
      %v576 = vpop.f32.mrf.mxu0
      %v577 = vadd.f32 %v549, %v576
      %v578 = vpop.f32.mrf.mxu0
      %v579 = vadd.f32 %v551, %v578
      %580 = vmatmul.bf16.gmra.mxu0 %v471
      %v581 = vpop.f32.mrf.mxu0
      %v582 = vadd.f32 %v554, %v581
      %v583 = vpop.f32.mrf.mxu0
      %584 = vdwg.mxu0
      %v585 = vmax.f32 %v567, 0.0
      %v586 = vmax.f32 %v569, 0.0
      %v587 = vmax.f32 %v572, 0.0
      %v588 = vmax.f32 %v574, 0.0
      %v589 = vmax.f32 %v577, 0.0
      %v590 = vmax.f32 %v579, 0.0
      %v591 = vmax.f32 %v582, 0.0
      %s592 = scalar_lea.vmem %s165, 112
      %v593 = vld [vmem:[%s592] sm:$0xff]
      %v594 = vld [vmem:[%s592 + $0x8] sm:$0xff]
      %v595 = vld [vmem:[%s592 + $0x10] sm:$0xff]
      %v596 = vld [vmem:[%s592 + $0x18] sm:$0xff]
      %v597 = vld [vmem:[%s592 + $0x20] sm:$0xff]
      %v598 = vld [vmem:[%s592 + $0x28] sm:$0xff]
      %v599 = vld [vmem:[%s592 + $0x30] sm:$0xff]
      %v600 = vld [vmem:[%s592 + $0x38] sm:$0xff]
      %v601 = vld [vmem:[%s592 + $0x40] sm:$0xff]
      %v602 = vld [vmem:[%s592 + $0x48] sm:$0xff]
      %v603 = vld [vmem:[%s592 + $0x50] sm:$0xff]
      %v604 = vld [vmem:[%s592 + $0x58] sm:$0xff]
      %v605 = vld [vmem:[%s592 + $0x60] sm:$0x11]
      %v606 = vld [vmem:[%s592 + $0x68] sm:$0x11]
      %v621 = vunpack.c.l.b16 %v593
      %v622 = vunpack.c.h.b16 %v593
      %v623 = vunpack.c.l.b16 %v594
      %v624 = vunpack.c.h.b16 %v594
      %v625 = vunpack.c.l.b16 %v595
      %v626 = vunpack.c.h.b16 %v595
      %v627 = vunpack.c.l.b16 %v596
      %v628 = vunpack.c.h.b16 %v596
      %v629 = vunpack.c.l.b16 %v597
      %v630 = vunpack.c.h.b16 %v597
      %v631 = vunpack.c.l.b16 %v598
      %v632 = vunpack.c.h.b16 %v598
      %v633 = vunpack.c.l.b16 %v599
      %v634 = vunpack.c.h.b16 %v599
      %v635 = vunpack.c.l.b16 %v600
      %v636 = vunpack.c.h.b16 %v600
      %v637 = vunpack.c.l.b16 %v601
      %v638 = vunpack.c.h.b16 %v601
      %v639 = vunpack.c.l.b16 %v602
      %v640 = vunpack.c.h.b16 %v602
      %v641 = vunpack.c.l.b16 %v603
      %v642 = vunpack.c.h.b16 %v603
      %v643 = vunpack.c.l.b16 %v604
      %v644 = vunpack.c.h.b16 %v604
      %v645 = vunpack.c.l.b16 %v605
      %v646 = vunpack.c.h.b16 %v605
      %v647 = vunpack.c.l.b16 %v606
      %v648 = vunpack.c.h.b16 %v606
      %v649 = vpack.c.b16 %v625, %v621
      %v650 = vpack.c.b16 %v626, %v622
      %v651 = vpack.c.b16 %v627, %v623
      %v652 = vpack.c.b16 %v628, %v624
      %v653 = vpack.c.b16 %v633, %v629
      %v654 = vpack.c.b16 %v634, %v630
      %v655 = vpack.c.b16 %v635, %v631
      %v656 = vpack.c.b16 %v636, %v632
      %v657 = vpack.c.b16 %v641, %v637
      %v658 = vpack.c.b16 %v642, %v638
      %v659 = vpack.c.b16 %v643, %v639
      %v660 = vpack.c.b16 %v644, %v640
      %v661 = vpack.c.b16 %v645, %v645
      %v662 = vpack.c.b16 %v646, %v646
      %v663 = vpack.c.b16 %v647, %v647
      %v664 = vpack.c.b16 %v648, %v648
      %v678 = vsel %vm460, %v652, 0
      %v681 = vsel %vm460, %v656, 0
      %v684 = vsel %vm460, %v660, 0
      %v687 = vsel %vm460, %v664, 0
      %689 = vmatpush.bf16.msra.mxu0 %v417
      %690 = vmatpush.bf16.msra.mxu0 %v416
      %691 = vmatpush.bf16.msra.mxu0 %v415
      %692 = vmatpush.bf16.msra.mxu0 %v414
      %693 = vmatpush.bf16.msra.mxu0 %v413
      %694 = vmatpush.bf16.msra.mxu0 %v412
      %695 = vmatpush.bf16.msra.mxu0 %v411
      %696 = vmatpush.bf16.msra.mxu0 %v410
      %697 = vmatmul.bf16.gmra.mxu0 %v649
      %v698 = vpop.f32.mrf.mxu0
      %v699 = vadd.f32 %v238, %v698
      %v700 = vpop.f32.mrf.mxu0
      %v701 = vadd.f32 %v238, %v700
      %702 = vmatmul.bf16.gmra.mxu0 %v653
      %v703 = vpop.f32.mrf.mxu0
      %v704 = vadd.f32 %v238, %v703
      %v705 = vpop.f32.mrf.mxu0
      %v706 = vadd.f32 %v238, %v705
      %707 = vmatmul.bf16.gmra.mxu0 %v657
      %v708 = vpop.f32.mrf.mxu0
      %v709 = vadd.f32 %v238, %v708
      %v710 = vpop.f32.mrf.mxu0
      %v711 = vadd.f32 %v238, %v710
      %712 = vmatmul.bf16.gmra.mxu0 %v661
      %v713 = vpop.f32.mrf.mxu0
      %v714 = vadd.f32 %v238, %v713
      %v715 = vpop.f32.mrf.mxu0
      %716 = vdwg.mxu0
      %717 = vmatpush.bf16.msra.mxu0 %v425
      %718 = vmatpush.bf16.msra.mxu0 %v424
      %719 = vmatpush.bf16.msra.mxu0 %v423
      %720 = vmatpush.bf16.msra.mxu0 %v422
      %721 = vmatpush.bf16.msra.mxu0 %v421
      %722 = vmatpush.bf16.msra.mxu0 %v420
      %723 = vmatpush.bf16.msra.mxu0 %v419
      %724 = vmatpush.bf16.msra.mxu0 %v418
      %725 = vmatmul.bf16.gmra.mxu0 %v650
      %v726 = vpop.f32.mrf.mxu0
      %v727 = vadd.f32 %v699, %v726
      %v728 = vpop.f32.mrf.mxu0
      %v729 = vadd.f32 %v701, %v728
      %730 = vmatmul.bf16.gmra.mxu0 %v654
      %v731 = vpop.f32.mrf.mxu0
      %v732 = vadd.f32 %v704, %v731
      %v733 = vpop.f32.mrf.mxu0
      %v734 = vadd.f32 %v706, %v733
      %735 = vmatmul.bf16.gmra.mxu0 %v658
      %v736 = vpop.f32.mrf.mxu0
      %v737 = vadd.f32 %v709, %v736
      %v738 = vpop.f32.mrf.mxu0
      %v739 = vadd.f32 %v711, %v738
      %740 = vmatmul.bf16.gmra.mxu0 %v662
      %v741 = vpop.f32.mrf.mxu0
      %v742 = vadd.f32 %v714, %v741
      %v743 = vpop.f32.mrf.mxu0
      %744 = vdwg.mxu0
      %745 = vmatpush.bf16.msra.mxu0 %v433
      %746 = vmatpush.bf16.msra.mxu0 %v432
      %747 = vmatpush.bf16.msra.mxu0 %v431
      %748 = vmatpush.bf16.msra.mxu0 %v430
      %749 = vmatpush.bf16.msra.mxu0 %v429
      %750 = vmatpush.bf16.msra.mxu0 %v428
      %751 = vmatpush.bf16.msra.mxu0 %v427
      %752 = vmatpush.bf16.msra.mxu0 %v426
      %753 = vmatmul.bf16.gmra.mxu0 %v651
      %v754 = vpop.f32.mrf.mxu0
      %v755 = vadd.f32 %v727, %v754
      %v756 = vpop.f32.mrf.mxu0
      %v757 = vadd.f32 %v729, %v756
      %758 = vmatmul.bf16.gmra.mxu0 %v655
      %v759 = vpop.f32.mrf.mxu0
      %v760 = vadd.f32 %v732, %v759
      %v761 = vpop.f32.mrf.mxu0
      %v762 = vadd.f32 %v734, %v761
      %763 = vmatmul.bf16.gmra.mxu0 %v659
      %v764 = vpop.f32.mrf.mxu0
      %v765 = vadd.f32 %v737, %v764
      %v766 = vpop.f32.mrf.mxu0
      %v767 = vadd.f32 %v739, %v766
      %768 = vmatmul.bf16.gmra.mxu0 %v663
      %v769 = vpop.f32.mrf.mxu0
      %v770 = vadd.f32 %v742, %v769
      %v771 = vpop.f32.mrf.mxu0
      %772 = vdwg.mxu0
      %773 = vmatpush.bf16.msra.mxu0 0
      %774 = vmatpush.bf16.msra.mxu0 0
      %775 = vmatpush.bf16.msra.mxu0 0
      %776 = vmatpush.bf16.msra.mxu0 0
      %777 = vmatpush.bf16.msra.mxu0 0
      %778 = vmatpush.bf16.msra.mxu0 0
      %779 = vmatpush.bf16.msra.mxu0 0
      %780 = vmatpush.bf16.msra.mxu0 %v434
      %781 = vmatmul.bf16.gmra.mxu0 %v678
      %v782 = vpop.f32.mrf.mxu0
      %v783 = vadd.f32 %v755, %v782
      %v784 = vpop.f32.mrf.mxu0
      %v785 = vadd.f32 %v757, %v784
      %786 = vmatmul.bf16.gmra.mxu0 %v681
      %v787 = vpop.f32.mrf.mxu0
      %v788 = vadd.f32 %v760, %v787
      %v789 = vpop.f32.mrf.mxu0
      %v790 = vadd.f32 %v762, %v789
      %791 = vmatmul.bf16.gmra.mxu0 %v684
      %v792 = vpop.f32.mrf.mxu0
      %v793 = vadd.f32 %v765, %v792
      %v794 = vpop.f32.mrf.mxu0
      %v795 = vadd.f32 %v767, %v794
      %796 = vmatmul.bf16.gmra.mxu0 %v687
      %v797 = vpop.f32.mrf.mxu0
      %v798 = vadd.f32 %v770, %v797
      %v799 = vpop.f32.mrf.mxu0
      %800 = vdwg.mxu0
      %v801 = vmax.f32 %v783, 0.0
      %v802 = vmax.f32 %v785, 0.0
      %v803 = vmax.f32 %v788, 0.0
      %v804 = vmax.f32 %v790, 0.0
      %v805 = vmax.f32 %v793, 0.0
      %v806 = vmax.f32 %v795, 0.0
      %v807 = vmax.f32 %v798, 0.0
      %v808 = vmax.f32 %v585, %v801
      %v809 = vmax.f32 %v586, %v802
      %v810 = vmax.f32 %v587, %v803
      %v811 = vmax.f32 %v588, %v804
      %v812 = vmax.f32 %v589, %v805
      %v813 = vmax.f32 %v590, %v806
      %v814 = vmax.f32 %v591, %v807
      %s815 = scalar_lea.vmem %s165, 224
      %v816 = vld [vmem:[%s815] sm:$0xff]
      %v817 = vld [vmem:[%s815 + $0x8] sm:$0xff]
      %v818 = vld [vmem:[%s815 + $0x10] sm:$0xff]
      %v819 = vld [vmem:[%s815 + $0x18] sm:$0xff]
      %v820 = vld [vmem:[%s815 + $0x20] sm:$0xff]
      %v821 = vld [vmem:[%s815 + $0x28] sm:$0xff]
      %v822 = vld [vmem:[%s815 + $0x30] sm:$0xff]
      %v823 = vld [vmem:[%s815 + $0x38] sm:$0xff]
      %v824 = vld [vmem:[%s815 + $0x40] sm:$0xff]
      %v825 = vld [vmem:[%s815 + $0x48] sm:$0xff]
      %v826 = vld [vmem:[%s815 + $0x50] sm:$0xff]
      %v827 = vld [vmem:[%s815 + $0x58] sm:$0xff]
      %v828 = vld [vmem:[%s815 + $0x60] sm:$0x11]
      %v829 = vld [vmem:[%s815 + $0x68] sm:$0x11]
      %v844 = vunpack.c.l.b16 %v816
      %v845 = vunpack.c.h.b16 %v816
      %v846 = vunpack.c.l.b16 %v817
      %v847 = vunpack.c.h.b16 %v817
      %v848 = vunpack.c.l.b16 %v818
      %v849 = vunpack.c.h.b16 %v818
      %v850 = vunpack.c.l.b16 %v819
      %v851 = vunpack.c.h.b16 %v819
      %v852 = vunpack.c.l.b16 %v820
      %v853 = vunpack.c.h.b16 %v820
      %v854 = vunpack.c.l.b16 %v821
      %v855 = vunpack.c.h.b16 %v821
      %v856 = vunpack.c.l.b16 %v822
      %v857 = vunpack.c.h.b16 %v822
      %v858 = vunpack.c.l.b16 %v823
      %v859 = vunpack.c.h.b16 %v823
      %v860 = vunpack.c.l.b16 %v824
      %v861 = vunpack.c.h.b16 %v824
      %v862 = vunpack.c.l.b16 %v825
      %v863 = vunpack.c.h.b16 %v825
      %v864 = vunpack.c.l.b16 %v826
      %v865 = vunpack.c.h.b16 %v826
      %v866 = vunpack.c.l.b16 %v827
      %v867 = vunpack.c.h.b16 %v827
      %v868 = vunpack.c.l.b16 %v828
      %v869 = vunpack.c.h.b16 %v828
      %v870 = vunpack.c.l.b16 %v829
      %v871 = vunpack.c.h.b16 %v829
      %v872 = vpack.c.b16 %v848, %v844
      %v873 = vpack.c.b16 %v849, %v845
      %v874 = vpack.c.b16 %v850, %v846
      %v875 = vpack.c.b16 %v851, %v847
      %v876 = vpack.c.b16 %v856, %v852
      %v877 = vpack.c.b16 %v857, %v853
      %v878 = vpack.c.b16 %v858, %v854
      %v879 = vpack.c.b16 %v859, %v855
      %v880 = vpack.c.b16 %v864, %v860
      %v881 = vpack.c.b16 %v865, %v861
      %v882 = vpack.c.b16 %v866, %v862
      %v883 = vpack.c.b16 %v867, %v863
      %v884 = vpack.c.b16 %v868, %v868
      %v885 = vpack.c.b16 %v869, %v869
      %v886 = vpack.c.b16 %v870, %v870
      %v887 = vpack.c.b16 %v871, %v871
      %v901 = vsel %vm460, %v875, 0
      %v904 = vsel %vm460, %v879, 0
      %v907 = vsel %vm460, %v883, 0
      %v910 = vsel %vm460, %v887, 0
      %912 = vmatpush.bf16.msra.mxu0 %v417
      %913 = vmatpush.bf16.msra.mxu0 %v416
      %914 = vmatpush.bf16.msra.mxu0 %v415
      %915 = vmatpush.bf16.msra.mxu0 %v414
      %916 = vmatpush.bf16.msra.mxu0 %v413
      %917 = vmatpush.bf16.msra.mxu0 %v412
      %918 = vmatpush.bf16.msra.mxu0 %v411
      %919 = vmatpush.bf16.msra.mxu0 %v410
      %920 = vmatmul.bf16.gmra.mxu0 %v872
      %v921 = vpop.f32.mrf.mxu0
      %v922 = vadd.f32 %v238, %v921
      %v923 = vpop.f32.mrf.mxu0
      %v924 = vadd.f32 %v238, %v923
      %925 = vmatmul.bf16.gmra.mxu0 %v876
      %v926 = vpop.f32.mrf.mxu0
      %v927 = vadd.f32 %v238, %v926
      %v928 = vpop.f32.mrf.mxu0
      %v929 = vadd.f32 %v238, %v928
      %930 = vmatmul.bf16.gmra.mxu0 %v880
      %v931 = vpop.f32.mrf.mxu0
      %v932 = vadd.f32 %v238, %v931
      %v933 = vpop.f32.mrf.mxu0
      %v934 = vadd.f32 %v238, %v933
      %935 = vmatmul.bf16.gmra.mxu0 %v884
      %v936 = vpop.f32.mrf.mxu0
      %v937 = vadd.f32 %v238, %v936
      %v938 = vpop.f32.mrf.mxu0
      %939 = vdwg.mxu0
      %940 = vmatpush.bf16.msra.mxu0 %v425
      %941 = vmatpush.bf16.msra.mxu0 %v424
      %942 = vmatpush.bf16.msra.mxu0 %v423
      %943 = vmatpush.bf16.msra.mxu0 %v422
      %944 = vmatpush.bf16.msra.mxu0 %v421
      %945 = vmatpush.bf16.msra.mxu0 %v420
      %946 = vmatpush.bf16.msra.mxu0 %v419
      %947 = vmatpush.bf16.msra.mxu0 %v418
      %948 = vmatmul.bf16.gmra.mxu0 %v873
      %v949 = vpop.f32.mrf.mxu0
      %v950 = vadd.f32 %v922, %v949
      %v951 = vpop.f32.mrf.mxu0
      %v952 = vadd.f32 %v924, %v951
      %953 = vmatmul.bf16.gmra.mxu0 %v877
      %v954 = vpop.f32.mrf.mxu0
      %v955 = vadd.f32 %v927, %v954
      %v956 = vpop.f32.mrf.mxu0
      %v957 = vadd.f32 %v929, %v956
      %958 = vmatmul.bf16.gmra.mxu0 %v881
      %v959 = vpop.f32.mrf.mxu0
      %v960 = vadd.f32 %v932, %v959
      %v961 = vpop.f32.mrf.mxu0
      %v962 = vadd.f32 %v934, %v961
      %963 = vmatmul.bf16.gmra.mxu0 %v885
      %v964 = vpop.f32.mrf.mxu0
      %v965 = vadd.f32 %v937, %v964
      %v966 = vpop.f32.mrf.mxu0
      %967 = vdwg.mxu0
      %968 = vmatpush.bf16.msra.mxu0 %v433
      %969 = vmatpush.bf16.msra.mxu0 %v432
      %970 = vmatpush.bf16.msra.mxu0 %v431
      %971 = vmatpush.bf16.msra.mxu0 %v430
      %972 = vmatpush.bf16.msra.mxu0 %v429
      %973 = vmatpush.bf16.msra.mxu0 %v428
      %974 = vmatpush.bf16.msra.mxu0 %v427
      %975 = vmatpush.bf16.msra.mxu0 %v426
      %976 = vmatmul.bf16.gmra.mxu0 %v874
      %v977 = vpop.f32.mrf.mxu0
      %v978 = vadd.f32 %v950, %v977
      %v979 = vpop.f32.mrf.mxu0
      %v980 = vadd.f32 %v952, %v979
      %981 = vmatmul.bf16.gmra.mxu0 %v878
      %v982 = vpop.f32.mrf.mxu0
      %v983 = vadd.f32 %v955, %v982
      %v984 = vpop.f32.mrf.mxu0
      %v985 = vadd.f32 %v957, %v984
      %986 = vmatmul.bf16.gmra.mxu0 %v882
      %v987 = vpop.f32.mrf.mxu0
      %v988 = vadd.f32 %v960, %v987
      %v989 = vpop.f32.mrf.mxu0
      %v990 = vadd.f32 %v962, %v989
      %991 = vmatmul.bf16.gmra.mxu0 %v886
      %v992 = vpop.f32.mrf.mxu0
      %v993 = vadd.f32 %v965, %v992
      %v994 = vpop.f32.mrf.mxu0
      %995 = vdwg.mxu0
      %996 = vmatpush.bf16.msra.mxu0 0
      %997 = vmatpush.bf16.msra.mxu0 0
      %998 = vmatpush.bf16.msra.mxu0 0
      %999 = vmatpush.bf16.msra.mxu0 0
      %1000 = vmatpush.bf16.msra.mxu0 0
      %1001 = vmatpush.bf16.msra.mxu0 0
      %1002 = vmatpush.bf16.msra.mxu0 0
      %1003 = vmatpush.bf16.msra.mxu0 %v434
      %1004 = vmatmul.bf16.gmra.mxu0 %v901
      %v1005 = vpop.f32.mrf.mxu0
      %v1006 = vadd.f32 %v978, %v1005
      %v1007 = vpop.f32.mrf.mxu0
      %v1008 = vadd.f32 %v980, %v1007
      %1009 = vmatmul.bf16.gmra.mxu0 %v904
      %v1010 = vpop.f32.mrf.mxu0
      %v1011 = vadd.f32 %v983, %v1010
      %v1012 = vpop.f32.mrf.mxu0
      %v1013 = vadd.f32 %v985, %v1012
      %1014 = vmatmul.bf16.gmra.mxu0 %v907
      %v1015 = vpop.f32.mrf.mxu0
      %v1016 = vadd.f32 %v988, %v1015
      %v1017 = vpop.f32.mrf.mxu0
      %v1018 = vadd.f32 %v990, %v1017
      %1019 = vmatmul.bf16.gmra.mxu0 %v910
      %v1020 = vpop.f32.mrf.mxu0
      %v1021 = vadd.f32 %v993, %v1020
      %v1022 = vpop.f32.mrf.mxu0
      %1023 = vdwg.mxu0
      %v1024 = vmax.f32 %v1006, 0.0
      %v1025 = vmax.f32 %v1008, 0.0
      %v1026 = vmax.f32 %v1011, 0.0
      %v1027 = vmax.f32 %v1013, 0.0
      %v1028 = vmax.f32 %v1016, 0.0
      %v1029 = vmax.f32 %v1018, 0.0
      %v1030 = vmax.f32 %v1021, 0.0
      %v1031 = vmax.f32 %v808, %v1024
      %v1032 = vmax.f32 %v809, %v1025
      %v1033 = vmax.f32 %v810, %v1026
      %v1034 = vmax.f32 %v811, %v1027
      %v1035 = vmax.f32 %v812, %v1028
      %v1036 = vmax.f32 %v813, %v1029
      %v1037 = vmax.f32 %v814, %v1030
      %s1038 = scalar_lea.vmem %s165, 336
      %v1039 = vld [vmem:[%s1038] sm:$0xff]
      %v1040 = vld [vmem:[%s1038 + $0x8] sm:$0xff]
      %v1041 = vld [vmem:[%s1038 + $0x10] sm:$0xff]
      %v1042 = vld [vmem:[%s1038 + $0x18] sm:$0xff]
      %v1043 = vld [vmem:[%s1038 + $0x20] sm:$0xff]
      %v1044 = vld [vmem:[%s1038 + $0x28] sm:$0xff]
      %v1045 = vld [vmem:[%s1038 + $0x30] sm:$0xff]
      %v1046 = vld [vmem:[%s1038 + $0x38] sm:$0xff]
      %v1047 = vld [vmem:[%s1038 + $0x40] sm:$0xff]
      %v1048 = vld [vmem:[%s1038 + $0x48] sm:$0xff]
      %v1049 = vld [vmem:[%s1038 + $0x50] sm:$0xff]
      %v1050 = vld [vmem:[%s1038 + $0x58] sm:$0xff]
      %v1051 = vld [vmem:[%s1038 + $0x60] sm:$0x11]
      %v1052 = vld [vmem:[%s1038 + $0x68] sm:$0x11]
      %v1067 = vunpack.c.l.b16 %v1039
      %v1068 = vunpack.c.h.b16 %v1039
      %v1069 = vunpack.c.l.b16 %v1040
      %v1070 = vunpack.c.h.b16 %v1040
      %v1071 = vunpack.c.l.b16 %v1041
      %v1072 = vunpack.c.h.b16 %v1041
      %v1073 = vunpack.c.l.b16 %v1042
      %v1074 = vunpack.c.h.b16 %v1042
      %v1075 = vunpack.c.l.b16 %v1043
      %v1076 = vunpack.c.h.b16 %v1043
      %v1077 = vunpack.c.l.b16 %v1044
      %v1078 = vunpack.c.h.b16 %v1044
      %v1079 = vunpack.c.l.b16 %v1045
      %v1080 = vunpack.c.h.b16 %v1045
      %v1081 = vunpack.c.l.b16 %v1046
      %v1082 = vunpack.c.h.b16 %v1046
      %v1083 = vunpack.c.l.b16 %v1047
      %v1084 = vunpack.c.h.b16 %v1047
      %v1085 = vunpack.c.l.b16 %v1048
      %v1086 = vunpack.c.h.b16 %v1048
      %v1087 = vunpack.c.l.b16 %v1049
      %v1088 = vunpack.c.h.b16 %v1049
      %v1089 = vunpack.c.l.b16 %v1050
      %v1090 = vunpack.c.h.b16 %v1050
      %v1091 = vunpack.c.l.b16 %v1051
      %v1092 = vunpack.c.h.b16 %v1051
      %v1093 = vunpack.c.l.b16 %v1052
      %v1094 = vunpack.c.h.b16 %v1052
      %v1095 = vpack.c.b16 %v1071, %v1067
      %v1096 = vpack.c.b16 %v1072, %v1068
      %v1097 = vpack.c.b16 %v1073, %v1069
      %v1098 = vpack.c.b16 %v1074, %v1070
      %v1099 = vpack.c.b16 %v1079, %v1075
      %v1100 = vpack.c.b16 %v1080, %v1076
      %v1101 = vpack.c.b16 %v1081, %v1077
      %v1102 = vpack.c.b16 %v1082, %v1078
      %v1103 = vpack.c.b16 %v1087, %v1083
      %v1104 = vpack.c.b16 %v1088, %v1084
      %v1105 = vpack.c.b16 %v1089, %v1085
      %v1106 = vpack.c.b16 %v1090, %v1086
      %v1107 = vpack.c.b16 %v1091, %v1091
      %v1108 = vpack.c.b16 %v1092, %v1092
      %v1109 = vpack.c.b16 %v1093, %v1093
      %v1110 = vpack.c.b16 %v1094, %v1094
      %v1124 = vsel %vm460, %v1098, 0
      %v1127 = vsel %vm460, %v1102, 0
      %v1130 = vsel %vm460, %v1106, 0
      %v1133 = vsel %vm460, %v1110, 0
      %1135 = vmatpush.bf16.msra.mxu0 %v417
      %1136 = vmatpush.bf16.msra.mxu0 %v416
      %1137 = vmatpush.bf16.msra.mxu0 %v415
      %1138 = vmatpush.bf16.msra.mxu0 %v414
      %1139 = vmatpush.bf16.msra.mxu0 %v413
      %1140 = vmatpush.bf16.msra.mxu0 %v412
      %1141 = vmatpush.bf16.msra.mxu0 %v411
      %1142 = vmatpush.bf16.msra.mxu0 %v410
      %1143 = vmatmul.bf16.gmra.mxu0 %v1095
      %v1144 = vpop.f32.mrf.mxu0
      %v1145 = vadd.f32 %v238, %v1144
      %v1146 = vpop.f32.mrf.mxu0
      %v1147 = vadd.f32 %v238, %v1146
      %1148 = vmatmul.bf16.gmra.mxu0 %v1099
      %v1149 = vpop.f32.mrf.mxu0
      %v1150 = vadd.f32 %v238, %v1149
      %v1151 = vpop.f32.mrf.mxu0
      %v1152 = vadd.f32 %v238, %v1151
      %1153 = vmatmul.bf16.gmra.mxu0 %v1103
      %v1154 = vpop.f32.mrf.mxu0
      %v1155 = vadd.f32 %v238, %v1154
      %v1156 = vpop.f32.mrf.mxu0
      %v1157 = vadd.f32 %v238, %v1156
      %1158 = vmatmul.bf16.gmra.mxu0 %v1107
      %v1159 = vpop.f32.mrf.mxu0
      %v1160 = vadd.f32 %v238, %v1159
      %v1161 = vpop.f32.mrf.mxu0
      %1162 = vdwg.mxu0
      %1163 = vmatpush.bf16.msra.mxu0 %v425
      %1164 = vmatpush.bf16.msra.mxu0 %v424
      %1165 = vmatpush.bf16.msra.mxu0 %v423
      %1166 = vmatpush.bf16.msra.mxu0 %v422
      %1167 = vmatpush.bf16.msra.mxu0 %v421
      %1168 = vmatpush.bf16.msra.mxu0 %v420
      %1169 = vmatpush.bf16.msra.mxu0 %v419
      %1170 = vmatpush.bf16.msra.mxu0 %v418
      %1171 = vmatmul.bf16.gmra.mxu0 %v1096
      %v1172 = vpop.f32.mrf.mxu0
      %v1173 = vadd.f32 %v1145, %v1172
      %v1174 = vpop.f32.mrf.mxu0
      %v1175 = vadd.f32 %v1147, %v1174
      %1176 = vmatmul.bf16.gmra.mxu0 %v1100
      %v1177 = vpop.f32.mrf.mxu0
      %v1178 = vadd.f32 %v1150, %v1177
      %v1179 = vpop.f32.mrf.mxu0
      %v1180 = vadd.f32 %v1152, %v1179
      %1181 = vmatmul.bf16.gmra.mxu0 %v1104
      %v1182 = vpop.f32.mrf.mxu0
      %v1183 = vadd.f32 %v1155, %v1182
      %v1184 = vpop.f32.mrf.mxu0
      %v1185 = vadd.f32 %v1157, %v1184
      %1186 = vmatmul.bf16.gmra.mxu0 %v1108
      %v1187 = vpop.f32.mrf.mxu0
      %v1188 = vadd.f32 %v1160, %v1187
      %v1189 = vpop.f32.mrf.mxu0
      %1190 = vdwg.mxu0
      %1191 = vmatpush.bf16.msra.mxu0 %v433
      %1192 = vmatpush.bf16.msra.mxu0 %v432
      %1193 = vmatpush.bf16.msra.mxu0 %v431
      %1194 = vmatpush.bf16.msra.mxu0 %v430
      %1195 = vmatpush.bf16.msra.mxu0 %v429
      %1196 = vmatpush.bf16.msra.mxu0 %v428
      %1197 = vmatpush.bf16.msra.mxu0 %v427
      %1198 = vmatpush.bf16.msra.mxu0 %v426
      %1199 = vmatmul.bf16.gmra.mxu0 %v1097
      %v1200 = vpop.f32.mrf.mxu0
      %v1201 = vadd.f32 %v1173, %v1200
      %v1202 = vpop.f32.mrf.mxu0
      %v1203 = vadd.f32 %v1175, %v1202
      %1204 = vmatmul.bf16.gmra.mxu0 %v1101
      %v1205 = vpop.f32.mrf.mxu0
      %v1206 = vadd.f32 %v1178, %v1205
      %v1207 = vpop.f32.mrf.mxu0
      %v1208 = vadd.f32 %v1180, %v1207
      %1209 = vmatmul.bf16.gmra.mxu0 %v1105
      %v1210 = vpop.f32.mrf.mxu0
      %v1211 = vadd.f32 %v1183, %v1210
      %v1212 = vpop.f32.mrf.mxu0
      %v1213 = vadd.f32 %v1185, %v1212
      %1214 = vmatmul.bf16.gmra.mxu0 %v1109
      %v1215 = vpop.f32.mrf.mxu0
      %v1216 = vadd.f32 %v1188, %v1215
      %v1217 = vpop.f32.mrf.mxu0
      %1218 = vdwg.mxu0
      %1219 = vmatpush.bf16.msra.mxu0 0
      %1220 = vmatpush.bf16.msra.mxu0 0
      %1221 = vmatpush.bf16.msra.mxu0 0
      %1222 = vmatpush.bf16.msra.mxu0 0
      %1223 = vmatpush.bf16.msra.mxu0 0
      %1224 = vmatpush.bf16.msra.mxu0 0
      %1225 = vmatpush.bf16.msra.mxu0 0
      %1226 = vmatpush.bf16.msra.mxu0 %v434
      %1227 = vmatmul.bf16.gmra.mxu0 %v1124
      %v1228 = vpop.f32.mrf.mxu0
      %v1229 = vadd.f32 %v1201, %v1228
      %v1230 = vpop.f32.mrf.mxu0
      %v1231 = vadd.f32 %v1203, %v1230
      %1232 = vmatmul.bf16.gmra.mxu0 %v1127
      %v1233 = vpop.f32.mrf.mxu0
      %v1234 = vadd.f32 %v1206, %v1233
      %v1235 = vpop.f32.mrf.mxu0
      %v1236 = vadd.f32 %v1208, %v1235
      %1237 = vmatmul.bf16.gmra.mxu0 %v1130
      %v1238 = vpop.f32.mrf.mxu0
      %v1239 = vadd.f32 %v1211, %v1238
      %v1240 = vpop.f32.mrf.mxu0
      %v1241 = vadd.f32 %v1213, %v1240
      %1242 = vmatmul.bf16.gmra.mxu0 %v1133
      %v1243 = vpop.f32.mrf.mxu0
      %v1244 = vadd.f32 %v1216, %v1243
      %v1245 = vpop.f32.mrf.mxu0
      %1246 = vdwg.mxu0
      %v1247 = vmax.f32 %v1229, 0.0
      %v1248 = vmax.f32 %v1231, 0.0
      %v1249 = vmax.f32 %v1234, 0.0
      %v1250 = vmax.f32 %v1236, 0.0
      %v1251 = vmax.f32 %v1239, 0.0
      %v1252 = vmax.f32 %v1241, 0.0
      %v1253 = vmax.f32 %v1244, 0.0
      %v1254 = vmax.f32 %v1031, %v1247
      %v1255 = vmax.f32 %v1032, %v1248
      %v1256 = vmax.f32 %v1033, %v1249
      %v1257 = vmax.f32 %v1034, %v1250
      %v1258 = vmax.f32 %v1035, %v1251
      %v1259 = vmax.f32 %v1036, %v1252
      %v1260 = vmax.f32 %v1037, %v1253
      %v1261 = vpack.c.bf16 %v1254, %v1254
      %v1262 = vpack.c.bf16 %v1255, %v1255
      %v1263 = vpack.c.bf16 %v1256, %v1256
      %v1264 = vpack.c.bf16 %v1257, %v1257
      %v1265 = vpack.c.bf16 %v1258, %v1258
      %v1266 = vpack.c.bf16 %v1259, %v1259
      %v1267 = vpack.c.bf16 %v1260, %v1260
      %vm1268 = vcmask 257024
      %1269 = vst.msk [vmem:[%s170] sm:$0xf] %vm1268, %v1261
      %1270 = vst.msk [vmem:[%s170 + $0x4] sm:$0xf] %vm1268, %v1262
      %1271 = vst.msk [vmem:[%s170 + $0x8] sm:$0xf] %vm1268, %v1263
      %1272 = vst.msk [vmem:[%s170 + $0xc] sm:$0xf] %vm1268, %v1264
      %1273 = vst.msk [vmem:[%s170 + $0x10] sm:$0xf] %vm1268, %v1265
      %1274 = vst.msk [vmem:[%s170 + $0x14] sm:$0xf] %vm1268, %v1266
      %vm1275 = vcmask 253952
      %vm1276 = vsmask.f32 256
      %vm1277 = vmand %vm1275, %vm1276
      %v1278 = vld [vmem:[%s170 + $0x18] sm:$0x1]
      %v1279 = vsel %vm1277, %v1267, %v1278
      %1280 = vst [vmem:[%s170 + $0x18] sm:$0x1] %v1279
      %p1281 = scmp.lt.s32.totalorder %s14, 1
      %s1282 = scalar_select %p1281, %s14, 1
      %s1283 = smul.addr %s1282, 7
      %s1284 = smul.addr %s1283, 4
      %s1285 = scalar_lea.vmem %s3, %s1284
      // Predicated region
      $region33: #{convnet_forward.4} parent=31 // pred_check
        %p1286 = pneg %p100
      $region34: #{convnet_forward.4} parent=31 // pred_check_branch
        %1288 = sbr.rel (%p1286) target = $region36
      $region35: #{convnet_forward.4} parent=31 // pred_region
        _
      $region36: #{convnet_forward.4} parent=31 // pred_fallthru
        _
    $region32: #{convnet_forward.4} parent=5 // pred_fallthru
      _
    %p1289 = scmp.le.s32.totalorder 2, %s9
    // Predicated region
    $region37: #{convnet_forward.4} parent=5 // pred_check
      %p1290 = pneg %p1289
    $region38: #{convnet_forward.4} parent=5 // pred_check_branch
      %1292 = sbr.rel (%p1290) target = $region40
    $region39: #{convnet_forward.4} parent=5 // pred_region
      %s1293 = ssub.s32 %s9, 2
      // Predicated region
      $region41: #{convnet_forward.4} parent=39 // pred_check
        %p1294 = pneg %p106
      $region42: #{convnet_forward.4} parent=39 // pred_check_branch
        %1296 = sbr.rel (%p1294) target = $region44
      $region43: #{convnet_forward.4} parent=39 // pred_region
        %p1297 = scmp.lt.s32.totalorder %s15, 1
        %s1298 = scalar_select %p1297, %s15, 1
        %s1299 = smul.addr %s1298, 7
        %s1300 = smul.addr %s1299, 4
        %s1301 = scalar_lea.vmem %s3, %s1300
      $region44: #{convnet_forward.4} parent=39 // pred_fallthru
        _
    $region40: #{convnet_forward.4} parent=5 // pred_fallthru
      _
  $region6: #{convnet_forward.4} parent=0 // loop_footer
    %s13 = sadd.s32 1, %s9
  $region7: #{convnet_forward.4} parent=0 // loop_footer_branch
    %8 = sbr.rel target = $region3
  $region8: #{convnet_forward.4} parent=0 // loop_exit
    _

// kernel: convnet_forward.5
$region0: #{convnet_forward.5}
  #allocation0 [shape = 'u32[]', space=smem, size = 0x4, offset = 0x4, fixed_abs, tag = 'smem constant byte address 0x4 - core index']
  #allocation1 [shape = 'u32[72,128]{1,0:T(1,128)}', space=vmem, size = 0x9000, scoped, tag = 'internal scratch']
  %s0 = inlined_call_operand.vmem [shape: bf16[2,1568], index: 0, kind: input, shape index: {}]
  %s1 = inlined_call_operand.vmem [shape: bf16[1568,128], index: 1, kind: input, shape index: {}]
  %s2 = inlined_call_operand.vmem [shape: f32[1,128], index: 2, kind: input, shape index: {}]
  %s3 = inlined_call_operand.hbm [shape: f32[2,128], index: 3, kind: output, shape index: {}]
  %s4 = sld [smem:[#allocation0]]
  $region22: #{convnet_forward.5} parent=0
    _
  %s6 = ssub.s32 1, %s4
  %s7 = scalar_select 0, %s6, %s4
  $region1: #{convnet_forward.5} parent=0
    #allocation2 [shape = 'u8[1024]{0}', space=vmem, size = 0x400, scoped, tag = 'output window, operand 0, single buffered']
    #allocation3 [shape = 's32[1]{0}', space=sflag, size = 0x4, scoped, tag = 'scoped memory for convnet_forward.5']
    %8 = vsyncpa [#allocation3], 0
    // Predicated region
    $region2: #{convnet_forward.5} parent=1 // pred_check
      _
    $region3: #{convnet_forward.5} parent=1 // pred_check_branch
      %10 = sbr.rel (0) target = $region5
    $region4: #{convnet_forward.5} parent=1 // pred_region
      _
    $region5: #{convnet_forward.5} parent=1 // pred_fallthru
      _
    // Predicated region
    $region6: #{convnet_forward.5} parent=1 // pred_check
      _
    $region7: #{convnet_forward.5} parent=1 // pred_check_branch
      %12 = sbr.rel (0) target = $region9
    $region8: #{convnet_forward.5} parent=1 // pred_region
      _
    $region9: #{convnet_forward.5} parent=1 // pred_fallthru
      _
    // Predicated region
    $region10: #{convnet_forward.5} parent=1 // pred_check
      _
    $region11: #{convnet_forward.5} parent=1 // pred_check_branch
      %14 = sbr.rel (0) target = $region13
    $region12: #{convnet_forward.5} parent=1 // pred_region
      _
    $region13: #{convnet_forward.5} parent=1 // pred_fallthru
      _
    %v16 = vld [vmem:[%s0] sm:$0xff]
    %v17 = vld [vmem:[%s0 + $0x8] sm:$0x1f]
    %v18 = vld [vmem:[%s1] sm:$0xf]
    %v19 = vld [vmem:[%s1 + $0x4] sm:$0xf]
    %v20 = vld [vmem:[%s1 + $0x8] sm:$0xf]
    %v21 = vld [vmem:[%s1 + $0xc] sm:$0xf]
    %v22 = vld [vmem:[%s1 + $0x10] sm:$0xf]
    %v23 = vld [vmem:[%s1 + $0x14] sm:$0xf]
    %v24 = vld [vmem:[%s1 + $0x18] sm:$0xf]
    %v25 = vld [vmem:[%s1 + $0x1c] sm:$0xf]
    %v26 = vld [vmem:[%s1 + $0x20] sm:$0xf]
    %v27 = vld [vmem:[%s1 + $0x24] sm:$0xf]
    %v28 = vld [vmem:[%s1 + $0x28] sm:$0xf]
    %v29 = vld [vmem:[%s1 + $0x2c] sm:$0xf]
    %v30 = vld [vmem:[%s1 + $0x30] sm:$0xf]
    %v31 = vld [vmem:[%s1 + $0x34] sm:$0xf]
    %v32 = vld [vmem:[%s1 + $0x38] sm:$0xf]
    %v33 = vld [vmem:[%s1 + $0x3c] sm:$0xf]
    %v34 = vld [vmem:[%s1 + $0x40] sm:$0xf]
    %v35 = vld [vmem:[%s1 + $0x44] sm:$0xf]
    %v36 = vld [vmem:[%s1 + $0x48] sm:$0xf]
    %v37 = vld [vmem:[%s1 + $0x4c] sm:$0xf]
    %v38 = vld [vmem:[%s1 + $0x50] sm:$0xf]
    %v39 = vld [vmem:[%s1 + $0x54] sm:$0xf]
    %v40 = vld [vmem:[%s1 + $0x58] sm:$0xf]
    %v41 = vld [vmem:[%s1 + $0x5c] sm:$0xf]
    %v42 = vld [vmem:[%s1 + $0x60] sm:$0xf]
    %v43 = vld [vmem:[%s1 + $0x64] sm:$0xf]
    %v44 = vld [vmem:[%s1 + $0x68] sm:$0xf]
    %v45 = vld [vmem:[%s1 + $0x6c] sm:$0xf]
    %v46 = vld [vmem:[%s1 + $0x70] sm:$0xf]
    %v47 = vld [vmem:[%s1 + $0x74] sm:$0xf]
    %v48 = vld [vmem:[%s1 + $0x78] sm:$0xf]
    %v49 = vld [vmem:[%s1 + $0x7c] sm:$0xf]
    %v50 = vld [vmem:[%s1 + $0x80] sm:$0xf]
    %v51 = vld [vmem:[%s1 + $0x84] sm:$0xf]
    %v52 = vld [vmem:[%s1 + $0x88] sm:$0xf]
    %v53 = vld [vmem:[%s1 + $0x8c] sm:$0xf]
    %v54 = vld [vmem:[%s1 + $0x90] sm:$0xf]
    %v55 = vld [vmem:[%s1 + $0x94] sm:$0xf]
    %v56 = vld [vmem:[%s1 + $0x98] sm:$0xf]
    %v57 = vld [vmem:[%s1 + $0x9c] sm:$0xf]
    %v58 = vld [vmem:[%s1 + $0xa0] sm:$0xf]
    %v59 = vld [vmem:[%s1 + $0xa4] sm:$0xf]
    %v60 = vld [vmem:[%s1 + $0xa8] sm:$0xf]
    %v61 = vld [vmem:[%s1 + $0xac] sm:$0xf]
    %v62 = vld [vmem:[%s1 + $0xb0] sm:$0xf]
    %v63 = vld [vmem:[%s1 + $0xb4] sm:$0xf]
    %v64 = vld [vmem:[%s1 + $0xb8] sm:$0xf]
    %v65 = vld [vmem:[%s1 + $0xbc] sm:$0xf]
    %v66 = vld [vmem:[%s1 + $0xc0] sm:$0xf]
    %v67 = vld [vmem:[%s1 + $0xc4] sm:$0xf]
    %v68 = vld [vmem:[%s1 + $0xc8] sm:$0xf]
    %v69 = vld [vmem:[%s1 + $0xcc] sm:$0xf]
    %v70 = vld [vmem:[%s1 + $0xd0] sm:$0xf]
    %v71 = vld [vmem:[%s1 + $0xd4] sm:$0xf]
    %v72 = vld [vmem:[%s1 + $0xd8] sm:$0xf]
    %v73 = vld [vmem:[%s1 + $0xdc] sm:$0xf]
    %v74 = vld [vmem:[%s1 + $0xe0] sm:$0xf]
    %v75 = vld [vmem:[%s1 + $0xe4] sm:$0xf]
    %v76 = vld [vmem:[%s1 + $0xe8] sm:$0xf]
    %v77 = vld [vmem:[%s1 + $0xec] sm:$0xf]
    %v78 = vld [vmem:[%s1 + $0xf0] sm:$0xf]
    %v79 = vld [vmem:[%s1 + $0xf4] sm:$0xf]
    %v80 = vld [vmem:[%s1 + $0xf8] sm:$0xf]
    %v81 = vld [vmem:[%s1 + $0xfc] sm:$0xf]
    %v82 = vld [vmem:[%s1 + $0x100] sm:$0xf]
    %v83 = vld [vmem:[%s1 + $0x104] sm:$0xf]
    %v84 = vld [vmem:[%s1 + $0x108] sm:$0xf]
    %v85 = vld [vmem:[%s1 + $0x10c] sm:$0xf]
    %v86 = vld [vmem:[%s1 + $0x110] sm:$0xf]
    %v87 = vld [vmem:[%s1 + $0x114] sm:$0xf]
    %v88 = vld [vmem:[%s1 + $0x118] sm:$0xf]
    %v89 = vld [vmem:[%s1 + $0x11c] sm:$0xf]
    %v90 = vld [vmem:[%s1 + $0x120] sm:$0xf]
    %v91 = vld [vmem:[%s1 + $0x124] sm:$0xf]
    %v92 = vld [vmem:[%s1 + $0x128] sm:$0xf]
    %v93 = vld [vmem:[%s1 + $0x12c] sm:$0xf]
    %v94 = vld [vmem:[%s1 + $0x130] sm:$0xf]
    %v95 = vld [vmem:[%s1 + $0x134] sm:$0xf]
    %v96 = vld [vmem:[%s1 + $0x138] sm:$0xf]
    %v97 = vld [vmem:[%s1 + $0x13c] sm:$0xf]
    %v98 = vld [vmem:[%s1 + $0x140] sm:$0xf]
    %v99 = vld [vmem:[%s1 + $0x144] sm:$0xf]
    %v100 = vld [vmem:[%s1 + $0x148] sm:$0xf]
    %v101 = vld [vmem:[%s1 + $0x14c] sm:$0xf]
    %v102 = vld [vmem:[%s1 + $0x150] sm:$0xf]
    %v103 = vld [vmem:[%s1 + $0x154] sm:$0xf]
    %v104 = vld [vmem:[%s1 + $0x158] sm:$0xf]
    %v105 = vld [vmem:[%s1 + $0x15c] sm:$0xf]
    %v106 = vld [vmem:[%s1 + $0x160] sm:$0xf]
    %v107 = vld [vmem:[%s1 + $0x164] sm:$0xf]
    %v108 = vld [vmem:[%s1 + $0x168] sm:$0xf]
    %v109 = vld [vmem:[%s1 + $0x16c] sm:$0xf]
    %v110 = vld [vmem:[%s1 + $0x170] sm:$0xf]
    %v111 = vld [vmem:[%s1 + $0x174] sm:$0xf]
    %v112 = vld [vmem:[%s1 + $0x178] sm:$0xf]
    %v113 = vld [vmem:[%s1 + $0x17c] sm:$0xf]
    %v114 = vld [vmem:[%s1 + $0x180] sm:$0xf]
    %v115 = vld [vmem:[%s1 + $0x184] sm:$0xf]
    %v116 = vld [vmem:[%s1 + $0x188] sm:$0xf]
    %v117 = vld [vmem:[%s1 + $0x18c] sm:$0xf]
    %v118 = vld [vmem:[%s1 + $0x190] sm:$0xf]
    %v119 = vld [vmem:[%s1 + $0x194] sm:$0xf]
    %v120 = vld [vmem:[%s1 + $0x198] sm:$0xf]
    %v121 = vld [vmem:[%s1 + $0x19c] sm:$0xf]
    %v122 = vld [vmem:[%s1 + $0x1a0] sm:$0xf]
    %v123 = vld [vmem:[%s1 + $0x1a4] sm:$0xf]
    %v124 = vld [vmem:[%s1 + $0x1a8] sm:$0xf]
    %v125 = vld [vmem:[%s1 + $0x1ac] sm:$0xf]
    %v126 = vld [vmem:[%s1 + $0x1b0] sm:$0xf]
    %v127 = vld [vmem:[%s1 + $0x1b4] sm:$0xf]
    %v128 = vld [vmem:[%s1 + $0x1b8] sm:$0xf]
    %v129 = vld [vmem:[%s1 + $0x1bc] sm:$0xf]
    %v130 = vld [vmem:[%s1 + $0x1c0] sm:$0xf]
    %v131 = vld [vmem:[%s1 + $0x1c4] sm:$0xf]
    %v132 = vld [vmem:[%s1 + $0x1c8] sm:$0xf]
    %v133 = vld [vmem:[%s1 + $0x1cc] sm:$0xf]
    %v134 = vld [vmem:[%s1 + $0x1d0] sm:$0xf]
    %v135 = vld [vmem:[%s1 + $0x1d4] sm:$0xf]
    %v136 = vld [vmem:[%s1 + $0x1d8] sm:$0xf]
    %v137 = vld [vmem:[%s1 + $0x1dc] sm:$0xf]
    %v138 = vld [vmem:[%s1 + $0x1e0] sm:$0xf]
    %v139 = vld [vmem:[%s1 + $0x1e4] sm:$0xf]
    %v140 = vld [vmem:[%s1 + $0x1e8] sm:$0xf]
    %v141 = vld [vmem:[%s1 + $0x1ec] sm:$0xf]
    %v142 = vld [vmem:[%s1 + $0x1f0] sm:$0xf]
    %v143 = vld [vmem:[%s1 + $0x1f4] sm:$0xf]
    %v144 = vld [vmem:[%s1 + $0x1f8] sm:$0xf]
    %v145 = vld [vmem:[%s1 + $0x1fc] sm:$0xf]
    %v146 = vld [vmem:[%s1 + $0x200] sm:$0xf]
    %v147 = vld [vmem:[%s1 + $0x204] sm:$0xf]
    %v148 = vld [vmem:[%s1 + $0x208] sm:$0xf]
    %v149 = vld [vmem:[%s1 + $0x20c] sm:$0xf]
    %v150 = vld [vmem:[%s1 + $0x210] sm:$0xf]
    %v151 = vld [vmem:[%s1 + $0x214] sm:$0xf]
    %v152 = vld [vmem:[%s1 + $0x218] sm:$0xf]
    %v153 = vld [vmem:[%s1 + $0x21c] sm:$0xf]
    %v154 = vld [vmem:[%s1 + $0x220] sm:$0xf]
    %v155 = vld [vmem:[%s1 + $0x224] sm:$0xf]
    %v156 = vld [vmem:[%s1 + $0x228] sm:$0xf]
    %v157 = vld [vmem:[%s1 + $0x22c] sm:$0xf]
    %v158 = vld [vmem:[%s1 + $0x230] sm:$0xf]
    %v159 = vld [vmem:[%s1 + $0x234] sm:$0xf]
    %v160 = vld [vmem:[%s1 + $0x238] sm:$0xf]
    %v161 = vld [vmem:[%s1 + $0x23c] sm:$0xf]
    %v162 = vld [vmem:[%s1 + $0x240] sm:$0xf]
    %v163 = vld [vmem:[%s1 + $0x244] sm:$0xf]
    %v164 = vld [vmem:[%s1 + $0x248] sm:$0xf]
    %v165 = vld [vmem:[%s1 + $0x24c] sm:$0xf]
    %v166 = vld [vmem:[%s1 + $0x250] sm:$0xf]
    %v167 = vld [vmem:[%s1 + $0x254] sm:$0xf]
    %v168 = vld [vmem:[%s1 + $0x258] sm:$0xf]
    %v169 = vld [vmem:[%s1 + $0x25c] sm:$0xf]
    %v170 = vld [vmem:[%s1 + $0x260] sm:$0xf]
    %v171 = vld [vmem:[%s1 + $0x264] sm:$0xf]
    %v172 = vld [vmem:[%s1 + $0x268] sm:$0xf]
    %v173 = vld [vmem:[%s1 + $0x26c] sm:$0xf]
    %v174 = vld [vmem:[%s1 + $0x270] sm:$0xf]
    %v175 = vld [vmem:[%s1 + $0x274] sm:$0xf]
    %v176 = vld [vmem:[%s1 + $0x278] sm:$0xf]
    %v177 = vld [vmem:[%s1 + $0x27c] sm:$0xf]
    %v178 = vld [vmem:[%s1 + $0x280] sm:$0xf]
    %v179 = vld [vmem:[%s1 + $0x284] sm:$0xf]
    %v180 = vld [vmem:[%s1 + $0x288] sm:$0xf]
    %v181 = vld [vmem:[%s1 + $0x28c] sm:$0xf]
    %v182 = vld [vmem:[%s1 + $0x290] sm:$0xf]
    %v183 = vld [vmem:[%s1 + $0x294] sm:$0xf]
    %v184 = vld [vmem:[%s1 + $0x298] sm:$0xf]
    %v185 = vld [vmem:[%s1 + $0x29c] sm:$0xf]
    %v186 = vld [vmem:[%s1 + $0x2a0] sm:$0xf]
    %v187 = vld [vmem:[%s1 + $0x2a4] sm:$0xf]
    %v188 = vld [vmem:[%s1 + $0x2a8] sm:$0xf]
    %v189 = vld [vmem:[%s1 + $0x2ac] sm:$0xf]
    %v190 = vld [vmem:[%s1 + $0x2b0] sm:$0xf]
    %v191 = vld [vmem:[%s1 + $0x2b4] sm:$0xf]
    %v192 = vld [vmem:[%s1 + $0x2b8] sm:$0xf]
    %v193 = vld [vmem:[%s1 + $0x2bc] sm:$0xf]
    %v194 = vld [vmem:[%s1 + $0x2c0] sm:$0xf]
    %v195 = vld [vmem:[%s1 + $0x2c4] sm:$0xf]
    %v196 = vld [vmem:[%s1 + $0x2c8] sm:$0xf]
    %v197 = vld [vmem:[%s1 + $0x2cc] sm:$0xf]
    %v198 = vld [vmem:[%s1 + $0x2d0] sm:$0xf]
    %v199 = vld [vmem:[%s1 + $0x2d4] sm:$0xf]
    %v200 = vld [vmem:[%s1 + $0x2d8] sm:$0xf]
    %v201 = vld [vmem:[%s1 + $0x2dc] sm:$0xf]
    %v202 = vld [vmem:[%s1 + $0x2e0] sm:$0xf]
    %v203 = vld [vmem:[%s1 + $0x2e4] sm:$0xf]
    %v204 = vld [vmem:[%s1 + $0x2e8] sm:$0xf]
    %v205 = vld [vmem:[%s1 + $0x2ec] sm:$0xf]
    %v206 = vld [vmem:[%s1 + $0x2f0] sm:$0xf]
    %v207 = vld [vmem:[%s1 + $0x2f4] sm:$0xf]
    %v208 = vld [vmem:[%s1 + $0x2f8] sm:$0xf]
    %v209 = vld [vmem:[%s1 + $0x2fc] sm:$0xf]
    %v210 = vld [vmem:[%s1 + $0x300] sm:$0xf]
    %v211 = vld [vmem:[%s1 + $0x304] sm:$0xf]
    %v212 = vld [vmem:[%s1 + $0x308] sm:$0xf]
    %v213 = vld [vmem:[%s1 + $0x30c] sm:$0xf]
    %v214 = vld [vmem:[%s2] sm:$0x1]
    %v216 = vperm.slane %v214, 0
    %219 = vst [vmem:[#allocation1] ss:$9 sm:$0xff] %v16
    %v220 = vld [vmem:[#allocation1] sm:$0xff]
    %v221 = vld [vmem:[#allocation1 + $0x9] sm:$0xff]
    %v222 = vld [vmem:[#allocation1 + $0x12] sm:$0xff]
    %v223 = vld [vmem:[#allocation1 + $0x1b] sm:$0xff]
    %v224 = vld [vmem:[#allocation1 + $0x24] sm:$0xff]
    %v225 = vld [vmem:[#allocation1 + $0x2d] sm:$0xff]
    %v226 = vld [vmem:[#allocation1 + $0x36] sm:$0xff]
    %v227 = vld [vmem:[#allocation1 + $0x3f] sm:$0xff]
    %229 = vst [vmem:[#allocation1] ss:$9 sm:$0xff] %v17
    %v230 = vld [vmem:[#allocation1] sm:$0xff]
    %v231 = vld [vmem:[#allocation1 + $0x9] sm:$0xff]
    %v232 = vld [vmem:[#allocation1 + $0x12] sm:$0xff]
    %v233 = vld [vmem:[#allocation1 + $0x1b] sm:$0xff]
    %v234 = vld [vmem:[#allocation1 + $0x24] sm:$0xff]
    %v443 = vunpack.c.l.b16 %v18
    %v444 = vunpack.c.l.b16 %v19
    %v445 = vunpack.c.l.b16 %v20
    %v446 = vunpack.c.l.b16 %v21
    %v447 = vunpack.c.l.b16 %v22
    %v448 = vunpack.c.l.b16 %v23
    %v449 = vunpack.c.l.b16 %v24
    %v450 = vunpack.c.l.b16 %v25
    %v451 = vunpack.c.l.b16 %v26
    %v452 = vunpack.c.l.b16 %v27
    %v453 = vunpack.c.l.b16 %v28
    %v454 = vunpack.c.l.b16 %v29
    %v455 = vunpack.c.l.b16 %v30
    %v456 = vunpack.c.l.b16 %v31
    %v457 = vunpack.c.l.b16 %v32
    %v458 = vunpack.c.l.b16 %v33
    %v459 = vunpack.c.l.b16 %v34
    %v460 = vunpack.c.l.b16 %v35
    %v461 = vunpack.c.l.b16 %v36
    %v462 = vunpack.c.l.b16 %v37
    %v463 = vunpack.c.l.b16 %v38
    %v464 = vunpack.c.l.b16 %v39
    %v465 = vunpack.c.l.b16 %v40
    %v466 = vunpack.c.l.b16 %v41
    %v467 = vunpack.c.l.b16 %v42
    %v468 = vunpack.c.l.b16 %v43
    %v469 = vunpack.c.l.b16 %v44
    %v470 = vunpack.c.l.b16 %v45
    %v471 = vunpack.c.l.b16 %v46
    %v472 = vunpack.c.l.b16 %v47
    %v473 = vunpack.c.l.b16 %v48
    %v474 = vunpack.c.l.b16 %v49
    %v475 = vunpack.c.l.b16 %v50
    %v476 = vunpack.c.l.b16 %v51
    %v477 = vunpack.c.l.b16 %v52
    %v478 = vunpack.c.l.b16 %v53
    %v479 = vunpack.c.l.b16 %v54
    %v480 = vunpack.c.l.b16 %v55
    %v481 = vunpack.c.l.b16 %v56
    %v482 = vunpack.c.l.b16 %v57
    %v483 = vunpack.c.l.b16 %v58
    %v484 = vunpack.c.l.b16 %v59
    %v485 = vunpack.c.l.b16 %v60
    %v486 = vunpack.c.l.b16 %v61
    %v487 = vunpack.c.l.b16 %v62
    %v488 = vunpack.c.l.b16 %v63
    %v489 = vunpack.c.l.b16 %v64
    %v490 = vunpack.c.l.b16 %v65
    %v491 = vunpack.c.l.b16 %v66
    %v492 = vunpack.c.l.b16 %v67
    %v493 = vunpack.c.l.b16 %v68
    %v494 = vunpack.c.l.b16 %v69
    %v495 = vunpack.c.l.b16 %v70
    %v496 = vunpack.c.l.b16 %v71
    %v497 = vunpack.c.l.b16 %v72
    %v498 = vunpack.c.l.b16 %v73
    %v499 = vunpack.c.l.b16 %v74
    %v500 = vunpack.c.l.b16 %v75
    %v501 = vunpack.c.l.b16 %v76
    %v502 = vunpack.c.l.b16 %v77
    %v503 = vunpack.c.l.b16 %v78
    %v504 = vunpack.c.l.b16 %v79
    %v505 = vunpack.c.l.b16 %v80
    %v506 = vunpack.c.l.b16 %v81
    %v507 = vunpack.c.l.b16 %v82
    %v508 = vunpack.c.l.b16 %v83
    %v509 = vunpack.c.l.b16 %v84
    %v510 = vunpack.c.l.b16 %v85
    %v511 = vunpack.c.l.b16 %v86
    %v512 = vunpack.c.l.b16 %v87
    %v513 = vunpack.c.l.b16 %v88
    %v514 = vunpack.c.l.b16 %v89
    %v515 = vunpack.c.l.b16 %v90
    %v516 = vunpack.c.l.b16 %v91
    %v517 = vunpack.c.l.b16 %v92
    %v518 = vunpack.c.l.b16 %v93
    %v519 = vunpack.c.l.b16 %v94
    %v520 = vunpack.c.l.b16 %v95
    %v521 = vunpack.c.l.b16 %v96
    %v522 = vunpack.c.l.b16 %v97
    %v523 = vunpack.c.l.b16 %v98
    %v524 = vunpack.c.l.b16 %v99
    %v525 = vunpack.c.l.b16 %v100
    %v526 = vunpack.c.l.b16 %v101
    %v527 = vunpack.c.l.b16 %v102
    %v528 = vunpack.c.l.b16 %v103
    %v529 = vunpack.c.l.b16 %v104
    %v530 = vunpack.c.l.b16 %v105
    %v531 = vunpack.c.l.b16 %v106
    %v532 = vunpack.c.l.b16 %v107
    %v533 = vunpack.c.l.b16 %v108
    %v534 = vunpack.c.l.b16 %v109
    %v535 = vunpack.c.l.b16 %v110
    %v536 = vunpack.c.l.b16 %v111
    %v537 = vunpack.c.l.b16 %v112
    %v538 = vunpack.c.l.b16 %v113
    %v539 = vunpack.c.l.b16 %v114
    %v540 = vunpack.c.l.b16 %v115
    %v541 = vunpack.c.l.b16 %v116
    %v542 = vunpack.c.l.b16 %v117
    %v543 = vunpack.c.l.b16 %v118
    %v544 = vunpack.c.l.b16 %v119
    %v545 = vunpack.c.l.b16 %v120
    %v546 = vunpack.c.l.b16 %v121
    %v547 = vunpack.c.l.b16 %v122
    %v548 = vunpack.c.l.b16 %v123
    %v549 = vunpack.c.l.b16 %v124
    %v550 = vunpack.c.l.b16 %v125
    %v551 = vunpack.c.l.b16 %v126
    %v552 = vunpack.c.l.b16 %v127
    %v553 = vunpack.c.l.b16 %v128
    %v554 = vunpack.c.l.b16 %v129
    %v555 = vunpack.c.l.b16 %v130
    %v556 = vunpack.c.l.b16 %v131
    %v557 = vunpack.c.l.b16 %v132
    %v558 = vunpack.c.l.b16 %v133
    %v559 = vunpack.c.l.b16 %v134
    %v560 = vunpack.c.l.b16 %v135
    %v561 = vunpack.c.l.b16 %v136
    %v562 = vunpack.c.l.b16 %v137
    %v563 = vunpack.c.l.b16 %v138
    %v564 = vunpack.c.l.b16 %v139
    %v565 = vunpack.c.l.b16 %v140
    %v566 = vunpack.c.l.b16 %v141
    %v567 = vunpack.c.l.b16 %v142
    %v568 = vunpack.c.l.b16 %v143
    %v569 = vunpack.c.l.b16 %v144
    %v570 = vunpack.c.l.b16 %v145
    %v571 = vunpack.c.l.b16 %v146
    %v572 = vunpack.c.l.b16 %v147
    %v573 = vunpack.c.l.b16 %v148
    %v574 = vunpack.c.l.b16 %v149
    %v575 = vunpack.c.l.b16 %v150
    %v576 = vunpack.c.l.b16 %v151
    %v577 = vunpack.c.l.b16 %v152
    %v578 = vunpack.c.l.b16 %v153
    %v579 = vunpack.c.l.b16 %v154
    %v580 = vunpack.c.l.b16 %v155
    %v581 = vunpack.c.l.b16 %v156
    %v582 = vunpack.c.l.b16 %v157
    %v583 = vunpack.c.l.b16 %v158
    %v584 = vunpack.c.l.b16 %v159
    %v585 = vunpack.c.l.b16 %v160
    %v586 = vunpack.c.l.b16 %v161
    %v587 = vunpack.c.l.b16 %v162
    %v588 = vunpack.c.l.b16 %v163
    %v589 = vunpack.c.l.b16 %v164
    %v590 = vunpack.c.l.b16 %v165
    %v591 = vunpack.c.l.b16 %v166
    %v592 = vunpack.c.l.b16 %v167
    %v593 = vunpack.c.l.b16 %v168
    %v594 = vunpack.c.l.b16 %v169
    %v595 = vunpack.c.l.b16 %v170
    %v596 = vunpack.c.l.b16 %v171
    %v597 = vunpack.c.l.b16 %v172
    %v598 = vunpack.c.l.b16 %v173
    %v599 = vunpack.c.l.b16 %v174
    %v600 = vunpack.c.l.b16 %v175
    %v601 = vunpack.c.l.b16 %v176
    %v602 = vunpack.c.l.b16 %v177
    %v603 = vunpack.c.l.b16 %v178
    %v604 = vunpack.c.l.b16 %v179
    %v605 = vunpack.c.l.b16 %v180
    %v606 = vunpack.c.l.b16 %v181
    %v607 = vunpack.c.l.b16 %v182
    %v608 = vunpack.c.l.b16 %v183
    %v609 = vunpack.c.l.b16 %v184
    %v610 = vunpack.c.l.b16 %v185
    %v611 = vunpack.c.l.b16 %v186
    %v612 = vunpack.c.l.b16 %v187
    %v613 = vunpack.c.l.b16 %v188
    %v614 = vunpack.c.l.b16 %v189
    %v615 = vunpack.c.l.b16 %v190
    %v616 = vunpack.c.l.b16 %v191
    %v617 = vunpack.c.l.b16 %v192
    %v618 = vunpack.c.l.b16 %v193
    %v619 = vunpack.c.l.b16 %v194
    %v620 = vunpack.c.l.b16 %v195
    %v621 = vunpack.c.l.b16 %v196
    %v622 = vunpack.c.l.b16 %v197
    %v623 = vunpack.c.l.b16 %v198
    %v624 = vunpack.c.l.b16 %v199
    %v625 = vunpack.c.l.b16 %v200
    %v626 = vunpack.c.l.b16 %v201
    %v627 = vunpack.c.l.b16 %v202
    %v628 = vunpack.c.l.b16 %v203
    %v629 = vunpack.c.l.b16 %v204
    %v630 = vunpack.c.l.b16 %v205
    %v631 = vunpack.c.l.b16 %v206
    %v632 = vunpack.c.l.b16 %v207
    %v633 = vunpack.c.l.b16 %v208
    %v634 = vunpack.c.l.b16 %v209
    %v635 = vunpack.c.l.b16 %v210
    %v636 = vunpack.c.l.b16 %v211
    %v637 = vunpack.c.l.b16 %v212
    %v638 = vunpack.c.l.b16 %v213
    %v639 = vpack.c.b16 %v444, %v443
    %v640 = vpack.c.b16 %v446, %v445
    %v641 = vpack.c.b16 %v448, %v447
    %v642 = vpack.c.b16 %v450, %v449
    %v643 = vpack.c.b16 %v452, %v451
    %v644 = vpack.c.b16 %v454, %v453
    %v645 = vpack.c.b16 %v456, %v455
    %v646 = vpack.c.b16 %v458, %v457
    %v647 = vpack.c.b16 %v460, %v459
    %v648 = vpack.c.b16 %v462, %v461
    %v649 = vpack.c.b16 %v464, %v463
    %v650 = vpack.c.b16 %v466, %v465
    %v651 = vpack.c.b16 %v468, %v467
    %v652 = vpack.c.b16 %v470, %v469
    %v653 = vpack.c.b16 %v472, %v471
    %v654 = vpack.c.b16 %v474, %v473
    %v655 = vpack.c.b16 %v476, %v475
    %v656 = vpack.c.b16 %v478, %v477
    %v657 = vpack.c.b16 %v480, %v479
    %v658 = vpack.c.b16 %v482, %v481
    %v659 = vpack.c.b16 %v484, %v483
    %v660 = vpack.c.b16 %v486, %v485
    %v661 = vpack.c.b16 %v488, %v487
    %v662 = vpack.c.b16 %v490, %v489
    %v663 = vpack.c.b16 %v492, %v491
    %v664 = vpack.c.b16 %v494, %v493
    %v665 = vpack.c.b16 %v496, %v495
    %v666 = vpack.c.b16 %v498, %v497
    %v667 = vpack.c.b16 %v500, %v499
    %v668 = vpack.c.b16 %v502, %v501
    %v669 = vpack.c.b16 %v504, %v503
    %v670 = vpack.c.b16 %v506, %v505
    %v671 = vpack.c.b16 %v508, %v507
    %v672 = vpack.c.b16 %v510, %v509
    %v673 = vpack.c.b16 %v512, %v511
    %v674 = vpack.c.b16 %v514, %v513
    %v675 = vpack.c.b16 %v516, %v515
    %v676 = vpack.c.b16 %v518, %v517
    %v677 = vpack.c.b16 %v520, %v519
    %v678 = vpack.c.b16 %v522, %v521
    %v679 = vpack.c.b16 %v524, %v523
    %v680 = vpack.c.b16 %v526, %v525
    %v681 = vpack.c.b16 %v528, %v527
    %v682 = vpack.c.b16 %v530, %v529
    %v683 = vpack.c.b16 %v532, %v531
    %v684 = vpack.c.b16 %v534, %v533
    %v685 = vpack.c.b16 %v536, %v535
    %v686 = vpack.c.b16 %v538, %v537
    %v687 = vpack.c.b16 %v540, %v539
    %v688 = vpack.c.b16 %v542, %v541
    %v689 = vpack.c.b16 %v544, %v543
    %v690 = vpack.c.b16 %v546, %v545
    %v691 = vpack.c.b16 %v548, %v547
    %v692 = vpack.c.b16 %v550, %v549
    %v693 = vpack.c.b16 %v552, %v551
    %v694 = vpack.c.b16 %v554, %v553
    %v695 = vpack.c.b16 %v556, %v555
    %v696 = vpack.c.b16 %v558, %v557
    %v697 = vpack.c.b16 %v560, %v559
    %v698 = vpack.c.b16 %v562, %v561
    %v699 = vpack.c.b16 %v564, %v563
    %v700 = vpack.c.b16 %v566, %v565
    %v701 = vpack.c.b16 %v568, %v567
    %v702 = vpack.c.b16 %v570, %v569
    %v703 = vpack.c.b16 %v572, %v571
    %v704 = vpack.c.b16 %v574, %v573
    %v705 = vpack.c.b16 %v576, %v575
    %v706 = vpack.c.b16 %v578, %v577
    %v707 = vpack.c.b16 %v580, %v579
    %v708 = vpack.c.b16 %v582, %v581
    %v709 = vpack.c.b16 %v584, %v583
    %v710 = vpack.c.b16 %v586, %v585
    %v711 = vpack.c.b16 %v588, %v587
    %v712 = vpack.c.b16 %v590, %v589
    %v713 = vpack.c.b16 %v592, %v591
    %v714 = vpack.c.b16 %v594, %v593
    %v715 = vpack.c.b16 %v596, %v595
    %v716 = vpack.c.b16 %v598, %v597
    %v717 = vpack.c.b16 %v600, %v599
    %v718 = vpack.c.b16 %v602, %v601
    %v719 = vpack.c.b16 %v604, %v603
    %v720 = vpack.c.b16 %v606, %v605
    %v721 = vpack.c.b16 %v608, %v607
    %v722 = vpack.c.b16 %v610, %v609
    %v723 = vpack.c.b16 %v612, %v611
    %v724 = vpack.c.b16 %v614, %v613
    %v725 = vpack.c.b16 %v616, %v615
    %v726 = vpack.c.b16 %v618, %v617
    %v727 = vpack.c.b16 %v620, %v619
    %v728 = vpack.c.b16 %v622, %v621
    %v729 = vpack.c.b16 %v624, %v623
    %v730 = vpack.c.b16 %v626, %v625
    %v731 = vpack.c.b16 %v628, %v627
    %v732 = vpack.c.b16 %v630, %v629
    %v733 = vpack.c.b16 %v632, %v631
    %v734 = vpack.c.b16 %v634, %v633
    %v735 = vpack.c.b16 %v636, %v635
    %v736 = vpack.c.b16 %v638, %v637
    %vm835 = vcmask 261120
    %v836 = vsel %vm835, %v234, 0
    %838 = vmatpush.bf16.msra.mxu0 %v646
    %839 = vmatpush.bf16.msra.mxu0 %v645
    %840 = vmatpush.bf16.msra.mxu0 %v644
    %841 = vmatpush.bf16.msra.mxu0 %v643
    %842 = vmatpush.bf16.msra.mxu0 %v642
    %843 = vmatpush.bf16.msra.mxu0 %v641
    %844 = vmatpush.bf16.msra.mxu0 %v640
    %845 = vmatpush.bf16.msra.mxu0 %v639
    %846 = vmatmul.bf16.gmra.mxu0 %v220
    %v847 = vpop.f32.mrf.mxu0
    %v848 = vadd.f32 %v216, %v847
    %v849 = vpop.f32.mrf.mxu0
    %850 = vdwg.mxu0
    %851 = vmatpush.bf16.msra.mxu0 %v654
    %852 = vmatpush.bf16.msra.mxu0 %v653
    %853 = vmatpush.bf16.msra.mxu0 %v652
    %854 = vmatpush.bf16.msra.mxu0 %v651
    %855 = vmatpush.bf16.msra.mxu0 %v650
    %856 = vmatpush.bf16.msra.mxu0 %v649
    %857 = vmatpush.bf16.msra.mxu0 %v648
    %858 = vmatpush.bf16.msra.mxu0 %v647
    %859 = vmatmul.bf16.gmra.mxu0 %v221
    %v860 = vpop.f32.mrf.mxu0
    %v861 = vadd.f32 %v848, %v860
    %v862 = vpop.f32.mrf.mxu0
    %863 = vdwg.mxu0
    %864 = vmatpush.bf16.msra.mxu0 %v662
    %865 = vmatpush.bf16.msra.mxu0 %v661
    %866 = vmatpush.bf16.msra.mxu0 %v660
    %867 = vmatpush.bf16.msra.mxu0 %v659
    %868 = vmatpush.bf16.msra.mxu0 %v658
    %869 = vmatpush.bf16.msra.mxu0 %v657
    %870 = vmatpush.bf16.msra.mxu0 %v656
    %871 = vmatpush.bf16.msra.mxu0 %v655
    %872 = vmatmul.bf16.gmra.mxu0 %v222
    %v873 = vpop.f32.mrf.mxu0
    %v874 = vadd.f32 %v861, %v873
    %v875 = vpop.f32.mrf.mxu0
    %876 = vdwg.mxu0
    %877 = vmatpush.bf16.msra.mxu0 %v670
    %878 = vmatpush.bf16.msra.mxu0 %v669
    %879 = vmatpush.bf16.msra.mxu0 %v668
    %880 = vmatpush.bf16.msra.mxu0 %v667
    %881 = vmatpush.bf16.msra.mxu0 %v666
    %882 = vmatpush.bf16.msra.mxu0 %v665
    %883 = vmatpush.bf16.msra.mxu0 %v664
    %884 = vmatpush.bf16.msra.mxu0 %v663
    %885 = vmatmul.bf16.gmra.mxu0 %v223
    %v886 = vpop.f32.mrf.mxu0
    %v887 = vadd.f32 %v874, %v886
    %v888 = vpop.f32.mrf.mxu0
    %889 = vdwg.mxu0
    %890 = vmatpush.bf16.msra.mxu0 %v678
    %891 = vmatpush.bf16.msra.mxu0 %v677
    %892 = vmatpush.bf16.msra.mxu0 %v676
    %893 = vmatpush.bf16.msra.mxu0 %v675
    %894 = vmatpush.bf16.msra.mxu0 %v674
    %895 = vmatpush.bf16.msra.mxu0 %v673
    %896 = vmatpush.bf16.msra.mxu0 %v672
    %897 = vmatpush.bf16.msra.mxu0 %v671
    %898 = vmatmul.bf16.gmra.mxu0 %v224
    %v899 = vpop.f32.mrf.mxu0
    %v900 = vadd.f32 %v887, %v899
    %v901 = vpop.f32.mrf.mxu0
    %902 = vdwg.mxu0
    %903 = vmatpush.bf16.msra.mxu0 %v686
    %904 = vmatpush.bf16.msra.mxu0 %v685
    %905 = vmatpush.bf16.msra.mxu0 %v684
    %906 = vmatpush.bf16.msra.mxu0 %v683
    %907 = vmatpush.bf16.msra.mxu0 %v682
    %908 = vmatpush.bf16.msra.mxu0 %v681
    %909 = vmatpush.bf16.msra.mxu0 %v680
    %910 = vmatpush.bf16.msra.mxu0 %v679
    %911 = vmatmul.bf16.gmra.mxu0 %v225
    %v912 = vpop.f32.mrf.mxu0
    %v913 = vadd.f32 %v900, %v912
    %v914 = vpop.f32.mrf.mxu0
    %915 = vdwg.mxu0
    %916 = vmatpush.bf16.msra.mxu0 %v694
    %917 = vmatpush.bf16.msra.mxu0 %v693
    %918 = vmatpush.bf16.msra.mxu0 %v692
    %919 = vmatpush.bf16.msra.mxu0 %v691
    %920 = vmatpush.bf16.msra.mxu0 %v690
    %921 = vmatpush.bf16.msra.mxu0 %v689
    %922 = vmatpush.bf16.msra.mxu0 %v688
    %923 = vmatpush.bf16.msra.mxu0 %v687
    %924 = vmatmul.bf16.gmra.mxu0 %v226
    %v925 = vpop.f32.mrf.mxu0
    %v926 = vadd.f32 %v913, %v925
    %v927 = vpop.f32.mrf.mxu0
    %928 = vdwg.mxu0
    %929 = vmatpush.bf16.msra.mxu0 %v702
    %930 = vmatpush.bf16.msra.mxu0 %v701
    %931 = vmatpush.bf16.msra.mxu0 %v700
    %932 = vmatpush.bf16.msra.mxu0 %v699
    %933 = vmatpush.bf16.msra.mxu0 %v698
    %934 = vmatpush.bf16.msra.mxu0 %v697
    %935 = vmatpush.bf16.msra.mxu0 %v696
    %936 = vmatpush.bf16.msra.mxu0 %v695
    %937 = vmatmul.bf16.gmra.mxu0 %v227
    %v938 = vpop.f32.mrf.mxu0
    %v939 = vadd.f32 %v926, %v938
    %v940 = vpop.f32.mrf.mxu0
    %941 = vdwg.mxu0
    %942 = vmatpush.bf16.msra.mxu0 %v710
    %943 = vmatpush.bf16.msra.mxu0 %v709
    %944 = vmatpush.bf16.msra.mxu0 %v708
    %945 = vmatpush.bf16.msra.mxu0 %v707
    %946 = vmatpush.bf16.msra.mxu0 %v706
    %947 = vmatpush.bf16.msra.mxu0 %v705
    %948 = vmatpush.bf16.msra.mxu0 %v704
    %949 = vmatpush.bf16.msra.mxu0 %v703
    %950 = vmatmul.bf16.gmra.mxu0 %v230
    %v951 = vpop.f32.mrf.mxu0
    %v952 = vadd.f32 %v939, %v951
    %v953 = vpop.f32.mrf.mxu0
    %954 = vdwg.mxu0
    %955 = vmatpush.bf16.msra.mxu0 %v718
    %956 = vmatpush.bf16.msra.mxu0 %v717
    %957 = vmatpush.bf16.msra.mxu0 %v716
    %958 = vmatpush.bf16.msra.mxu0 %v715
    %959 = vmatpush.bf16.msra.mxu0 %v714
    %960 = vmatpush.bf16.msra.mxu0 %v713
    %961 = vmatpush.bf16.msra.mxu0 %v712
    %962 = vmatpush.bf16.msra.mxu0 %v711
    %963 = vmatmul.bf16.gmra.mxu0 %v231
    %v964 = vpop.f32.mrf.mxu0
    %v965 = vadd.f32 %v952, %v964
    %v966 = vpop.f32.mrf.mxu0
    %967 = vdwg.mxu0
    %968 = vmatpush.bf16.msra.mxu0 %v726
    %969 = vmatpush.bf16.msra.mxu0 %v725
    %970 = vmatpush.bf16.msra.mxu0 %v724
    %971 = vmatpush.bf16.msra.mxu0 %v723
    %972 = vmatpush.bf16.msra.mxu0 %v722
    %973 = vmatpush.bf16.msra.mxu0 %v721
    %974 = vmatpush.bf16.msra.mxu0 %v720
    %975 = vmatpush.bf16.msra.mxu0 %v719
    %976 = vmatmul.bf16.gmra.mxu0 %v232
    %v977 = vpop.f32.mrf.mxu0
    %v978 = vadd.f32 %v965, %v977
    %v979 = vpop.f32.mrf.mxu0
    %980 = vdwg.mxu0
    %981 = vmatpush.bf16.msra.mxu0 %v734
    %982 = vmatpush.bf16.msra.mxu0 %v733
    %983 = vmatpush.bf16.msra.mxu0 %v732
    %984 = vmatpush.bf16.msra.mxu0 %v731
    %985 = vmatpush.bf16.msra.mxu0 %v730
    %986 = vmatpush.bf16.msra.mxu0 %v729
    %987 = vmatpush.bf16.msra.mxu0 %v728
    %988 = vmatpush.bf16.msra.mxu0 %v727
    %989 = vmatmul.bf16.gmra.mxu0 %v233
    %v990 = vpop.f32.mrf.mxu0
    %v991 = vadd.f32 %v978, %v990
    %v992 = vpop.f32.mrf.mxu0
    %993 = vdwg.mxu0
    %994 = vmatpush.bf16.msra.mxu0 0
    %995 = vmatpush.bf16.msra.mxu0 0
    %996 = vmatpush.bf16.msra.mxu0 0
    %997 = vmatpush.bf16.msra.mxu0 0
    %998 = vmatpush.bf16.msra.mxu0 0
    %999 = vmatpush.bf16.msra.mxu0 0
    %1000 = vmatpush.bf16.msra.mxu0 %v736
    %1001 = vmatpush.bf16.msra.mxu0 %v735
    %1002 = vmatmul.bf16.gmra.mxu0 %v836
    %v1003 = vpop.f32.mrf.mxu0
    %v1004 = vadd.f32 %v991, %v1003
    %v1005 = vpop.f32.mrf.mxu0
    %1006 = vdwg.mxu0
    %1007 = vst [vmem:[#allocation2] sm:$0x3] %v1004
    // Predicated region
    $region14: #{convnet_forward.5} parent=1 // pred_check
      _
    $region15: #{convnet_forward.5} parent=1 // pred_check_branch
      %1009 = sbr.rel (0) target = $region17
    $region16: #{convnet_forward.5} parent=1 // pred_region
      %1011 = vsyncadd [#allocation3], 0
      %s1013 = sshll.u32 [#allocation2], 4
      %s1014 = int_to_ptr.vmem [resolvable:$true] %s1013
      %s1015 = sshll.u32 %s3, 4
      %s1016 = int_to_ptr.hbm [resolvable:$true] %s1015
      %1018 = dma.vmem_to_hbm [thread:$0]  %s1014, 32, %s1016, [#allocation3]
    $region17: #{convnet_forward.5} parent=1 // pred_fallthru
      _
    // Predicated region
    $region18: #{convnet_forward.5} parent=1 // pred_check
      _
    $region19: #{convnet_forward.5} parent=1 // pred_check_branch
      %1020 = sbr.rel (0) target = $region21
    $region20: #{convnet_forward.5} parent=1 // pred_region
      %1022 = dma.done [#allocation3], 32
    $region21: #{convnet_forward.5} parent=1 // pred_fallthru
      _
    %1023 = vsyncpa [#allocation3], 1

</llo_original>
